<compile_context>
chip_gen: v7x
topology: tpu7x:2x2x1
jax: 0.10.0
libtpu: 0.0.40
codegen_flags: <defaults>
</compile_context>

<pallas_src>
import functools
import math

import jax
import jax.numpy as jnp
from jax import lax
from jax.experimental import pallas as pl
from jax.experimental.pallas import tpu as pltpu

VMEM = pltpu.MemorySpace.VMEM

# Residual-combine constants of make_res_block_encoder_feature_extractor
A_VAL, B_VAL = 2.0, 0.3
# Static conv hyper-parameters of FeatureExtractorText (MIMIC): k=4, stride=2,
# per-resblock paddings 1,1,1,1,0 (Python constants -> never traced).
KSIZE, STRIDE = 4, 2
RB_PADS = (1, 1, 1, 1, 0)
CP = 128      # every channel dim zero-padded to one full lane width
POFF = 8      # sublane-aligned offset of the data inside the padded scratch


def _conv_out_len(l, pad):
    return (l + 2 * pad - KSIZE) // STRIDE + 1


# ------------------------------- fused kernel -------------------------------

def _encoder_kernel(ids_ref, emb_ref, wconv_ref, w1x1_ref, vec_ref, whead_ref,
                    out_ref, pada_ref, padb_ref, *, L, V):
    """Entire EncoderText eval forward for ONE batch element (grid axis = batch)."""

    def vrow(r):                                   # (1, CP) f32 per-channel row
        return vec_ref[r:r + 1, :]

    def fill_pad(ref, val, lc, pad):
        """Write activation 8-aligned into the padded scratch; zero only pad rows."""
        off = POFF if pad else 0
        if pad:
            ref[off - 1:off, :] = jnp.zeros((1, CP), jnp.float32)        # left pad
            ref[off + lc:off + lc + 1, :] = jnp.zeros((1, CP), jnp.float32)  # right pad
        ref[off:off + lc, :] = val                  # lane-dense, sublane-aligned store

    def conv_k4s2(ref, w_flat, b_row, lc, pad):
        """Strided conv as in-VMEM im2col + ONE MXU matmul."""
        lout = _conv_out_len(lc, pad)
        start = (POFF if pad else 0) - pad
        col = jnp.concatenate(
            [ref[pl.ds(start + k, lout, stride=STRIDE), :] for k in range(KSIZE)],
            axis=1).astype(jnp.bfloat16)            # (lout, K*CP), single cast
        return jnp.dot(col, w_flat, preferred_element_type=jnp.float32) + b_row

    # --- embedding lookup as an exact one-hot (f32) matmul on the MXU ---
    onehot = (ids_ref[...] ==
              lax.broadcasted_iota(jnp.int32, (L, V), 1)).astype(jnp.float32)
    x = jnp.dot(onehot, emb_ref[...], preferred_element_type=jnp.float32)   # (L, CP)

    # --- conv1: k=4, s=2, pad=1 ---
    lc, pad = L, 1
    fill_pad(pada_ref, x, lc, pad)
    h = conv_k4s2(pada_ref, wconv_ref[0], vrow(0), lc, pad)
    lc = _conv_out_len(lc, pad)

    # --- 5 fused residual blocks (eval: dropout=identity, BN folded) ---
    for i, pad in enumerate(RB_PADS):
        base = 1 + 7 * i
        x = h
        a = jnp.maximum(x * vrow(base) + vrow(base + 1), 0.0)              # BN1+ReLU
        a = jnp.dot(a.astype(jnp.bfloat16), w1x1_ref[i],
                    preferred_element_type=jnp.float32) + vrow(base + 2)   # 1x1 conv
        a = jnp.maximum(a * vrow(base + 3) + vrow(base + 4), 0.0)          # BN2+ReLU
        fill_pad(pada_ref, a, lc, pad)
        fill_pad(padb_ref, x, lc, pad)
        out_c = conv_k4s2(pada_ref, wconv_ref[1 + 2 * i], vrow(base + 5), lc, pad)
        res_c = conv_k4s2(padb_ref, wconv_ref[2 + 2 * i], vrow(base + 6), lc, pad)
        h = A_VAL * res_c + B_VAL * out_c                                  # residual combine
        lc = _conv_out_len(lc, pad)

    # --- concatenated mu|logvar heads; h is (1, CP) with the 5D real features ---
    out = jnp.dot(h.astype(jnp.bfloat16), whead_ref[...],
                  preferred_element_type=jnp.float32) + vrow(1 + 7 * len(RB_PADS))
    out_ref[...] = out


def encoder_pallas(ids_col, emb, w_conv, w_1x1, vecs, w_heads):
    """ids_col: (B, L, 1) int32.  Returns the lane-padded (B, CP) head outputs."""
    B, L, _ = ids_col.shape
    V = emb.shape[0]
    kernel = functools.partial(_encoder_kernel, L=L, V=V)
    pad_rows = POFF + L + 8
    out3 = pl.pallas_call(
        kernel,
        out_shape=jax.ShapeDtypeStruct((B, 1, CP), jnp.float32),
        grid=(B,),
        in_specs=[
            pl.BlockSpec((None, L, 1), lambda b: (b, 0, 0)),   # token ids (per batch)
            pl.BlockSpec(memory_space=VMEM),                   # embedding table
            pl.BlockSpec(memory_space=VMEM),                   # 11 strided-conv weights
            pl.BlockSpec(memory_space=VMEM),                   # 5 1x1-conv weights
            pl.BlockSpec(memory_space=VMEM),                   # scale/shift/bias rows
            pl.BlockSpec(memory_space=VMEM),                   # heads weight
        ],
        out_specs=pl.BlockSpec((None, 1, CP), lambda b: (b, 0, 0)),
        scratch_shapes=[pltpu.VMEM((pad_rows, CP), jnp.float32),   # padded conv2 input
                        pltpu.VMEM((pad_rows, CP), jnp.float32)],  # padded downsample input
        compiler_params=pltpu.CompilerParams(dimension_semantics=("parallel",)),
    )(ids_col, emb, w_conv, w_1x1, vecs, w_heads)
    return out3.reshape(B, CP)


# ------------------------- parameter init (PyTorch layout) -------------------

def conv_init(key, cout, cin, k):
    k1, k2 = jax.random.split(key)
    bound = 1.0 / math.sqrt(cin * k)
    return {"w": jax.random.uniform(k1, (cout, cin, k), jnp.float32, -bound, bound),
            "b": jax.random.uniform(k2, (cout,), jnp.float32, -bound, bound)}


def linear_init(key, in_f, out_f):
    k1, k2 = jax.random.split(key)
    bound = 1.0 / math.sqrt(in_f)
    return {"w": jax.random.uniform(k1, (out_f, in_f), jnp.float32, -bound, bound),
            "b": jax.random.uniform(k2, (out_f,), jnp.float32, -bound, bound)}


def bn_init(c):
    return {"gamma": jnp.ones((c,), jnp.float32), "beta": jnp.zeros((c,), jnp.float32),
            "mean": jnp.zeros((c,), jnp.float32), "var": jnp.ones((c,), jnp.float32)}


def resblock_init(key, cin, cout, k):
    keys = jax.random.split(key, 3)
    return {"bn1": bn_init(cin), "conv1": conv_init(keys[0], cin, cin, 1),
            "bn2": bn_init(cin), "conv2": conv_init(keys[1], cout, cin, k),
            "ds_conv": conv_init(keys[2], cout, cin, k), "ds_bn": bn_init(cout)}


def init_encoder_params(key, vocab_size, dim_text, class_dim):
    d = dim_text
    keys = jax.random.split(key, 9)
    emb = 0.02 * jax.random.normal(keys[0], (vocab_size, d), jnp.float32)
    emb = emb.at[0].set(0.0)                      # nn.Embedding(padding_idx=0)
    return {
        "embedding": emb,
        "conv1": conv_init(keys[1], d, d, KSIZE),
        # channel schedule D->2D->3D->4D->5D->5D, strided k=4 convs
        "rb": [resblock_init(keys[2], 1 * d, 2 * d, KSIZE),
               resblock_init(keys[3], 2 * d, 3 * d, KSIZE),
               resblock_init(keys[4], 3 * d, 4 * d, KSIZE),
               resblock_init(keys[5], 4 * d, 5 * d, KSIZE),
               resblock_init(keys[6], 5 * d, 5 * d, KSIZE)],
        "mu": linear_init(keys[7], 5 * d, class_dim),
        "logvar": linear_init(keys[8], 5 * d, class_dim),
    }


# -------------------- parameter preparation (fold / pack / pad) --------------

def _bn_scale_shift(p, eps=1e-5):
    scale = p["gamma"] / jnp.sqrt(p["var"] + eps)
    shift = p["beta"] - p["mean"] * scale
    return scale, shift


def _pad_last(a, n):
    return jnp.pad(a, [(0, 0)] * (a.ndim - 1) + [(0, n - a.shape[-1])])


def _row(v):
    return _pad_last(v.reshape(1, -1), CP)


def _conv_w_flat(w):
    """PyTorch Conv1d weight (Cout, Cin, K) -> lane-padded (K*CP, CP), tap-major rows."""
    k = w.shape[2]
    w_kio = jnp.transpose(w, (2, 1, 0))                                  # (K, Cin, Cout)
    w_kio = jnp.pad(w_kio, ((0, 0), (0, CP - w_kio.shape[1]), (0, CP - w_kio.shape[2])))
    return w_kio.reshape(k * CP, CP)


def prepare_params(raw):
    """Fold eval-mode BatchNorms, pack conv weights as (K*CP, CP) bf16, pad all channel
    dims to 128 lanes, concatenate the mu|logvar heads.  Runs once, outside the jit."""
    w_conv = [_conv_w_flat(raw["conv1"]["w"])]
    w_1x1 = []
    vec_rows = [_row(raw["conv1"]["b"])]
    for p in raw["rb"]:
        s1, t1 = _bn_scale_shift(p["bn1"])
        s2, t2 = _bn_scale_shift(p["bn2"])
        dss, dst = _bn_scale_shift(p["ds_bn"])
        wds = p["ds_conv"]["w"] * dss[:, None, None]          # fold downsample BN scale
        bds = p["ds_conv"]["b"] * dss + dst                   # fold downsample BN shift
        w_conv += [_conv_w_flat(p["conv2"]["w"]), _conv_w_flat(wds)]
        w1 = jnp.transpose(p["conv1"]["w"][:, :, 0], (1, 0))  # (Cin, Cout) for 1x1 conv
        w_1x1.append(jnp.pad(w1, ((0, CP - w1.shape[0]), (0, CP - w1.shape[1]))))
        vec_rows += [_row(s1), _row(t1), _row(p["conv1"]["b"]),
                     _row(s2), _row(t2), _row(p["conv2"]["b"]), _row(bds)]
    # mu|logvar heads concatenated, (in, out) layout, lane padded
    wh = jnp.concatenate([raw["mu"]["w"].T, raw["logvar"]["w"].T], axis=1)
    wh = jnp.pad(wh, ((0, CP - wh.shape[0]), (0, CP - wh.shape[1])))
    vec_rows.append(_row(jnp.concatenate([raw["mu"]["b"], raw["logvar"]["b"]], axis=0)))
    return {"emb": _pad_last(raw["embedding"], CP),
            "w_conv": jnp.stack(w_conv).astype(jnp.bfloat16),
            "w_1x1": jnp.stack(w_1x1).astype(jnp.bfloat16),
            "vecs": jnp.concatenate(vec_rows, axis=0),
            "w_heads": wh.astype(jnp.bfloat16)}


# ------------------------------ forward pass --------------------------------

@functools.partial(jax.jit, static_argnames=("class_dim",))
def encoder_text_forward(params, x_text, *, class_dim):
    """x_text: (B, L) int32 token ids. Returns (None, None, mu_content, logvar_content)."""
    B, L = x_text.shape
    ids_col = x_text.astype(jnp.int32).reshape(B, L, 1)
    out = encoder_pallas(ids_col, params["emb"], params["w_conv"],
                         params["w_1x1"], params["vecs"], params["w_heads"])
    mu = out[:, :class_dim]
    logvar = out[:, class_dim:2 * class_dim]
    return None, None, mu, logvar


if __name__ == "__main__":
    B, L = 2, 128                        # len_sequence = 128
    VOCAB, D, CLASS_DIM = 32, 16, 20     # flags.vocab_size / DIM_text / class_dim
    key = jax.random.PRNGKey(0)
    pkey, xkey = jax.random.split(key)
    raw_params = init_encoder_params(pkey, VOCAB, D, CLASS_DIM)
    params = prepare_params(raw_params)
    x_text = jax.random.randint(xkey, (B, L), 0, VOCAB, dtype=jnp.int32)

    s_mu, s_lv, mu_content, logvar_content = encoder_text_forward(
        params, x_text, class_dim=CLASS_DIM)
    jax.block_until_ready((mu_content, logvar_content))

    assert s_mu is None and s_lv is None
    assert mu_content.shape == (B, CLASS_DIM)
    assert logvar_content.shape == (B, CLASS_DIM)
    assert bool(jnp.all(jnp.isfinite(mu_content)))
    assert bool(jnp.all(jnp.isfinite(logvar_content)))
    print("KERNEL_OK")
</pallas_src>

<mosaic_0001>
module attributes {stable_mosaic.version = 11 : i64} {
  func.func @_encoder_kernel(%arg0: i32, %arg1: memref<1x128x1xi32, #tpu.memory_space<vmem>>, %arg2: memref<32x128xf32, #tpu.memory_space<vmem>>, %arg3: memref<11x512x128xbf16, #tpu.memory_space<vmem>>, %arg4: memref<5x128x128xbf16, #tpu.memory_space<vmem>>, %arg5: memref<37x128xf32, #tpu.memory_space<vmem>>, %arg6: memref<128x128xbf16, #tpu.memory_space<vmem>>, %arg7: memref<1x1x128xf32, #tpu.memory_space<vmem>>, %arg8: memref<144x128xf32, #tpu.memory_space<vmem>>, %arg9: memref<144x128xf32, #tpu.memory_space<vmem>>) attributes {dimension_semantics = [#tpu.dimension_semantics<parallel>], iteration_bounds = array<i64: 2>, scalar_prefetch = 0 : i64, scratch_operands = 2 : i64, tpu.core_type = #tpu.core_type<tc>, window_params = [{transform_indices = @transform_0, window_bounds = array<i64: 1, 128, 1>}, {pipeline_mode = #tpu.pipeline_mode<synchronous>, transform_indices = @transform_1, window_bounds = array<i64: 32, 128>}, {pipeline_mode = #tpu.pipeline_mode<synchronous>, transform_indices = @transform_2, window_bounds = array<i64: 11, 512, 128>}, {pipeline_mode = #tpu.pipeline_mode<synchronous>, transform_indices = @transform_3, window_bounds = array<i64: 5, 128, 128>}, {pipeline_mode = #tpu.pipeline_mode<synchronous>, transform_indices = @transform_4, window_bounds = array<i64: 37, 128>}, {pipeline_mode = #tpu.pipeline_mode<synchronous>, transform_indices = @transform_5, window_bounds = array<i64: 128, 128>}, {transform_indices = @transform_6, window_bounds = array<i64: 1, 1, 128>}]} {
    %c0 = arith.constant 0 : index
    %c0_0 = arith.constant 0 : index
    %c0_1 = arith.constant 0 : index
    %0 = vector.load %arg1[%c0, %c0_0, %c0_1] : memref<1x128x1xi32, #tpu.memory_space<vmem>>, vector<1x128x1xi32>
    %1 = vector.shape_cast %0 : vector<1x128x1xi32> to vector<128x1xi32>
    %2 = tpu.iota {dimensions = array<i32: 1>} : vector<128x32xi32>
    %3 = vector.broadcast %1 : vector<128x1xi32> to vector<128x32xi32>
    %4 = arith.cmpi eq, %3, %2 : vector<128x32xi32>
    %5 = arith.extui %4 : vector<128x32xi1> to vector<128x32xi32>
    %6 = arith.sitofp %5 : vector<128x32xi32> to vector<128x32xf32>
    %c0_2 = arith.constant 0 : index
    %c0_3 = arith.constant 0 : index
    %7 = vector.load %arg2[%c0_2, %c0_3] : memref<32x128xf32, #tpu.memory_space<vmem>>, vector<32x128xf32>
    %cst = arith.constant dense<0.000000e+00> : vector<128x128xf32>
    %8 = tpu.matmul %6, %7, %cst {dimension_numbers = #tpu.dot_dimension_numbers<[1], [0], [0], [1], [0, 0, 1, 1], [], []>} : vector<128x32xf32>, vector<32x128xf32>, vector<128x128xf32> -> vector<128x128xf32>
    %cst_4 = arith.constant 0.000000e+00 : f32
    %9 = vector.broadcast %cst_4 : f32 to vector<1x128xf32>
    %c7 = arith.constant 7 : index
    %c0_5 = arith.constant 0 : index
    %10 = vector.load %arg8[%c7, %c0_5] : memref<144x128xf32, #tpu.memory_space<vmem>>, vector<1x128xf32>
    tpu.vector_store %arg8[%c7, %c0_5], %9 {strides = array<i32>} : memref<144x128xf32, #tpu.memory_space<vmem>>, vector<1x128xf32>,
    %cst_6 = arith.constant 0.000000e+00 : f32
    %11 = vector.broadcast %cst_6 : f32 to vector<1x128xf32>
    %c136 = arith.constant 136 : index
    %c0_7 = arith.constant 0 : index
    %12 = vector.load %arg8[%c136, %c0_7] : memref<144x128xf32, #tpu.memory_space<vmem>>, vector<1x128xf32>
    tpu.vector_store %arg8[%c136, %c0_7], %11 {strides = array<i32>} : memref<144x128xf32, #tpu.memory_space<vmem>>, vector<1x128xf32>,
    %c8 = arith.constant 8 : index
    %c0_8 = arith.constant 0 : index
    %13 = vector.load %arg8[%c8, %c0_8] : memref<144x128xf32, #tpu.memory_space<vmem>>, vector<128x128xf32>
    tpu.vector_store %arg8[%c8, %c0_8], %8 {strides = array<i32>} : memref<144x128xf32, #tpu.memory_space<vmem>>, vector<128x128xf32>,
    %c0_9 = arith.constant 0 : index
    %c0_10 = arith.constant 0 : index
    %c0_11 = arith.constant 0 : index
    %14 = vector.load %arg3[%c0_9, %c0_10, %c0_11] : memref<11x512x128xbf16, #tpu.memory_space<vmem>>, vector<1x512x128xbf16>
    %15 = vector.shape_cast %14 : vector<1x512x128xbf16> to vector<512x128xbf16>
    %c0_12 = arith.constant 0 : index
    %c0_13 = arith.constant 0 : index
    %16 = vector.load %arg5[%c0_12, %c0_13] : memref<37x128xf32, #tpu.memory_space<vmem>>, vector<1x128xf32>
    %c7_14 = arith.constant 7 : index
    %c0_15 = arith.constant 0 : index
    %17 = tpu.strided_load %arg8[%c7_14, %c0_15] {strides = array<i32: 2, 1>} : memref<144x128xf32, #tpu.memory_space<vmem>>, vector<64x128xf32>
    %c8_16 = arith.constant 8 : index
    %c0_17 = arith.constant 0 : index
    %18 = tpu.strided_load %arg8[%c8_16, %c0_17] {strides = array<i32: 2, 1>} : memref<144x128xf32, #tpu.memory_space<vmem>>, vector<64x128xf32>
    %c9 = arith.constant 9 : index
    %c0_18 = arith.constant 0 : index
    %19 = tpu.strided_load %arg8[%c9, %c0_18] {strides = array<i32: 2, 1>} : memref<144x128xf32, #tpu.memory_space<vmem>>, vector<64x128xf32>
    %c10 = arith.constant 10 : index
    %c0_19 = arith.constant 0 : index
    %20 = tpu.strided_load %arg8[%c10, %c0_19] {strides = array<i32: 2, 1>} : memref<144x128xf32, #tpu.memory_space<vmem>>, vector<64x128xf32>
    %21 = tpu.concatenate %17, %18, %19, %20 in 1 : vector<64x128xf32>, vector<64x128xf32>, vector<64x128xf32>, vector<64x128xf32> -> vector<64x512xf32>
    %22 = arith.truncf %21 : vector<64x512xf32> to vector<64x512xbf16>
    %cst_20 = arith.constant dense<0.000000e+00> : vector<64x128xf32>
    %23 = tpu.matmul %22, %15, %cst_20 {dimension_numbers = #tpu.dot_dimension_numbers<[1], [0], [0], [1], [0, 0, 1, 1], [], []>} : vector<64x512xbf16>, vector<512x128xbf16>, vector<64x128xf32> -> vector<64x128xf32>
    %24 = vector.broadcast %16 : vector<1x128xf32> to vector<64x128xf32>
    %25 = arith.addf %23, %24 : vector<64x128xf32>
    %c1 = arith.constant 1 : index
    %c0_21 = arith.constant 0 : index
    %26 = vector.load %arg5[%c1, %c0_21] : memref<37x128xf32, #tpu.memory_space<vmem>>, vector<1x128xf32>
    %27 = vector.broadcast %26 : vector<1x128xf32> to vector<64x128xf32>
    %28 = arith.mulf %25, %27 : vector<64x128xf32>
    %c2 = arith.constant 2 : index
    %c0_22 = arith.constant 0 : index
    %29 = vector.load %arg5[%c2, %c0_22] : memref<37x128xf32, #tpu.memory_space<vmem>>, vector<1x128xf32>
    %30 = vector.broadcast %29 : vector<1x128xf32> to vector<64x128xf32>
    %31 = arith.addf %28, %30 : vector<64x128xf32>
    %cst_23 = arith.constant 0.000000e+00 : f32
    %32 = vector.broadcast %cst_23 : f32 to vector<64x128xf32>
    %33 = arith.maximumf %31, %32 : vector<64x128xf32>
    %34 = arith.truncf %33 : vector<64x128xf32> to vector<64x128xbf16>
    %c0_24 = arith.constant 0 : index
    %c0_25 = arith.constant 0 : index
    %c0_26 = arith.constant 0 : index
    %35 = vector.load %arg4[%c0_24, %c0_25, %c0_26] : memref<5x128x128xbf16, #tpu.memory_space<vmem>>, vector<1x128x128xbf16>
    %36 = vector.shape_cast %35 : vector<1x128x128xbf16> to vector<128x128xbf16>
    %cst_27 = arith.constant dense<0.000000e+00> : vector<64x128xf32>
    %37 = tpu.matmul %34, %36, %cst_27 {dimension_numbers = #tpu.dot_dimension_numbers<[1], [0], [0], [1], [0, 0, 1, 1], [], []>} : vector<64x128xbf16>, vector<128x128xbf16>, vector<64x128xf32> -> vector<64x128xf32>
    %c3 = arith.constant 3 : index
    %c0_28 = arith.constant 0 : index
    %38 = vector.load %arg5[%c3, %c0_28] : memref<37x128xf32, #tpu.memory_space<vmem>>, vector<1x128xf32>
    %39 = vector.broadcast %38 : vector<1x128xf32> to vector<64x128xf32>
    %40 = arith.addf %37, %39 : vector<64x128xf32>
    %c4 = arith.constant 4 : index
    %c0_29 = arith.constant 0 : index
    %41 = vector.load %arg5[%c4, %c0_29] : memref<37x128xf32, #tpu.memory_space<vmem>>, vector<1x128xf32>
    %42 = vector.broadcast %41 : vector<1x128xf32> to vector<64x128xf32>
    %43 = arith.mulf %40, %42 : vector<64x128xf32>
    %c5 = arith.constant 5 : index
    %c0_30 = arith.constant 0 : index
    %44 = vector.load %arg5[%c5, %c0_30] : memref<37x128xf32, #tpu.memory_space<vmem>>, vector<1x128xf32>
    %45 = vector.broadcast %44 : vector<1x128xf32> to vector<64x128xf32>
    %46 = arith.addf %43, %45 : vector<64x128xf32>
    %cst_31 = arith.constant 0.000000e+00 : f32
    %47 = vector.broadcast %cst_31 : f32 to vector<64x128xf32>
    %48 = arith.maximumf %46, %47 : vector<64x128xf32>
    %cst_32 = arith.constant 0.000000e+00 : f32
    %49 = vector.broadcast %cst_32 : f32 to vector<1x128xf32>
    %c7_33 = arith.constant 7 : index
    %c0_34 = arith.constant 0 : index
    %50 = vector.load %arg8[%c7_33, %c0_34] : memref<144x128xf32, #tpu.memory_space<vmem>>, vector<1x128xf32>
    tpu.vector_store %arg8[%c7_33, %c0_34], %49 {strides = array<i32>} : memref<144x128xf32, #tpu.memory_space<vmem>>, vector<1x128xf32>,
    %cst_35 = arith.constant 0.000000e+00 : f32
    %51 = vector.broadcast %cst_35 : f32 to vector<1x128xf32>
    %c72 = arith.constant 72 : index
    %c0_36 = arith.constant 0 : index
    %52 = vector.load %arg8[%c72, %c0_36] : memref<144x128xf32, #tpu.memory_space<vmem>>, vector<1x128xf32>
    tpu.vector_store %arg8[%c72, %c0_36], %51 {strides = array<i32>} : memref<144x128xf32, #tpu.memory_space<vmem>>, vector<1x128xf32>,
    %c8_37 = arith.constant 8 : index
    %c0_38 = arith.constant 0 : index
    %53 = vector.load %arg8[%c8_37, %c0_38] : memref<144x128xf32, #tpu.memory_space<vmem>>, vector<64x128xf32>
    tpu.vector_store %arg8[%c8_37, %c0_38], %48 {strides = array<i32>} : memref<144x128xf32, #tpu.memory_space<vmem>>, vector<64x128xf32>,
    %cst_39 = arith.constant 0.000000e+00 : f32
    %54 = vector.broadcast %cst_39 : f32 to vector<1x128xf32>
    %c7_40 = arith.constant 7 : index
    %c0_41 = arith.constant 0 : index
    %55 = vector.load %arg9[%c7_40, %c0_41] : memref<144x128xf32, #tpu.memory_space<vmem>>, vector<1x128xf32>
    tpu.vector_store %arg9[%c7_40, %c0_41], %54 {strides = array<i32>} : memref<144x128xf32, #tpu.memory_space<vmem>>, vector<1x128xf32>,
    %cst_42 = arith.constant 0.000000e+00 : f32
    %56 = vector.broadcast %cst_42 : f32 to vector<1x128xf32>
    %c72_43 = arith.constant 72 : index
    %c0_44 = arith.constant 0 : index
    %57 = vector.load %arg9[%c72_43, %c0_44] : memref<144x128xf32, #tpu.memory_space<vmem>>, vector<1x128xf32>
    tpu.vector_store %arg9[%c72_43, %c0_44], %56 {strides = array<i32>} : memref<144x128xf32, #tpu.memory_space<vmem>>, vector<1x128xf32>,
    %c8_45 = arith.constant 8 : index
    %c0_46 = arith.constant 0 : index
    %58 = vector.load %arg9[%c8_45, %c0_46] : memref<144x128xf32, #tpu.memory_space<vmem>>, vector<64x128xf32>
    tpu.vector_store %arg9[%c8_45, %c0_46], %25 {strides = array<i32>} : memref<144x128xf32, #tpu.memory_space<vmem>>, vector<64x128xf32>,
    %c1_47 = arith.constant 1 : index
    %c0_48 = arith.constant 0 : index
    %c0_49 = arith.constant 0 : index
    %59 = vector.load %arg3[%c1_47, %c0_48, %c0_49] : memref<11x512x128xbf16, #tpu.memory_space<vmem>>, vector<1x512x128xbf16>
    %60 = vector.shape_cast %59 : vector<1x512x128xbf16> to vector<512x128xbf16>
    %c6 = arith.constant 6 : index
    %c0_50 = arith.constant 0 : index
    %61 = vector.load %arg5[%c6, %c0_50] : memref<37x128xf32, #tpu.memory_space<vmem>>, vector<1x128xf32>
    %c7_51 = arith.constant 7 : index
    %c0_52 = arith.constant 0 : index
    %62 = tpu.strided_load %arg8[%c7_51, %c0_52] {strides = array<i32: 2, 1>} : memref<144x128xf32, #tpu.memory_space<vmem>>, vector<32x128xf32>
    %c8_53 = arith.constant 8 : index
    %c0_54 = arith.constant 0 : index
    %63 = tpu.strided_load %arg8[%c8_53, %c0_54] {strides = array<i32: 2, 1>} : memref<144x128xf32, #tpu.memory_space<vmem>>, vector<32x128xf32>
    %c9_55 = arith.constant 9 : index
    %c0_56 = arith.constant 0 : index
    %64 = tpu.strided_load %arg8[%c9_55, %c0_56] {strides = array<i32: 2, 1>} : memref<144x128xf32, #tpu.memory_space<vmem>>, vector<32x128xf32>
    %c10_57 = arith.constant 10 : index
    %c0_58 = arith.constant 0 : index
    %65 = tpu.strided_load %arg8[%c10_57, %c0_58] {strides = array<i32: 2, 1>} : memref<144x128xf32, #tpu.memory_space<vmem>>, vector<32x128xf32>
    %66 = tpu.concatenate %62, %63, %64, %65 in 1 : vector<32x128xf32>, vector<32x128xf32>, vector<32x128xf32>, vector<32x128xf32> -> vector<32x512xf32>
    %67 = arith.truncf %66 : vector<32x512xf32> to vector<32x512xbf16>
    %cst_59 = arith.constant dense<0.000000e+00> : vector<32x128xf32>
    %68 = tpu.matmul %67, %60, %cst_59 {dimension_numbers = #tpu.dot_dimension_numbers<[1], [0], [0], [1], [0, 0, 1, 1], [], []>} : vector<32x512xbf16>, vector<512x128xbf16>, vector<32x128xf32> -> vector<32x128xf32>
    %69 = vector.broadcast %61 : vector<1x128xf32> to vector<32x128xf32>
    %70 = arith.addf %68, %69 : vector<32x128xf32>
    %c2_60 = arith.constant 2 : index
    %c0_61 = arith.constant 0 : index
    %c0_62 = arith.constant 0 : index
    %71 = vector.load %arg3[%c2_60, %c0_61, %c0_62] : memref<11x512x128xbf16, #tpu.memory_space<vmem>>, vector<1x512x128xbf16>
    %72 = vector.shape_cast %71 : vector<1x512x128xbf16> to vector<512x128xbf16>
    %c7_63 = arith.constant 7 : index
    %c0_64 = arith.constant 0 : index
    %73 = vector.load %arg5[%c7_63, %c0_64] : memref<37x128xf32, #tpu.memory_space<vmem>>, vector<1x128xf32>
    %c7_65 = arith.constant 7 : index
    %c0_66 = arith.constant 0 : index
    %74 = tpu.strided_load %arg9[%c7_65, %c0_66] {strides = array<i32: 2, 1>} : memref<144x128xf32, #tpu.memory_space<vmem>>, vector<32x128xf32>
    %c8_67 = arith.constant 8 : index
    %c0_68 = arith.constant 0 : index
    %75 = tpu.strided_load %arg9[%c8_67, %c0_68] {strides = array<i32: 2, 1>} : memref<144x128xf32, #tpu.memory_space<vmem>>, vector<32x128xf32>
    %c9_69 = arith.constant 9 : index
    %c0_70 = arith.constant 0 : index
    %76 = tpu.strided_load %arg9[%c9_69, %c0_70] {strides = array<i32: 2, 1>} : memref<144x128xf32, #tpu.memory_space<vmem>>, vector<32x128xf32>
    %c10_71 = arith.constant 10 : index
    %c0_72 = arith.constant 0 : index
    %77 = tpu.strided_load %arg9[%c10_71, %c0_72] {strides = array<i32: 2, 1>} : memref<144x128xf32, #tpu.memory_space<vmem>>, vector<32x128xf32>
    %78 = tpu.concatenate %74, %75, %76, %77 in 1 : vector<32x128xf32>, vector<32x128xf32>, vector<32x128xf32>, vector<32x128xf32> -> vector<32x512xf32>
    %79 = arith.truncf %78 : vector<32x512xf32> to vector<32x512xbf16>
    %cst_73 = arith.constant dense<0.000000e+00> : vector<32x128xf32>
    %80 = tpu.matmul %79, %72, %cst_73 {dimension_numbers = #tpu.dot_dimension_numbers<[1], [0], [0], [1], [0, 0, 1, 1], [], []>} : vector<32x512xbf16>, vector<512x128xbf16>, vector<32x128xf32> -> vector<32x128xf32>
    %81 = vector.broadcast %73 : vector<1x128xf32> to vector<32x128xf32>
    %82 = arith.addf %80, %81 : vector<32x128xf32>
    %cst_74 = arith.constant 2.000000e+00 : f32
    %83 = vector.broadcast %cst_74 : f32 to vector<32x128xf32>
    %84 = arith.mulf %83, %82 : vector<32x128xf32>
    %cst_75 = arith.constant 3.000000e-01 : f32
    %85 = vector.broadcast %cst_75 : f32 to vector<32x128xf32>
    %86 = arith.mulf %85, %70 : vector<32x128xf32>
    %87 = arith.addf %84, %86 : vector<32x128xf32>
    %c8_76 = arith.constant 8 : index
    %c0_77 = arith.constant 0 : index
    %88 = vector.load %arg5[%c8_76, %c0_77] : memref<37x128xf32, #tpu.memory_space<vmem>>, vector<1x128xf32>
    %89 = vector.broadcast %88 : vector<1x128xf32> to vector<32x128xf32>
    %90 = arith.mulf %87, %89 : vector<32x128xf32>
    %c9_78 = arith.constant 9 : index
    %c0_79 = arith.constant 0 : index
    %91 = vector.load %arg5[%c9_78, %c0_79] : memref<37x128xf32, #tpu.memory_space<vmem>>, vector<1x128xf32>
    %92 = vector.broadcast %91 : vector<1x128xf32> to vector<32x128xf32>
    %93 = arith.addf %90, %92 : vector<32x128xf32>
    %cst_80 = arith.constant 0.000000e+00 : f32
    %94 = vector.broadcast %cst_80 : f32 to vector<32x128xf32>
    %95 = arith.maximumf %93, %94 : vector<32x128xf32>
    %96 = arith.truncf %95 : vector<32x128xf32> to vector<32x128xbf16>
    %c1_81 = arith.constant 1 : index
    %c0_82 = arith.constant 0 : index
    %c0_83 = arith.constant 0 : index
    %97 = vector.load %arg4[%c1_81, %c0_82, %c0_83] : memref<5x128x128xbf16, #tpu.memory_space<vmem>>, vector<1x128x128xbf16>
    %98 = vector.shape_cast %97 : vector<1x128x128xbf16> to vector<128x128xbf16>
    %cst_84 = arith.constant dense<0.000000e+00> : vector<32x128xf32>
    %99 = tpu.matmul %96, %98, %cst_84 {dimension_numbers = #tpu.dot_dimension_numbers<[1], [0], [0], [1], [0, 0, 1, 1], [], []>} : vector<32x128xbf16>, vector<128x128xbf16>, vector<32x128xf32> -> vector<32x128xf32>
    %c10_85 = arith.constant 10 : index
    %c0_86 = arith.constant 0 : index
    %100 = vector.load %arg5[%c10_85, %c0_86] : memref<37x128xf32, #tpu.memory_space<vmem>>, vector<1x128xf32>
    %101 = vector.broadcast %100 : vector<1x128xf32> to vector<32x128xf32>
    %102 = arith.addf %99, %101 : vector<32x128xf32>
    %c11 = arith.constant 11 : index
    %c0_87 = arith.constant 0 : index
    %103 = vector.load %arg5[%c11, %c0_87] : memref<37x128xf32, #tpu.memory_space<vmem>>, vector<1x128xf32>
    %104 = vector.broadcast %103 : vector<1x128xf32> to vector<32x128xf32>
    %105 = arith.mulf %102, %104 : vector<32x128xf32>
    %c12 = arith.constant 12 : index
    %c0_88 = arith.constant 0 : index
    %106 = vector.load %arg5[%c12, %c0_88] : memref<37x128xf32, #tpu.memory_space<vmem>>, vector<1x128xf32>
    %107 = vector.broadcast %106 : vector<1x128xf32> to vector<32x128xf32>
    %108 = arith.addf %105, %107 : vector<32x128xf32>
    %cst_89 = arith.constant 0.000000e+00 : f32
    %109 = vector.broadcast %cst_89 : f32 to vector<32x128xf32>
    %110 = arith.maximumf %108, %109 : vector<32x128xf32>
    %cst_90 = arith.constant 0.000000e+00 : f32
    %111 = vector.broadcast %cst_90 : f32 to vector<1x128xf32>
    %c7_91 = arith.constant 7 : index
    %c0_92 = arith.constant 0 : index
    %112 = vector.load %arg8[%c7_91, %c0_92] : memref<144x128xf32, #tpu.memory_space<vmem>>, vector<1x128xf32>
    tpu.vector_store %arg8[%c7_91, %c0_92], %111 {strides = array<i32>} : memref<144x128xf32, #tpu.memory_space<vmem>>, vector<1x128xf32>,
    %cst_93 = arith.constant 0.000000e+00 : f32
    %113 = vector.broadcast %cst_93 : f32 to vector<1x128xf32>
    %c40 = arith.constant 40 : index
    %c0_94 = arith.constant 0 : index
    %114 = vector.load %arg8[%c40, %c0_94] : memref<144x128xf32, #tpu.memory_space<vmem>>, vector<1x128xf32>
    tpu.vector_store %arg8[%c40, %c0_94], %113 {strides = array<i32>} : memref<144x128xf32, #tpu.memory_space<vmem>>, vector<1x128xf32>,
    %c8_95 = arith.constant 8 : index
    %c0_96 = arith.constant 0 : index
    %115 = vector.load %arg8[%c8_95, %c0_96] : memref<144x128xf32, #tpu.memory_space<vmem>>, vector<32x128xf32>
    tpu.vector_store %arg8[%c8_95, %c0_96], %110 {strides = array<i32>} : memref<144x128xf32, #tpu.memory_space<vmem>>, vector<32x128xf32>,
    %cst_97 = arith.constant 0.000000e+00 : f32
    %116 = vector.broadcast %cst_97 : f32 to vector<1x128xf32>
    %c7_98 = arith.constant 7 : index
    %c0_99 = arith.constant 0 : index
    %117 = vector.load %arg9[%c7_98, %c0_99] : memref<144x128xf32, #tpu.memory_space<vmem>>, vector<1x128xf32>
    tpu.vector_store %arg9[%c7_98, %c0_99], %116 {strides = array<i32>} : memref<144x128xf32, #tpu.memory_space<vmem>>, vector<1x128xf32>,
    %cst_100 = arith.constant 0.000000e+00 : f32
    %118 = vector.broadcast %cst_100 : f32 to vector<1x128xf32>
    %c40_101 = arith.constant 40 : index
    %c0_102 = arith.constant 0 : index
    %119 = vector.load %arg9[%c40_101, %c0_102] : memref<144x128xf32, #tpu.memory_space<vmem>>, vector<1x128xf32>
    tpu.vector_store %arg9[%c40_101, %c0_102], %118 {strides = array<i32>} : memref<144x128xf32, #tpu.memory_space<vmem>>, vector<1x128xf32>,
    %c8_103 = arith.constant 8 : index
    %c0_104 = arith.constant 0 : index
    %120 = vector.load %arg9[%c8_103, %c0_104] : memref<144x128xf32, #tpu.memory_space<vmem>>, vector<32x128xf32>
    tpu.vector_store %arg9[%c8_103, %c0_104], %87 {strides = array<i32>} : memref<144x128xf32, #tpu.memory_space<vmem>>, vector<32x128xf32>,
    %c3_105 = arith.constant 3 : index
    %c0_106 = arith.constant 0 : index
    %c0_107 = arith.constant 0 : index
    %121 = vector.load %arg3[%c3_105, %c0_106, %c0_107] : memref<11x512x128xbf16, #tpu.memory_space<vmem>>, vector<1x512x128xbf16>
    %122 = vector.shape_cast %121 : vector<1x512x128xbf16> to vector<512x128xbf16>
    %c13 = arith.constant 13 : index
    %c0_108 = arith.constant 0 : index
    %123 = vector.load %arg5[%c13, %c0_108] : memref<37x128xf32, #tpu.memory_space<vmem>>, vector<1x128xf32>
    %c7_109 = arith.constant 7 : index
    %c0_110 = arith.constant 0 : index
    %124 = tpu.strided_load %arg8[%c7_109, %c0_110] {strides = array<i32: 2, 1>} : memref<144x128xf32, #tpu.memory_space<vmem>>, vector<16x128xf32>
    %c8_111 = arith.constant 8 : index
    %c0_112 = arith.constant 0 : index
    %125 = tpu.strided_load %arg8[%c8_111, %c0_112] {strides = array<i32: 2, 1>} : memref<144x128xf32, #tpu.memory_space<vmem>>, vector<16x128xf32>
    %c9_113 = arith.constant 9 : index
    %c0_114 = arith.constant 0 : index
    %126 = tpu.strided_load %arg8[%c9_113, %c0_114] {strides = array<i32: 2, 1>} : memref<144x128xf32, #tpu.memory_space<vmem>>, vector<16x128xf32>
    %c10_115 = arith.constant 10 : index
    %c0_116 = arith.constant 0 : index
    %127 = tpu.strided_load %arg8[%c10_115, %c0_116] {strides = array<i32: 2, 1>} : memref<144x128xf32, #tpu.memory_space<vmem>>, vector<16x128xf32>
    %128 = tpu.concatenate %124, %125, %126, %127 in 1 : vector<16x128xf32>, vector<16x128xf32>, vector<16x128xf32>, vector<16x128xf32> -> vector<16x512xf32>
    %129 = arith.truncf %128 : vector<16x512xf32> to vector<16x512xbf16>
    %cst_117 = arith.constant dense<0.000000e+00> : vector<16x128xf32>
    %130 = tpu.matmul %129, %122, %cst_117 {dimension_numbers = #tpu.dot_dimension_numbers<[1], [0], [0], [1], [0, 0, 1, 1], [], []>} : vector<16x512xbf16>, vector<512x128xbf16>, vector<16x128xf32> -> vector<16x128xf32>
    %131 = vector.broadcast %123 : vector<1x128xf32> to vector<16x128xf32>
    %132 = arith.addf %130, %131 : vector<16x128xf32>
    %c4_118 = arith.constant 4 : index
    %c0_119 = arith.constant 0 : index
    %c0_120 = arith.constant 0 : index
    %133 = vector.load %arg3[%c4_118, %c0_119, %c0_120] : memref<11x512x128xbf16, #tpu.memory_space<vmem>>, vector<1x512x128xbf16>
    %134 = vector.shape_cast %133 : vector<1x512x128xbf16> to vector<512x128xbf16>
    %c14 = arith.constant 14 : index
    %c0_121 = arith.constant 0 : index
    %135 = vector.load %arg5[%c14, %c0_121] : memref<37x128xf32, #tpu.memory_space<vmem>>, vector<1x128xf32>
    %c7_122 = arith.constant 7 : index
    %c0_123 = arith.constant 0 : index
    %136 = tpu.strided_load %arg9[%c7_122, %c0_123] {strides = array<i32: 2, 1>} : memref<144x128xf32, #tpu.memory_space<vmem>>, vector<16x128xf32>
    %c8_124 = arith.constant 8 : index
    %c0_125 = arith.constant 0 : index
    %137 = tpu.strided_load %arg9[%c8_124, %c0_125] {strides = array<i32: 2, 1>} : memref<144x128xf32, #tpu.memory_space<vmem>>, vector<16x128xf32>
    %c9_126 = arith.constant 9 : index
    %c0_127 = arith.constant 0 : index
    %138 = tpu.strided_load %arg9[%c9_126, %c0_127] {strides = array<i32: 2, 1>} : memref<144x128xf32, #tpu.memory_space<vmem>>, vector<16x128xf32>
    %c10_128 = arith.constant 10 : index
    %c0_129 = arith.constant 0 : index
    %139 = tpu.strided_load %arg9[%c10_128, %c0_129] {strides = array<i32: 2, 1>} : memref<144x128xf32, #tpu.memory_space<vmem>>, vector<16x128xf32>
    %140 = tpu.concatenate %136, %137, %138, %139 in 1 : vector<16x128xf32>, vector<16x128xf32>, vector<16x128xf32>, vector<16x128xf32> -> vector<16x512xf32>
    %141 = arith.truncf %140 : vector<16x512xf32> to vector<16x512xbf16>
    %cst_130 = arith.constant dense<0.000000e+00> : vector<16x128xf32>
    %142 = tpu.matmul %141, %134, %cst_130 {dimension_numbers = #tpu.dot_dimension_numbers<[1], [0], [0], [1], [0, 0, 1, 1], [], []>} : vector<16x512xbf16>, vector<512x128xbf16>, vector<16x128xf32> -> vector<16x128xf32>
    %143 = vector.broadcast %135 : vector<1x128xf32> to vector<16x128xf32>
    %144 = arith.addf %142, %143 : vector<16x128xf32>
    %cst_131 = arith.constant 2.000000e+00 : f32
    %145 = vector.broadcast %cst_131 : f32 to vector<16x128xf32>
    %146 = arith.mulf %145, %144 : vector<16x128xf32>
    %cst_132 = arith.constant 3.000000e-01 : f32
    %147 = vector.broadcast %cst_132 : f32 to vector<16x128xf32>
    %148 = arith.mulf %147, %132 : vector<16x128xf32>
    %149 = arith.addf %146, %148 : vector<16x128xf32>
    %c15 = arith.constant 15 : index
    %c0_133 = arith.constant 0 : index
    %150 = vector.load %arg5[%c15, %c0_133] : memref<37x128xf32, #tpu.memory_space<vmem>>, vector<1x128xf32>
    %151 = vector.broadcast %150 : vector<1x128xf32> to vector<16x128xf32>
    %152 = arith.mulf %149, %151 : vector<16x128xf32>
    %c16 = arith.constant 16 : index
    %c0_134 = arith.constant 0 : index
    %153 = vector.load %arg5[%c16, %c0_134] : memref<37x128xf32, #tpu.memory_space<vmem>>, vector<1x128xf32>
    %154 = vector.broadcast %153 : vector<1x128xf32> to vector<16x128xf32>
    %155 = arith.addf %152, %154 : vector<16x128xf32>
    %cst_135 = arith.constant 0.000000e+00 : f32
    %156 = vector.broadcast %cst_135 : f32 to vector<16x128xf32>
    %157 = arith.maximumf %155, %156 : vector<16x128xf32>
    %158 = arith.truncf %157 : vector<16x128xf32> to vector<16x128xbf16>
    %c2_136 = arith.constant 2 : index
    %c0_137 = arith.constant 0 : index
    %c0_138 = arith.constant 0 : index
    %159 = vector.load %arg4[%c2_136, %c0_137, %c0_138] : memref<5x128x128xbf16, #tpu.memory_space<vmem>>, vector<1x128x128xbf16>
    %160 = vector.shape_cast %159 : vector<1x128x128xbf16> to vector<128x128xbf16>
    %cst_139 = arith.constant dense<0.000000e+00> : vector<16x128xf32>
    %161 = tpu.matmul %158, %160, %cst_139 {dimension_numbers = #tpu.dot_dimension_numbers<[1], [0], [0], [1], [0, 0, 1, 1], [], []>} : vector<16x128xbf16>, vector<128x128xbf16>, vector<16x128xf32> -> vector<16x128xf32>
    %c17 = arith.constant 17 : index
    %c0_140 = arith.constant 0 : index
    %162 = vector.load %arg5[%c17, %c0_140] : memref<37x128xf32, #tpu.memory_space<vmem>>, vector<1x128xf32>
    %163 = vector.broadcast %162 : vector<1x128xf32> to vector<16x128xf32>
    %164 = arith.addf %161, %163 : vector<16x128xf32>
    %c18 = arith.constant 18 : index
    %c0_141 = arith.constant 0 : index
    %165 = vector.load %arg5[%c18, %c0_141] : memref<37x128xf32, #tpu.memory_space<vmem>>, vector<1x128xf32>
    %166 = vector.broadcast %165 : vector<1x128xf32> to vector<16x128xf32>
    %167 = arith.mulf %164, %166 : vector<16x128xf32>
    %c19 = arith.constant 19 : index
    %c0_142 = arith.constant 0 : index
    %168 = vector.load %arg5[%c19, %c0_142] : memref<37x128xf32, #tpu.memory_space<vmem>>, vector<1x128xf32>
    %169 = vector.broadcast %168 : vector<1x128xf32> to vector<16x128xf32>
    %170 = arith.addf %167, %169 : vector<16x128xf32>
    %cst_143 = arith.constant 0.000000e+00 : f32
    %171 = vector.broadcast %cst_143 : f32 to vector<16x128xf32>
    %172 = arith.maximumf %170, %171 : vector<16x128xf32>
    %cst_144 = arith.constant 0.000000e+00 : f32
    %173 = vector.broadcast %cst_144 : f32 to vector<1x128xf32>
    %c7_145 = arith.constant 7 : index
    %c0_146 = arith.constant 0 : index
    %174 = vector.load %arg8[%c7_145, %c0_146] : memref<144x128xf32, #tpu.memory_space<vmem>>, vector<1x128xf32>
    tpu.vector_store %arg8[%c7_145, %c0_146], %173 {strides = array<i32>} : memref<144x128xf32, #tpu.memory_space<vmem>>, vector<1x128xf32>,
    %cst_147 = arith.constant 0.000000e+00 : f32
    %175 = vector.broadcast %cst_147 : f32 to vector<1x128xf32>
    %c24 = arith.constant 24 : index
    %c0_148 = arith.constant 0 : index
    %176 = vector.load %arg8[%c24, %c0_148] : memref<144x128xf32, #tpu.memory_space<vmem>>, vector<1x128xf32>
    tpu.vector_store %arg8[%c24, %c0_148], %175 {strides = array<i32>} : memref<144x128xf32, #tpu.memory_space<vmem>>, vector<1x128xf32>,
    %c8_149 = arith.constant 8 : index
    %c0_150 = arith.constant 0 : index
    %177 = vector.load %arg8[%c8_149, %c0_150] : memref<144x128xf32, #tpu.memory_space<vmem>>, vector<16x128xf32>
    tpu.vector_store %arg8[%c8_149, %c0_150], %172 {strides = array<i32>} : memref<144x128xf32, #tpu.memory_space<vmem>>, vector<16x128xf32>,
    %cst_151 = arith.constant 0.000000e+00 : f32
    %178 = vector.broadcast %cst_151 : f32 to vector<1x128xf32>
    %c7_152 = arith.constant 7 : index
    %c0_153 = arith.constant 0 : index
    %179 = vector.load %arg9[%c7_152, %c0_153] : memref<144x128xf32, #tpu.memory_space<vmem>>, vector<1x128xf32>
    tpu.vector_store %arg9[%c7_152, %c0_153], %178 {strides = array<i32>} : memref<144x128xf32, #tpu.memory_space<vmem>>, vector<1x128xf32>,
    %cst_154 = arith.constant 0.000000e+00 : f32
    %180 = vector.broadcast %cst_154 : f32 to vector<1x128xf32>
    %c24_155 = arith.constant 24 : index
    %c0_156 = arith.constant 0 : index
    %181 = vector.load %arg9[%c24_155, %c0_156] : memref<144x128xf32, #tpu.memory_space<vmem>>, vector<1x128xf32>
    tpu.vector_store %arg9[%c24_155, %c0_156], %180 {strides = array<i32>} : memref<144x128xf32, #tpu.memory_space<vmem>>, vector<1x128xf32>,
    %c8_157 = arith.constant 8 : index
    %c0_158 = arith.constant 0 : index
    %182 = vector.load %arg9[%c8_157, %c0_158] : memref<144x128xf32, #tpu.memory_space<vmem>>, vector<16x128xf32>
    tpu.vector_store %arg9[%c8_157, %c0_158], %149 {strides = array<i32>} : memref<144x128xf32, #tpu.memory_space<vmem>>, vector<16x128xf32>,
    %c5_159 = arith.constant 5 : index
    %c0_160 = arith.constant 0 : index
    %c0_161 = arith.constant 0 : index
    %183 = vector.load %arg3[%c5_159, %c0_160, %c0_161] : memref<11x512x128xbf16, #tpu.memory_space<vmem>>, vector<1x512x128xbf16>
    %184 = vector.shape_cast %183 : vector<1x512x128xbf16> to vector<512x128xbf16>
    %c20 = arith.constant 20 : index
    %c0_162 = arith.constant 0 : index
    %185 = vector.load %arg5[%c20, %c0_162] : memref<37x128xf32, #tpu.memory_space<vmem>>, vector<1x128xf32>
    %c7_163 = arith.constant 7 : index
    %c0_164 = arith.constant 0 : index
    %186 = tpu.strided_load %arg8[%c7_163, %c0_164] {strides = array<i32: 2, 1>} : memref<144x128xf32, #tpu.memory_space<vmem>>, vector<8x128xf32>
    %c8_165 = arith.constant 8 : index
    %c0_166 = arith.constant 0 : index
    %187 = tpu.strided_load %arg8[%c8_165, %c0_166] {strides = array<i32: 2, 1>} : memref<144x128xf32, #tpu.memory_space<vmem>>, vector<8x128xf32>
    %c9_167 = arith.constant 9 : index
    %c0_168 = arith.constant 0 : index
    %188 = tpu.strided_load %arg8[%c9_167, %c0_168] {strides = array<i32: 2, 1>} : memref<144x128xf32, #tpu.memory_space<vmem>>, vector<8x128xf32>
    %c10_169 = arith.constant 10 : index
    %c0_170 = arith.constant 0 : index
    %189 = tpu.strided_load %arg8[%c10_169, %c0_170] {strides = array<i32: 2, 1>} : memref<144x128xf32, #tpu.memory_space<vmem>>, vector<8x128xf32>
    %190 = tpu.concatenate %186, %187, %188, %189 in 1 : vector<8x128xf32>, vector<8x128xf32>, vector<8x128xf32>, vector<8x128xf32> -> vector<8x512xf32>
    %191 = arith.truncf %190 : vector<8x512xf32> to vector<8x512xbf16>
    %cst_171 = arith.constant dense<0.000000e+00> : vector<8x128xf32>
    %192 = tpu.matmul %191, %184, %cst_171 {dimension_numbers = #tpu.dot_dimension_numbers<[1], [0], [0], [1], [0, 0, 1, 1], [], []>} : vector<8x512xbf16>, vector<512x128xbf16>, vector<8x128xf32> -> vector<8x128xf32>
    %193 = vector.broadcast %185 : vector<1x128xf32> to vector<8x128xf32>
    %194 = arith.addf %192, %193 : vector<8x128xf32>
    %c6_172 = arith.constant 6 : index
    %c0_173 = arith.constant 0 : index
    %c0_174 = arith.constant 0 : index
    %195 = vector.load %arg3[%c6_172, %c0_173, %c0_174] : memref<11x512x128xbf16, #tpu.memory_space<vmem>>, vector<1x512x128xbf16>
    %196 = vector.shape_cast %195 : vector<1x512x128xbf16> to vector<512x128xbf16>
    %c21 = arith.constant 21 : index
    %c0_175 = arith.constant 0 : index
    %197 = vector.load %arg5[%c21, %c0_175] : memref<37x128xf32, #tpu.memory_space<vmem>>, vector<1x128xf32>
    %c7_176 = arith.constant 7 : index
    %c0_177 = arith.constant 0 : index
    %198 = tpu.strided_load %arg9[%c7_176, %c0_177] {strides = array<i32: 2, 1>} : memref<144x128xf32, #tpu.memory_space<vmem>>, vector<8x128xf32>
    %c8_178 = arith.constant 8 : index
    %c0_179 = arith.constant 0 : index
    %199 = tpu.strided_load %arg9[%c8_178, %c0_179] {strides = array<i32: 2, 1>} : memref<144x128xf32, #tpu.memory_space<vmem>>, vector<8x128xf32>
    %c9_180 = arith.constant 9 : index
    %c0_181 = arith.constant 0 : index
    %200 = tpu.strided_load %arg9[%c9_180, %c0_181] {strides = array<i32: 2, 1>} : memref<144x128xf32, #tpu.memory_space<vmem>>, vector<8x128xf32>
    %c10_182 = arith.constant 10 : index
    %c0_183 = arith.constant 0 : index
    %201 = tpu.strided_load %arg9[%c10_182, %c0_183] {strides = array<i32: 2, 1>} : memref<144x128xf32, #tpu.memory_space<vmem>>, vector<8x128xf32>
    %202 = tpu.concatenate %198, %199, %200, %201 in 1 : vector<8x128xf32>, vector<8x128xf32>, vector<8x128xf32>, vector<8x128xf32> -> vector<8x512xf32>
    %203 = arith.truncf %202 : vector<8x512xf32> to vector<8x512xbf16>
    %cst_184 = arith.constant dense<0.000000e+00> : vector<8x128xf32>
    %204 = tpu.matmul %203, %196, %cst_184 {dimension_numbers = #tpu.dot_dimension_numbers<[1], [0], [0], [1], [0, 0, 1, 1], [], []>} : vector<8x512xbf16>, vector<512x128xbf16>, vector<8x128xf32> -> vector<8x128xf32>
    %205 = vector.broadcast %197 : vector<1x128xf32> to vector<8x128xf32>
    %206 = arith.addf %204, %205 : vector<8x128xf32>
    %cst_185 = arith.constant 2.000000e+00 : f32
    %207 = vector.broadcast %cst_185 : f32 to vector<8x128xf32>
    %208 = arith.mulf %207, %206 : vector<8x128xf32>
    %cst_186 = arith.constant 3.000000e-01 : f32
    %209 = vector.broadcast %cst_186 : f32 to vector<8x128xf32>
    %210 = arith.mulf %209, %194 : vector<8x128xf32>
    %211 = arith.addf %208, %210 : vector<8x128xf32>
    %c22 = arith.constant 22 : index
    %c0_187 = arith.constant 0 : index
    %212 = vector.load %arg5[%c22, %c0_187] : memref<37x128xf32, #tpu.memory_space<vmem>>, vector<1x128xf32>
    %213 = vector.broadcast %212 : vector<1x128xf32> to vector<8x128xf32>
    %214 = arith.mulf %211, %213 : vector<8x128xf32>
    %c23 = arith.constant 23 : index
    %c0_188 = arith.constant 0 : index
    %215 = vector.load %arg5[%c23, %c0_188] : memref<37x128xf32, #tpu.memory_space<vmem>>, vector<1x128xf32>
    %216 = vector.broadcast %215 : vector<1x128xf32> to vector<8x128xf32>
    %217 = arith.addf %214, %216 : vector<8x128xf32>
    %cst_189 = arith.constant 0.000000e+00 : f32
    %218 = vector.broadcast %cst_189 : f32 to vector<8x128xf32>
    %219 = arith.maximumf %217, %218 : vector<8x128xf32>
    %220 = arith.truncf %219 : vector<8x128xf32> to vector<8x128xbf16>
    %c3_190 = arith.constant 3 : index
    %c0_191 = arith.constant 0 : index
    %c0_192 = arith.constant 0 : index
    %221 = vector.load %arg4[%c3_190, %c0_191, %c0_192] : memref<5x128x128xbf16, #tpu.memory_space<vmem>>, vector<1x128x128xbf16>
    %222 = vector.shape_cast %221 : vector<1x128x128xbf16> to vector<128x128xbf16>
    %cst_193 = arith.constant dense<0.000000e+00> : vector<8x128xf32>
    %223 = tpu.matmul %220, %222, %cst_193 {dimension_numbers = #tpu.dot_dimension_numbers<[1], [0], [0], [1], [0, 0, 1, 1], [], []>} : vector<8x128xbf16>, vector<128x128xbf16>, vector<8x128xf32> -> vector<8x128xf32>
    %c24_194 = arith.constant 24 : index
    %c0_195 = arith.constant 0 : index
    %224 = vector.load %arg5[%c24_194, %c0_195] : memref<37x128xf32, #tpu.memory_space<vmem>>, vector<1x128xf32>
    %225 = vector.broadcast %224 : vector<1x128xf32> to vector<8x128xf32>
    %226 = arith.addf %223, %225 : vector<8x128xf32>
    %c25 = arith.constant 25 : index
    %c0_196 = arith.constant 0 : index
    %227 = vector.load %arg5[%c25, %c0_196] : memref<37x128xf32, #tpu.memory_space<vmem>>, vector<1x128xf32>
    %228 = vector.broadcast %227 : vector<1x128xf32> to vector<8x128xf32>
    %229 = arith.mulf %226, %228 : vector<8x128xf32>
    %c26 = arith.constant 26 : index
    %c0_197 = arith.constant 0 : index
    %230 = vector.load %arg5[%c26, %c0_197] : memref<37x128xf32, #tpu.memory_space<vmem>>, vector<1x128xf32>
    %231 = vector.broadcast %230 : vector<1x128xf32> to vector<8x128xf32>
    %232 = arith.addf %229, %231 : vector<8x128xf32>
    %cst_198 = arith.constant 0.000000e+00 : f32
    %233 = vector.broadcast %cst_198 : f32 to vector<8x128xf32>
    %234 = arith.maximumf %232, %233 : vector<8x128xf32>
    %cst_199 = arith.constant 0.000000e+00 : f32
    %235 = vector.broadcast %cst_199 : f32 to vector<1x128xf32>
    %c7_200 = arith.constant 7 : index
    %c0_201 = arith.constant 0 : index
    %236 = vector.load %arg8[%c7_200, %c0_201] : memref<144x128xf32, #tpu.memory_space<vmem>>, vector<1x128xf32>
    tpu.vector_store %arg8[%c7_200, %c0_201], %235 {strides = array<i32>} : memref<144x128xf32, #tpu.memory_space<vmem>>, vector<1x128xf32>,
    %cst_202 = arith.constant 0.000000e+00 : f32
    %237 = vector.broadcast %cst_202 : f32 to vector<1x128xf32>
    %c16_203 = arith.constant 16 : index
    %c0_204 = arith.constant 0 : index
    %238 = vector.load %arg8[%c16_203, %c0_204] : memref<144x128xf32, #tpu.memory_space<vmem>>, vector<1x128xf32>
    tpu.vector_store %arg8[%c16_203, %c0_204], %237 {strides = array<i32>} : memref<144x128xf32, #tpu.memory_space<vmem>>, vector<1x128xf32>,
    %c8_205 = arith.constant 8 : index
    %c0_206 = arith.constant 0 : index
    %239 = vector.load %arg8[%c8_205, %c0_206] : memref<144x128xf32, #tpu.memory_space<vmem>>, vector<8x128xf32>
    tpu.vector_store %arg8[%c8_205, %c0_206], %234 {strides = array<i32>} : memref<144x128xf32, #tpu.memory_space<vmem>>, vector<8x128xf32>,
    %cst_207 = arith.constant 0.000000e+00 : f32
    %240 = vector.broadcast %cst_207 : f32 to vector<1x128xf32>
    %c7_208 = arith.constant 7 : index
    %c0_209 = arith.constant 0 : index
    %241 = vector.load %arg9[%c7_208, %c0_209] : memref<144x128xf32, #tpu.memory_space<vmem>>, vector<1x128xf32>
    tpu.vector_store %arg9[%c7_208, %c0_209], %240 {strides = array<i32>} : memref<144x128xf32, #tpu.memory_space<vmem>>, vector<1x128xf32>,
    %cst_210 = arith.constant 0.000000e+00 : f32
    %242 = vector.broadcast %cst_210 : f32 to vector<1x128xf32>
    %c16_211 = arith.constant 16 : index
    %c0_212 = arith.constant 0 : index
    %243 = vector.load %arg9[%c16_211, %c0_212] : memref<144x128xf32, #tpu.memory_space<vmem>>, vector<1x128xf32>
    tpu.vector_store %arg9[%c16_211, %c0_212], %242 {strides = array<i32>} : memref<144x128xf32, #tpu.memory_space<vmem>>, vector<1x128xf32>,
    %c8_213 = arith.constant 8 : index
    %c0_214 = arith.constant 0 : index
    %244 = vector.load %arg9[%c8_213, %c0_214] : memref<144x128xf32, #tpu.memory_space<vmem>>, vector<8x128xf32>
    tpu.vector_store %arg9[%c8_213, %c0_214], %211 {strides = array<i32>} : memref<144x128xf32, #tpu.memory_space<vmem>>, vector<8x128xf32>,
    %c7_215 = arith.constant 7 : index
    %c0_216 = arith.constant 0 : index
    %c0_217 = arith.constant 0 : index
    %245 = vector.load %arg3[%c7_215, %c0_216, %c0_217] : memref<11x512x128xbf16, #tpu.memory_space<vmem>>, vector<1x512x128xbf16>
    %246 = vector.shape_cast %245 : vector<1x512x128xbf16> to vector<512x128xbf16>
    %c27 = arith.constant 27 : index
    %c0_218 = arith.constant 0 : index
    %247 = vector.load %arg5[%c27, %c0_218] : memref<37x128xf32, #tpu.memory_space<vmem>>, vector<1x128xf32>
    %c7_219 = arith.constant 7 : index
    %c0_220 = arith.constant 0 : index
    %248 = tpu.strided_load %arg8[%c7_219, %c0_220] {strides = array<i32: 2, 1>} : memref<144x128xf32, #tpu.memory_space<vmem>>, vector<4x128xf32>
    %c8_221 = arith.constant 8 : index
    %c0_222 = arith.constant 0 : index
    %249 = tpu.strided_load %arg8[%c8_221, %c0_222] {strides = array<i32: 2, 1>} : memref<144x128xf32, #tpu.memory_space<vmem>>, vector<4x128xf32>
    %c9_223 = arith.constant 9 : index
    %c0_224 = arith.constant 0 : index
    %250 = tpu.strided_load %arg8[%c9_223, %c0_224] {strides = array<i32: 2, 1>} : memref<144x128xf32, #tpu.memory_space<vmem>>, vector<4x128xf32>
    %c10_225 = arith.constant 10 : index
    %c0_226 = arith.constant 0 : index
    %251 = tpu.strided_load %arg8[%c10_225, %c0_226] {strides = array<i32: 2, 1>} : memref<144x128xf32, #tpu.memory_space<vmem>>, vector<4x128xf32>
    %252 = tpu.concatenate %248, %249, %250, %251 in 1 : vector<4x128xf32>, vector<4x128xf32>, vector<4x128xf32>, vector<4x128xf32> -> vector<4x512xf32>
    %253 = arith.truncf %252 : vector<4x512xf32> to vector<4x512xbf16>
    %cst_227 = arith.constant dense<0.000000e+00> : vector<4x128xf32>
    %254 = tpu.matmul %253, %246, %cst_227 {dimension_numbers = #tpu.dot_dimension_numbers<[1], [0], [0], [1], [0, 0, 1, 1], [], []>} : vector<4x512xbf16>, vector<512x128xbf16>, vector<4x128xf32> -> vector<4x128xf32>
    %255 = vector.broadcast %247 : vector<1x128xf32> to vector<4x128xf32>
    %256 = arith.addf %254, %255 : vector<4x128xf32>
    %c8_228 = arith.constant 8 : index
    %c0_229 = arith.constant 0 : index
    %c0_230 = arith.constant 0 : index
    %257 = vector.load %arg3[%c8_228, %c0_229, %c0_230] : memref<11x512x128xbf16, #tpu.memory_space<vmem>>, vector<1x512x128xbf16>
    %258 = vector.shape_cast %257 : vector<1x512x128xbf16> to vector<512x128xbf16>
    %c28 = arith.constant 28 : index
    %c0_231 = arith.constant 0 : index
    %259 = vector.load %arg5[%c28, %c0_231] : memref<37x128xf32, #tpu.memory_space<vmem>>, vector<1x128xf32>
    %c7_232 = arith.constant 7 : index
    %c0_233 = arith.constant 0 : index
    %260 = tpu.strided_load %arg9[%c7_232, %c0_233] {strides = array<i32: 2, 1>} : memref<144x128xf32, #tpu.memory_space<vmem>>, vector<4x128xf32>
    %c8_234 = arith.constant 8 : index
    %c0_235 = arith.constant 0 : index
    %261 = tpu.strided_load %arg9[%c8_234, %c0_235] {strides = array<i32: 2, 1>} : memref<144x128xf32, #tpu.memory_space<vmem>>, vector<4x128xf32>
    %c9_236 = arith.constant 9 : index
    %c0_237 = arith.constant 0 : index
    %262 = tpu.strided_load %arg9[%c9_236, %c0_237] {strides = array<i32: 2, 1>} : memref<144x128xf32, #tpu.memory_space<vmem>>, vector<4x128xf32>
    %c10_238 = arith.constant 10 : index
    %c0_239 = arith.constant 0 : index
    %263 = tpu.strided_load %arg9[%c10_238, %c0_239] {strides = array<i32: 2, 1>} : memref<144x128xf32, #tpu.memory_space<vmem>>, vector<4x128xf32>
    %264 = tpu.concatenate %260, %261, %262, %263 in 1 : vector<4x128xf32>, vector<4x128xf32>, vector<4x128xf32>, vector<4x128xf32> -> vector<4x512xf32>
    %265 = arith.truncf %264 : vector<4x512xf32> to vector<4x512xbf16>
    %cst_240 = arith.constant dense<0.000000e+00> : vector<4x128xf32>
    %266 = tpu.matmul %265, %258, %cst_240 {dimension_numbers = #tpu.dot_dimension_numbers<[1], [0], [0], [1], [0, 0, 1, 1], [], []>} : vector<4x512xbf16>, vector<512x128xbf16>, vector<4x128xf32> -> vector<4x128xf32>
    %267 = vector.broadcast %259 : vector<1x128xf32> to vector<4x128xf32>
    %268 = arith.addf %266, %267 : vector<4x128xf32>
    %cst_241 = arith.constant 2.000000e+00 : f32
    %269 = vector.broadcast %cst_241 : f32 to vector<4x128xf32>
    %270 = arith.mulf %269, %268 : vector<4x128xf32>
    %cst_242 = arith.constant 3.000000e-01 : f32
    %271 = vector.broadcast %cst_242 : f32 to vector<4x128xf32>
    %272 = arith.mulf %271, %256 : vector<4x128xf32>
    %273 = arith.addf %270, %272 : vector<4x128xf32>
    %c29 = arith.constant 29 : index
    %c0_243 = arith.constant 0 : index
    %274 = vector.load %arg5[%c29, %c0_243] : memref<37x128xf32, #tpu.memory_space<vmem>>, vector<1x128xf32>
    %275 = vector.broadcast %274 : vector<1x128xf32> to vector<4x128xf32>
    %276 = arith.mulf %273, %275 : vector<4x128xf32>
    %c30 = arith.constant 30 : index
    %c0_244 = arith.constant 0 : index
    %277 = vector.load %arg5[%c30, %c0_244] : memref<37x128xf32, #tpu.memory_space<vmem>>, vector<1x128xf32>
    %278 = vector.broadcast %277 : vector<1x128xf32> to vector<4x128xf32>
    %279 = arith.addf %276, %278 : vector<4x128xf32>
    %cst_245 = arith.constant 0.000000e+00 : f32
    %280 = vector.broadcast %cst_245 : f32 to vector<4x128xf32>
    %281 = arith.maximumf %279, %280 : vector<4x128xf32>
    %282 = arith.truncf %281 : vector<4x128xf32> to vector<4x128xbf16>
    %c4_246 = arith.constant 4 : index
    %c0_247 = arith.constant 0 : index
    %c0_248 = arith.constant 0 : index
    %283 = vector.load %arg4[%c4_246, %c0_247, %c0_248] : memref<5x128x128xbf16, #tpu.memory_space<vmem>>, vector<1x128x128xbf16>
    %284 = vector.shape_cast %283 : vector<1x128x128xbf16> to vector<128x128xbf16>
    %cst_249 = arith.constant dense<0.000000e+00> : vector<4x128xf32>
    %285 = tpu.matmul %282, %284, %cst_249 {dimension_numbers = #tpu.dot_dimension_numbers<[1], [0], [0], [1], [0, 0, 1, 1], [], []>} : vector<4x128xbf16>, vector<128x128xbf16>, vector<4x128xf32> -> vector<4x128xf32>
    %c31 = arith.constant 31 : index
    %c0_250 = arith.constant 0 : index
    %286 = vector.load %arg5[%c31, %c0_250] : memref<37x128xf32, #tpu.memory_space<vmem>>, vector<1x128xf32>
    %287 = vector.broadcast %286 : vector<1x128xf32> to vector<4x128xf32>
    %288 = arith.addf %285, %287 : vector<4x128xf32>
    %c32 = arith.constant 32 : index
    %c0_251 = arith.constant 0 : index
    %289 = vector.load %arg5[%c32, %c0_251] : memref<37x128xf32, #tpu.memory_space<vmem>>, vector<1x128xf32>
    %290 = vector.broadcast %289 : vector<1x128xf32> to vector<4x128xf32>
    %291 = arith.mulf %288, %290 : vector<4x128xf32>
    %c33 = arith.constant 33 : index
    %c0_252 = arith.constant 0 : index
    %292 = vector.load %arg5[%c33, %c0_252] : memref<37x128xf32, #tpu.memory_space<vmem>>, vector<1x128xf32>
    %293 = vector.broadcast %292 : vector<1x128xf32> to vector<4x128xf32>
    %294 = arith.addf %291, %293 : vector<4x128xf32>
    %cst_253 = arith.constant 0.000000e+00 : f32
    %295 = vector.broadcast %cst_253 : f32 to vector<4x128xf32>
    %296 = arith.maximumf %294, %295 : vector<4x128xf32>
    %c0_254 = arith.constant 0 : index
    %c0_255 = arith.constant 0 : index
    %297 = vector.load %arg8[%c0_254, %c0_255] : memref<144x128xf32, #tpu.memory_space<vmem>>, vector<4x128xf32>
    tpu.vector_store %arg8[%c0_254, %c0_255], %296 {strides = array<i32>} : memref<144x128xf32, #tpu.memory_space<vmem>>, vector<4x128xf32>,
    %c0_256 = arith.constant 0 : index
    %c0_257 = arith.constant 0 : index
    %298 = vector.load %arg9[%c0_256, %c0_257] : memref<144x128xf32, #tpu.memory_space<vmem>>, vector<4x128xf32>
    tpu.vector_store %arg9[%c0_256, %c0_257], %273 {strides = array<i32>} : memref<144x128xf32, #tpu.memory_space<vmem>>, vector<4x128xf32>,
    %c9_258 = arith.constant 9 : index
    %c0_259 = arith.constant 0 : index
    %c0_260 = arith.constant 0 : index
    %299 = vector.load %arg3[%c9_258, %c0_259, %c0_260] : memref<11x512x128xbf16, #tpu.memory_space<vmem>>, vector<1x512x128xbf16>
    %300 = vector.shape_cast %299 : vector<1x512x128xbf16> to vector<512x128xbf16>
    %c34 = arith.constant 34 : index
    %c0_261 = arith.constant 0 : index
    %301 = vector.load %arg5[%c34, %c0_261] : memref<37x128xf32, #tpu.memory_space<vmem>>, vector<1x128xf32>
    %c0_262 = arith.constant 0 : index
    %c0_263 = arith.constant 0 : index
    %302 = tpu.strided_load %arg8[%c0_262, %c0_263] {strides = array<i32: 2, 1>} : memref<144x128xf32, #tpu.memory_space<vmem>>, vector<1x128xf32>
    %c1_264 = arith.constant 1 : index
    %c0_265 = arith.constant 0 : index
    %303 = tpu.strided_load %arg8[%c1_264, %c0_265] {strides = array<i32: 2, 1>} : memref<144x128xf32, #tpu.memory_space<vmem>>, vector<1x128xf32>
    %c2_266 = arith.constant 2 : index
    %c0_267 = arith.constant 0 : index
    %304 = tpu.strided_load %arg8[%c2_266, %c0_267] {strides = array<i32: 2, 1>} : memref<144x128xf32, #tpu.memory_space<vmem>>, vector<1x128xf32>
    %c3_268 = arith.constant 3 : index
    %c0_269 = arith.constant 0 : index
    %305 = tpu.strided_load %arg8[%c3_268, %c0_269] {strides = array<i32: 2, 1>} : memref<144x128xf32, #tpu.memory_space<vmem>>, vector<1x128xf32>
    %306 = tpu.concatenate %302, %303, %304, %305 in 1 : vector<1x128xf32>, vector<1x128xf32>, vector<1x128xf32>, vector<1x128xf32> -> vector<1x512xf32>
    %307 = arith.truncf %306 : vector<1x512xf32> to vector<1x512xbf16>
    %cst_270 = arith.constant dense<0.000000e+00> : vector<1x128xf32>
    %308 = tpu.matmul %307, %300, %cst_270 {dimension_numbers = #tpu.dot_dimension_numbers<[1], [0], [0], [1], [0, 0, 1, 1], [], []>} : vector<1x512xbf16>, vector<512x128xbf16>, vector<1x128xf32> -> vector<1x128xf32>
    %309 = arith.addf %308, %301 : vector<1x128xf32>
    %c10_271 = arith.constant 10 : index
    %c0_272 = arith.constant 0 : index
    %c0_273 = arith.constant 0 : index
    %310 = vector.load %arg3[%c10_271, %c0_272, %c0_273] : memref<11x512x128xbf16, #tpu.memory_space<vmem>>, vector<1x512x128xbf16>
    %311 = vector.shape_cast %310 : vector<1x512x128xbf16> to vector<512x128xbf16>
    %c35 = arith.constant 35 : index
    %c0_274 = arith.constant 0 : index
    %312 = vector.load %arg5[%c35, %c0_274] : memref<37x128xf32, #tpu.memory_space<vmem>>, vector<1x128xf32>
    %c0_275 = arith.constant 0 : index
    %c0_276 = arith.constant 0 : index
    %313 = tpu.strided_load %arg9[%c0_275, %c0_276] {strides = array<i32: 2, 1>} : memref<144x128xf32, #tpu.memory_space<vmem>>, vector<1x128xf32>
    %c1_277 = arith.constant 1 : index
    %c0_278 = arith.constant 0 : index
    %314 = tpu.strided_load %arg9[%c1_277, %c0_278] {strides = array<i32: 2, 1>} : memref<144x128xf32, #tpu.memory_space<vmem>>, vector<1x128xf32>
    %c2_279 = arith.constant 2 : index
    %c0_280 = arith.constant 0 : index
    %315 = tpu.strided_load %arg9[%c2_279, %c0_280] {strides = array<i32: 2, 1>} : memref<144x128xf32, #tpu.memory_space<vmem>>, vector<1x128xf32>
    %c3_281 = arith.constant 3 : index
    %c0_282 = arith.constant 0 : index
    %316 = tpu.strided_load %arg9[%c3_281, %c0_282] {strides = array<i32: 2, 1>} : memref<144x128xf32, #tpu.memory_space<vmem>>, vector<1x128xf32>
    %317 = tpu.concatenate %313, %314, %315, %316 in 1 : vector<1x128xf32>, vector<1x128xf32>, vector<1x128xf32>, vector<1x128xf32> -> vector<1x512xf32>
    %318 = arith.truncf %317 : vector<1x512xf32> to vector<1x512xbf16>
    %cst_283 = arith.constant dense<0.000000e+00> : vector<1x128xf32>
    %319 = tpu.matmul %318, %311, %cst_283 {dimension_numbers = #tpu.dot_dimension_numbers<[1], [0], [0], [1], [0, 0, 1, 1], [], []>} : vector<1x512xbf16>, vector<512x128xbf16>, vector<1x128xf32> -> vector<1x128xf32>
    %320 = arith.addf %319, %312 : vector<1x128xf32>
    %cst_284 = arith.constant 2.000000e+00 : f32
    %321 = vector.broadcast %cst_284 : f32 to vector<1x128xf32>
    %322 = arith.mulf %321, %320 : vector<1x128xf32>
    %cst_285 = arith.constant 3.000000e-01 : f32
    %323 = vector.broadcast %cst_285 : f32 to vector<1x128xf32>
    %324 = arith.mulf %323, %309 : vector<1x128xf32>
    %325 = arith.addf %322, %324 : vector<1x128xf32>
    %326 = arith.truncf %325 : vector<1x128xf32> to vector<1x128xbf16>
    %c0_286 = arith.constant 0 : index
    %c0_287 = arith.constant 0 : index
    %327 = vector.load %arg6[%c0_286, %c0_287] : memref<128x128xbf16, #tpu.memory_space<vmem>>, vector<128x128xbf16>
    %cst_288 = arith.constant dense<0.000000e+00> : vector<1x128xf32>
    %328 = tpu.matmul %326, %327, %cst_288 {dimension_numbers = #tpu.dot_dimension_numbers<[1], [0], [0], [1], [0, 0, 1, 1], [], []>} : vector<1x128xbf16>, vector<128x128xbf16>, vector<1x128xf32> -> vector<1x128xf32>
    %c36 = arith.constant 36 : index
    %c0_289 = arith.constant 0 : index
    %329 = vector.load %arg5[%c36, %c0_289] : memref<37x128xf32, #tpu.memory_space<vmem>>, vector<1x128xf32>
    %330 = arith.addf %328, %329 : vector<1x128xf32>
    %c0_290 = arith.constant 0 : index
    %c0_291 = arith.constant 0 : index
    %c0_292 = arith.constant 0 : index
    %331 = vector.load %arg7[%c0_290, %c0_291, %c0_292] : memref<1x1x128xf32, #tpu.memory_space<vmem>>, vector<1x1x128xf32>
    %332 = vector.shape_cast %331 : vector<1x1x128xf32> to vector<1x128xf32>
    %333 = vector.shape_cast %330 : vector<1x128xf32> to vector<1x1x128xf32>
    tpu.vector_store %arg7[%c0_290, %c0_291, %c0_292], %333 {strides = array<i32>} : memref<1x1x128xf32, #tpu.memory_space<vmem>>, vector<1x1x128xf32>,
    return
  }
  func.func @transform_0(%arg0: i32) -> (i32, i32, i32) {
    %c0_i32 = arith.constant 0 : i32
    %c0_i32_0 = arith.constant 0 : i32
    %c0_i32_1 = arith.constant 0 : i32
    return %arg0, %c0_i32, %c0_i32_0 : i32, i32, i32
  }
  func.func @transform_1(%arg0: i32) -> (i32, i32) {
    %c0_i32 = arith.constant 0 : i32
    %c0_i32_0 = arith.constant 0 : i32
    %c0_i32_1 = arith.constant 0 : i32
    return %c0_i32, %c0_i32_0 : i32, i32
  }
  func.func @transform_2(%arg0: i32) -> (i32, i32, i32) {
    %c0_i32 = arith.constant 0 : i32
    %c0_i32_0 = arith.constant 0 : i32
    %c0_i32_1 = arith.constant 0 : i32
    %c0_i32_2 = arith.constant 0 : i32
    return %c0_i32, %c0_i32_0, %c0_i32_1 : i32, i32, i32
  }
  func.func @transform_3(%arg0: i32) -> (i32, i32, i32) {
    %c0_i32 = arith.constant 0 : i32
    %c0_i32_0 = arith.constant 0 : i32
    %c0_i32_1 = arith.constant 0 : i32
    %c0_i32_2 = arith.constant 0 : i32
    return %c0_i32, %c0_i32_0, %c0_i32_1 : i32, i32, i32
  }
  func.func @transform_4(%arg0: i32) -> (i32, i32) {
    %c0_i32 = arith.constant 0 : i32
    %c0_i32_0 = arith.constant 0 : i32
    %c0_i32_1 = arith.constant 0 : i32
    return %c0_i32, %c0_i32_0 : i32, i32
  }
  func.func @transform_5(%arg0: i32) -> (i32, i32) {
    %c0_i32 = arith.constant 0 : i32
    %c0_i32_0 = arith.constant 0 : i32
    %c0_i32_1 = arith.constant 0 : i32
    return %c0_i32, %c0_i32_0 : i32, i32
  }
  func.func @transform_6(%arg0: i32) -> (i32, i32, i32) {
    %c0_i32 = arith.constant 0 : i32
    %c0_i32_0 = arith.constant 0 : i32
    %c0_i32_1 = arith.constant 0 : i32
    return %arg0, %c0_i32, %c0_i32_0 : i32, i32, i32
  }
}

</mosaic_0001>

<llo_original>
// kernel: encoder_text_forward.1
$region0: #{encoder_text_forward.1}
  #allocation0 [shape = 'u32[]', space=smem, size = 0x4, offset = 0x4, fixed_abs, tag = 'smem constant byte address 0x4 - core index']
  #allocation1 [shape = 'u32[144,128]{1,0:T(1,128)}', space=vmem, size = 0x12000, scoped, tag = 'internal scratch']
  #allocation2 [shape = 'f32[144,128]{1,0:T(8,128)}', space=vmem, size = 0x12000, scoped, tag = 'scratch operand']
  #allocation3 [shape = 'f32[144,128]{1,0:T(8,128)}', space=vmem, size = 0x12000, scoped, tag = 'scratch operand']
  %s0 = inlined_call_operand.vmem [shape: s32[2,128,1], index: 0, kind: input, shape index: {}]
  %s1 = inlined_call_operand.hbm [shape: f32[32,128], index: 1, kind: input, shape index: {}]
  %s2 = inlined_call_operand.hbm [shape: bf16[11,512,128], index: 2, kind: input, shape index: {}]
  %s3 = inlined_call_operand.hbm [shape: bf16[5,128,128], index: 3, kind: input, shape index: {}]
  %s4 = inlined_call_operand.hbm [shape: f32[37,128], index: 4, kind: input, shape index: {}]
  %s5 = inlined_call_operand.hbm [shape: bf16[128,128], index: 5, kind: input, shape index: {}]
  %s6 = inlined_call_operand.vmem [shape: f32[2,1,128], index: 6, kind: output, shape index: {}]
  %s7 = sld [smem:[#allocation0]]
  $region77: #{encoder_text_forward.1} parent=0
    _
  %s9 = ssub.s32 1, %s7
  %s10 = scalar_select 0, %s9, %s7
  $region1: #{encoder_text_forward.1} parent=0
    #allocation4 [shape = 'u8[16384]{0}', space=vmem, size = 0x4000, scoped, tag = 'input window, operand 1, single buffered']
    #allocation5 [shape = 's32[2]{0}', space=sflag, size = 0x8, scoped, tag = 'scoped memory for encoder_text_forward.1']
    #allocation6 [shape = 'u8[1441792]{0}', space=vmem, size = 0x160000, scoped, tag = 'input window, operand 2, single buffered']
    #allocation7 [shape = 's32[1]{0}', space=sflag, size = 0x4, scoped, tag = 'scoped memory for encoder_text_forward.1']
    #allocation8 [shape = 'u8[163840]{0}', space=vmem, size = 0x28000, scoped, tag = 'input window, operand 3, single buffered']
    #allocation9 [shape = 'u8[20480]{0}', space=vmem, size = 0x5000, scoped, tag = 'input window, operand 4, single buffered']
    #allocation10 [shape = 's32[1]{0}', space=sflag, size = 0x4, scoped, tag = 'scoped memory for encoder_text_forward.1']
    #allocation11 [shape = 'u8[32768]{0}', space=vmem, size = 0x8000, scoped, tag = 'input window, operand 5, single buffered']
    %11 = vsyncpa [#allocation5], 0
    %12 = vsyncpa [#allocation7], 0
    %13 = vsyncpa [#allocation10], 0
    loop: start=0, step=1, limit=4
    $region2: #{encoder_text_forward.1} parent=1 // loop_pre_header
      _
    $region3: #{encoder_text_forward.1} parent=1 // loop_header
      %s15 = sphi 0, %s19
      %p16 = scmp.ge.s32.totalorder %s15, 4
      %s25 = sphi 0, %s27
      %s28 = sphi 0, %s25
      %s29 = sphi 0, %s28
      %s45 = sphi 0, %s29
      %s49 = sphi 0, %s49
      %s51 = sphi 0, %s49
      %s52 = sphi 0, %s51
      %s66 = sphi 0, %s52
      %s70 = sphi 0, %s70
      %s72 = sphi 0, %s70
      %s73 = sphi 0, %s72
      %s87 = sphi 0, %s73
      %s91 = sphi 0, %s91
      %s93 = sphi 0, %s91
      %s94 = sphi 0, %s93
      %s108 = sphi 0, %s94
      %s112 = sphi 0, %s112
      %s114 = sphi 0, %s112
      %s115 = sphi 0, %s114
      %s129 = sphi 0, %s115
      %s133 = sphi 0, %s133
      %s135 = sphi 0, %s133
      %s136 = sphi 0, %s135
      %s150 = sphi 0, %s136
      %s156 = sphi 0, %s158
      %s159 = sphi 0, %s156
      %s160 = sphi 0, %s159
      %s176 = sphi 0, %s160
    $region4: #{encoder_text_forward.1} parent=1 // loop_header_branch
      %18 = sbr.rel (%p16) target = $region8
    $region5: #{encoder_text_forward.1} parent=1 // loop_body
      %s20 = ssub.s32 %s15, 1
      %s21 = ssub.s32 %s15, 2
      %s22 = sadd.s32 %s15, 1
      %s23 = ssub.s32 %s15, %s22
      %p24 = scmp.eq.s32.totalorder %s23, 0
      %s26 = sadd.s32 %s25, 1
      %s27 = scalar_select %p24, %s25, %s26
      %p30 = pneg %p24
      %p31 = scmp.eq.s32.totalorder %s15, 1
      %p32 = por %p30, %p31
      %p33 = scmp.ne.s32.totalorder %s25, %s28
      %p34 = scmp.eq.s32.totalorder %s15, 0
      %p35 = por %p33, %p34
      %p36 = scmp.ne.s32.totalorder %s25, %s28
      %p37 = scmp.eq.s32.totalorder %s20, 1
      %p38 = por %p36, %p37
      %p39 = scmp.ne.s32.totalorder %s28, %s29
      %p40 = scmp.eq.s32.totalorder %s20, 0
      %p41 = por %p39, %p40
      %p42 = scmp.ne.s32.totalorder %s28, %s29
      %p43 = scmp.eq.s32.totalorder %s21, 1
      %p44 = por %p42, %p43
      %p46 = scmp.ne.s32.totalorder %s29, %s45
      %p47 = scmp.eq.s32.totalorder %s21, 0
      %p48 = por %p46, %p47
      %s50 = sadd.s32 %s49, 1
      %p53 = scmp.eq.s32.totalorder %s15, 1
      %p54 = scmp.ne.s32.totalorder %s49, %s51
      %p55 = scmp.eq.s32.totalorder %s15, 0
      %p56 = por %p54, %p55
      %p57 = scmp.ne.s32.totalorder %s49, %s51
      %p58 = scmp.eq.s32.totalorder %s20, 1
      %p59 = por %p57, %p58
      %p60 = scmp.ne.s32.totalorder %s51, %s52
      %p61 = scmp.eq.s32.totalorder %s20, 0
      %p62 = por %p60, %p61
      %p63 = scmp.ne.s32.totalorder %s51, %s52
      %p64 = scmp.eq.s32.totalorder %s21, 1
      %p65 = por %p63, %p64
      %p67 = scmp.ne.s32.totalorder %s52, %s66
      %p68 = scmp.eq.s32.totalorder %s21, 0
      %p69 = por %p67, %p68
      %s71 = sadd.s32 %s70, 1
      %p74 = scmp.eq.s32.totalorder %s15, 1
      %p75 = scmp.ne.s32.totalorder %s70, %s72
      %p76 = scmp.eq.s32.totalorder %s15, 0
      %p77 = por %p75, %p76
      %p78 = scmp.ne.s32.totalorder %s70, %s72
      %p79 = scmp.eq.s32.totalorder %s20, 1
      %p80 = por %p78, %p79
      %p81 = scmp.ne.s32.totalorder %s72, %s73
      %p82 = scmp.eq.s32.totalorder %s20, 0
      %p83 = por %p81, %p82
      %p84 = scmp.ne.s32.totalorder %s72, %s73
      %p85 = scmp.eq.s32.totalorder %s21, 1
      %p86 = por %p84, %p85
      %p88 = scmp.ne.s32.totalorder %s73, %s87
      %p89 = scmp.eq.s32.totalorder %s21, 0
      %p90 = por %p88, %p89
      %s92 = sadd.s32 %s91, 1
      %p95 = scmp.eq.s32.totalorder %s15, 1
      %p96 = scmp.ne.s32.totalorder %s91, %s93
      %p97 = scmp.eq.s32.totalorder %s15, 0
      %p98 = por %p96, %p97
      %p99 = scmp.ne.s32.totalorder %s91, %s93
      %p100 = scmp.eq.s32.totalorder %s20, 1
      %p101 = por %p99, %p100
      %p102 = scmp.ne.s32.totalorder %s93, %s94
      %p103 = scmp.eq.s32.totalorder %s20, 0
      %p104 = por %p102, %p103
      %p105 = scmp.ne.s32.totalorder %s93, %s94
      %p106 = scmp.eq.s32.totalorder %s21, 1
      %p107 = por %p105, %p106
      %p109 = scmp.ne.s32.totalorder %s94, %s108
      %p110 = scmp.eq.s32.totalorder %s21, 0
      %p111 = por %p109, %p110
      %s113 = sadd.s32 %s112, 1
      %p116 = scmp.eq.s32.totalorder %s15, 1
      %p117 = scmp.ne.s32.totalorder %s112, %s114
      %p118 = scmp.eq.s32.totalorder %s15, 0
      %p119 = por %p117, %p118
      %p120 = scmp.ne.s32.totalorder %s112, %s114
      %p121 = scmp.eq.s32.totalorder %s20, 1
      %p122 = por %p120, %p121
      %p123 = scmp.ne.s32.totalorder %s114, %s115
      %p124 = scmp.eq.s32.totalorder %s20, 0
      %p125 = por %p123, %p124
      %p126 = scmp.ne.s32.totalorder %s114, %s115
      %p127 = scmp.eq.s32.totalorder %s21, 1
      %p128 = por %p126, %p127
      %p130 = scmp.ne.s32.totalorder %s115, %s129
      %p131 = scmp.eq.s32.totalorder %s21, 0
      %p132 = por %p130, %p131
      %s134 = sadd.s32 %s133, 1
      %p137 = scmp.eq.s32.totalorder %s15, 1
      %p138 = scmp.ne.s32.totalorder %s133, %s135
      %p139 = scmp.eq.s32.totalorder %s15, 0
      %p140 = por %p138, %p139
      %p141 = scmp.ne.s32.totalorder %s133, %s135
      %p142 = scmp.eq.s32.totalorder %s20, 1
      %p143 = por %p141, %p142
      %p144 = scmp.ne.s32.totalorder %s135, %s136
      %p145 = scmp.eq.s32.totalorder %s20, 0
      %p146 = por %p144, %p145
      %p147 = scmp.ne.s32.totalorder %s135, %s136
      %p148 = scmp.eq.s32.totalorder %s21, 1
      %p149 = por %p147, %p148
      %p151 = scmp.ne.s32.totalorder %s136, %s150
      %p152 = scmp.eq.s32.totalorder %s21, 0
      %p153 = por %p151, %p152
      %s154 = ssub.s32 %s15, %s22
      %p155 = scmp.eq.s32.totalorder %s154, 0
      %s157 = sadd.s32 %s156, 1
      %s158 = scalar_select %p155, %s156, %s157
      %p161 = pneg %p155
      %p162 = scmp.eq.s32.totalorder %s15, 1
      %p163 = por %p161, %p162
      %p164 = scmp.ne.s32.totalorder %s156, %s159
      %p165 = scmp.eq.s32.totalorder %s15, 0
      %p166 = por %p164, %p165
      %p167 = scmp.ne.s32.totalorder %s156, %s159
      %p168 = scmp.eq.s32.totalorder %s20, 1
      %p169 = por %p167, %p168
      %p170 = scmp.ne.s32.totalorder %s159, %s160
      %p171 = scmp.eq.s32.totalorder %s20, 0
      %p172 = por %p170, %p171
      %p173 = scmp.ne.s32.totalorder %s159, %s160
      %p174 = scmp.eq.s32.totalorder %s21, 1
      %p175 = por %p173, %p174
      %p177 = scmp.ne.s32.totalorder %s160, %s176
      %p178 = scmp.eq.s32.totalorder %s21, 0
      %p179 = por %p177, %p178
      %p180 = scmp.le.s32.totalorder 1, %s15
      %p181 = scmp.lt.s32.totalorder %s15, 3
      %p182 = pnand %p180, %p181
      %p183 = pneg %p182
      // Predicated region
      $region9: #{encoder_text_forward.1} parent=5 // pred_check
        _
      $region10: #{encoder_text_forward.1} parent=5 // pred_check_branch
        %185 = sbr.rel (%p182) target = $region12
      $region11: #{encoder_text_forward.1} parent=5 // pred_region
        %s186 = ssub.s32 %s15, 1
        // Predicated region
        $region13: #{encoder_text_forward.1} parent=11 // pred_check
          %p187 = pneg %p62
        $region14: #{encoder_text_forward.1} parent=11 // pred_check_branch
          %189 = sbr.rel (%p187) target = $region16
        $region15: #{encoder_text_forward.1} parent=11 // pred_region
          %s191 = ssub.s32 512, 512
          %192 = vsyncadd [#allocation5], %s191
          %s193 = sshll.u32 [#allocation4], 4
          %s194 = int_to_ptr.vmem [resolvable:$true] %s193
          %199 = dma.hbm_to_vmem [thread:$0]  %s1, 512, %s194, [#allocation5], 128, 128, 8
        $region16: #{encoder_text_forward.1} parent=11 // pred_fallthru
          _
        // Predicated region
        $region17: #{encoder_text_forward.1} parent=11 // pred_check
          %p200 = pneg %p83
        $region18: #{encoder_text_forward.1} parent=11 // pred_check_branch
          %202 = sbr.rel (%p200) target = $region20
        $region19: #{encoder_text_forward.1} parent=11 // pred_region
          %s204 = ssub.s32 45056, 45056
          %205 = vsyncadd [#allocation7], %s204
          %s206 = sshll.u32 [#allocation6], 4
          %s207 = int_to_ptr.vmem [resolvable:$true] %s206
          %212 = dma.hbm_to_vmem [thread:$0]  %s2, 45056, %s207, [#allocation7], 64, 64, 4
        $region20: #{encoder_text_forward.1} parent=11 // pred_fallthru
          _
        // Predicated region
        $region21: #{encoder_text_forward.1} parent=11 // pred_check
          %p213 = pneg %p104
        $region22: #{encoder_text_forward.1} parent=11 // pred_check_branch
          %215 = sbr.rel (%p213) target = $region24
        $region23: #{encoder_text_forward.1} parent=11 // pred_region
          %s217 = ssub.s32 5120, 5120
          %218 = vsyncadd [#allocation7], %s217
          %s219 = sshll.u32 [#allocation8], 4
          %s220 = int_to_ptr.vmem [resolvable:$true] %s219
          %225 = dma.hbm_to_vmem [thread:$0]  %s3, 5120, %s220, [#allocation7], 64, 64, 4
        $region24: #{encoder_text_forward.1} parent=11 // pred_fallthru
          _
        // Predicated region
        $region25: #{encoder_text_forward.1} parent=11 // pred_check
          %p226 = pneg %p125
        $region26: #{encoder_text_forward.1} parent=11 // pred_check_branch
          %228 = sbr.rel (%p226) target = $region28
        $region27: #{encoder_text_forward.1} parent=11 // pred_region
          %s230 = ssub.s32 640, 640
          %231 = vsyncadd [#allocation10], %s230
          %s232 = sshll.u32 [#allocation9], 4
          %s233 = int_to_ptr.vmem [resolvable:$true] %s232
          %238 = dma.hbm_to_vmem [thread:$0]  %s4, 640, %s233, [#allocation10], 128, 128, 8
        $region28: #{encoder_text_forward.1} parent=11 // pred_fallthru
          _
        // Predicated region
        $region29: #{encoder_text_forward.1} parent=11 // pred_check
          %p239 = pneg %p146
        $region30: #{encoder_text_forward.1} parent=11 // pred_check_branch
          %241 = sbr.rel (%p239) target = $region32
        $region31: #{encoder_text_forward.1} parent=11 // pred_region
          %s243 = ssub.s32 1024, 1024
          %244 = vsyncadd [#allocation10], %s243
          %s245 = sshll.u32 [#allocation11], 4
          %s246 = int_to_ptr.vmem [resolvable:$true] %s245
          %251 = dma.hbm_to_vmem [thread:$0]  %s5, 1024, %s246, [#allocation10], 64, 64, 4
        $region32: #{encoder_text_forward.1} parent=11 // pred_fallthru
          _
      $region12: #{encoder_text_forward.1} parent=5 // pred_fallthru
        _
      %p252 = scmp.lt.s32.totalorder %s15, 2
      // Predicated region
      $region33: #{encoder_text_forward.1} parent=5 // pred_check
        %p253 = pneg %p252
      $region34: #{encoder_text_forward.1} parent=5 // pred_check_branch
        %255 = sbr.rel (%p253) target = $region36
      $region35: #{encoder_text_forward.1} parent=5 // pred_region
        // Predicated region
        $region37: #{encoder_text_forward.1} parent=35 // pred_check
          %p256 = pneg %p35
        $region38: #{encoder_text_forward.1} parent=35 // pred_check_branch
          %258 = sbr.rel (%p256) target = $region40
        $region39: #{encoder_text_forward.1} parent=35 // pred_region
          %p259 = scmp.lt.s32.totalorder %s15, 1
          %s260 = scalar_select %p259, %s15, 1
          %s261 = smul.addr %s260, 16
          %s262 = smul.addr %s261, 8
          %s263 = scalar_lea.vmem %s0, %s262
        $region40: #{encoder_text_forward.1} parent=35 // pred_fallthru
          _
      $region36: #{encoder_text_forward.1} parent=5 // pred_fallthru
        _
      %p264 = scmp.le.s32.totalorder 1, %s15
      %p265 = scmp.lt.s32.totalorder %s15, 3
      %p266 = pnand %p264, %p265
      %p267 = pneg %p266
      // Predicated region
      $region41: #{encoder_text_forward.1} parent=5 // pred_check
        _
      $region42: #{encoder_text_forward.1} parent=5 // pred_check_branch
        %269 = sbr.rel (%p266) target = $region44
      $region43: #{encoder_text_forward.1} parent=5 // pred_region
        %s270 = ssub.s32 %s15, 1
        // Predicated region
        $region45: #{encoder_text_forward.1} parent=43 // pred_check
          %p271 = pneg %p62
        $region46: #{encoder_text_forward.1} parent=43 // pred_check_branch
          %273 = sbr.rel (%p271) target = $region48
        $region47: #{encoder_text_forward.1} parent=43 // pred_region
          %274 = dma.done [#allocation5], 512
        $region48: #{encoder_text_forward.1} parent=43 // pred_fallthru
          _
        // Predicated region
        $region49: #{encoder_text_forward.1} parent=43 // pred_check
          %p275 = pneg %p83
        $region50: #{encoder_text_forward.1} parent=43 // pred_check_branch
          %277 = sbr.rel (%p275) target = $region52
        $region51: #{encoder_text_forward.1} parent=43 // pred_region
          %278 = dma.done [#allocation7], 45056
        $region52: #{encoder_text_forward.1} parent=43 // pred_fallthru
          _
        // Predicated region
        $region53: #{encoder_text_forward.1} parent=43 // pred_check
          %p279 = pneg %p104
        $region54: #{encoder_text_forward.1} parent=43 // pred_check_branch
          %281 = sbr.rel (%p279) target = $region56
        $region55: #{encoder_text_forward.1} parent=43 // pred_region
          %282 = dma.done [#allocation7], 5120
        $region56: #{encoder_text_forward.1} parent=43 // pred_fallthru
          _
        // Predicated region
        $region57: #{encoder_text_forward.1} parent=43 // pred_check
          %p283 = pneg %p125
        $region58: #{encoder_text_forward.1} parent=43 // pred_check_branch
          %285 = sbr.rel (%p283) target = $region60
        $region59: #{encoder_text_forward.1} parent=43 // pred_region
          %286 = dma.done [#allocation10], 640
        $region60: #{encoder_text_forward.1} parent=43 // pred_fallthru
          _
        // Predicated region
        $region61: #{encoder_text_forward.1} parent=43 // pred_check
          %p287 = pneg %p146
        $region62: #{encoder_text_forward.1} parent=43 // pred_check_branch
          %289 = sbr.rel (%p287) target = $region64
        $region63: #{encoder_text_forward.1} parent=43 // pred_region
          %290 = dma.done [#allocation10], 1024
        $region64: #{encoder_text_forward.1} parent=43 // pred_fallthru
          _
        %p291 = scmp.lt.s32.totalorder %s20, 1
        %s292 = scalar_select %p291, %s20, 1
        %s293 = smul.addr %s292, 16
        %s294 = smul.addr %s293, 8
        %s295 = scalar_lea.vmem %s0, %s294
        %p296 = pneg %p41
        %p297 = pneg %p38
        %p298 = pneg %p62
        %p299 = pneg %p59
        %p300 = pneg %p83
        %p301 = pneg %p80
        %p302 = pneg %p104
        %p303 = pneg %p101
        %p304 = pneg %p125
        %p305 = pneg %p122
        %p306 = pneg %p146
        %p307 = pneg %p143
        %p308 = pneg %p172
        %p309 = pneg %p169
        %p310 = scmp.lt.s32.totalorder %s20, 1
        %s311 = scalar_select %p310, %s20, 1
        %s312 = scalar_lea.vmem %s6, %s311
        %p313 = scmp.lt.s32.totalorder %s20, 1
        %s314 = scalar_select %p313, %s20, 1
        %s315 = smul.addr %s314, 16
        %s316 = smul.addr %s315, 8
        %s317 = scalar_lea.vmem %s0, %s316
        %p318 = scmp.lt.s32.totalorder %s20, 1
        %s319 = scalar_select %p318, %s20, 1
        %s320 = scalar_lea.vmem %s6, %s319
        %v322 = vld [vmem:[%s317] sm:$0xff]
        %v323 = vld [vmem:[%s317 + $0x8] sm:$0xff]
        %v324 = vld [vmem:[%s317 + $0x10] sm:$0xff]
        %v325 = vld [vmem:[%s317 + $0x18] sm:$0xff]
        %v326 = vld [vmem:[%s317 + $0x20] sm:$0xff]
        %v327 = vld [vmem:[%s317 + $0x28] sm:$0xff]
        %v328 = vld [vmem:[%s317 + $0x30] sm:$0xff]
        %v329 = vld [vmem:[%s317 + $0x38] sm:$0xff]
        %v330 = vld [vmem:[%s317 + $0x40] sm:$0xff]
        %v331 = vld [vmem:[%s317 + $0x48] sm:$0xff]
        %v332 = vld [vmem:[%s317 + $0x50] sm:$0xff]
        %v333 = vld [vmem:[%s317 + $0x58] sm:$0xff]
        %v334 = vld [vmem:[%s317 + $0x60] sm:$0xff]
        %v335 = vld [vmem:[%s317 + $0x68] sm:$0xff]
        %v336 = vld [vmem:[%s317 + $0x70] sm:$0xff]
        %v337 = vld [vmem:[%s317 + $0x78] sm:$0xff]
        %v338 = vlaneseq
        %v339 = vand.u32 %v338, 127
        %340 = vset.pattern.permute.xlu0 0
        %341 = vperm.xlu0 %340, %v322
        %v342 = vpop.permute.xlu0 %341
        %343 = vset.pattern.permute.xlu0 0
        %344 = vperm.xlu0 %343, %v323
        %v345 = vpop.permute.xlu0 %344
        %346 = vset.pattern.permute.xlu0 0
        %347 = vperm.xlu0 %346, %v324
        %v348 = vpop.permute.xlu0 %347
        %349 = vset.pattern.permute.xlu0 0
        %350 = vperm.xlu0 %349, %v325
        %v351 = vpop.permute.xlu0 %350
        %352 = vset.pattern.permute.xlu0 0
        %353 = vperm.xlu0 %352, %v326
        %v354 = vpop.permute.xlu0 %353
        %355 = vset.pattern.permute.xlu0 0
        %356 = vperm.xlu0 %355, %v327
        %v357 = vpop.permute.xlu0 %356
        %358 = vset.pattern.permute.xlu0 0
        %359 = vperm.xlu0 %358, %v328
        %v360 = vpop.permute.xlu0 %359
        %361 = vset.pattern.permute.xlu0 0
        %362 = vperm.xlu0 %361, %v329
        %v363 = vpop.permute.xlu0 %362
        %364 = vset.pattern.permute.xlu0 0
        %365 = vperm.xlu0 %364, %v330
        %v366 = vpop.permute.xlu0 %365
        %367 = vset.pattern.permute.xlu0 0
        %368 = vperm.xlu0 %367, %v331
        %v369 = vpop.permute.xlu0 %368
        %370 = vset.pattern.permute.xlu0 0
        %371 = vperm.xlu0 %370, %v332
        %v372 = vpop.permute.xlu0 %371
        %373 = vset.pattern.permute.xlu0 0
        %374 = vperm.xlu0 %373, %v333
        %v375 = vpop.permute.xlu0 %374
        %376 = vset.pattern.permute.xlu0 0
        %377 = vperm.xlu0 %376, %v334
        %v378 = vpop.permute.xlu0 %377
        %379 = vset.pattern.permute.xlu0 0
        %380 = vperm.xlu0 %379, %v335
        %v381 = vpop.permute.xlu0 %380
        %382 = vset.pattern.permute.xlu0 0
        %383 = vperm.xlu0 %382, %v336
        %v384 = vpop.permute.xlu0 %383
        %385 = vset.pattern.permute.xlu0 0
        %386 = vperm.xlu0 %385, %v337
        %v387 = vpop.permute.xlu0 %386
        %vm388 = vcmp.eq.s32.totalorder %v342, %v339
        %vm389 = vcmp.eq.s32.totalorder %v345, %v339
        %vm390 = vcmp.eq.s32.totalorder %v348, %v339
        %vm391 = vcmp.eq.s32.totalorder %v351, %v339
        %vm392 = vcmp.eq.s32.totalorder %v354, %v339
        %vm393 = vcmp.eq.s32.totalorder %v357, %v339
        %vm394 = vcmp.eq.s32.totalorder %v360, %v339
        %vm395 = vcmp.eq.s32.totalorder %v363, %v339
        %vm396 = vcmp.eq.s32.totalorder %v366, %v339
        %vm397 = vcmp.eq.s32.totalorder %v369, %v339
        %vm398 = vcmp.eq.s32.totalorder %v372, %v339
        %vm399 = vcmp.eq.s32.totalorder %v375, %v339
        %vm400 = vcmp.eq.s32.totalorder %v378, %v339
        %vm401 = vcmp.eq.s32.totalorder %v381, %v339
        %vm402 = vcmp.eq.s32.totalorder %v384, %v339
        %vm403 = vcmp.eq.s32.totalorder %v387, %v339
        %v404 = vsel %vm388, 1, 0
        %v405 = vsel %vm389, 1, 0
        %v406 = vsel %vm390, 1, 0
        %v407 = vsel %vm391, 1, 0
        %v408 = vsel %vm392, 1, 0
        %v409 = vsel %vm393, 1, 0
        %v410 = vsel %vm394, 1, 0
        %v411 = vsel %vm395, 1, 0
        %v412 = vsel %vm396, 1, 0
        %v413 = vsel %vm397, 1, 0
        %v414 = vsel %vm398, 1, 0
        %v415 = vsel %vm399, 1, 0
        %v416 = vsel %vm400, 1, 0
        %v417 = vsel %vm401, 1, 0
        %v418 = vsel %vm402, 1, 0
        %v419 = vsel %vm403, 1, 0
        %v420 = vcvt.s32.f32 %v404
        %v421 = vcvt.s32.f32 %v405
        %v422 = vcvt.s32.f32 %v406
        %v423 = vcvt.s32.f32 %v407
        %v424 = vcvt.s32.f32 %v408
        %v425 = vcvt.s32.f32 %v409
        %v426 = vcvt.s32.f32 %v410
        %v427 = vcvt.s32.f32 %v411
        %v428 = vcvt.s32.f32 %v412
        %v429 = vcvt.s32.f32 %v413
        %v430 = vcvt.s32.f32 %v414
        %v431 = vcvt.s32.f32 %v415
        %v432 = vcvt.s32.f32 %v416
        %v433 = vcvt.s32.f32 %v417
        %v434 = vcvt.s32.f32 %v418
        %v435 = vcvt.s32.f32 %v419
        %v436 = vld [vmem:[#allocation4] sm:$0xff]
        %v437 = vld [vmem:[#allocation4 + $0x8] sm:$0xff]
        %v438 = vld [vmem:[#allocation4 + $0x10] sm:$0xff]
        %v439 = vld [vmem:[#allocation4 + $0x18] sm:$0xff]
        %vm440 = vcmask 261120
        %v442 = vsel %vm440, %v420, 0
        %v445 = vsel %vm440, %v421, 0
        %v448 = vsel %vm440, %v422, 0
        %v451 = vsel %vm440, %v423, 0
        %v454 = vsel %vm440, %v424, 0
        %v457 = vsel %vm440, %v425, 0
        %v460 = vsel %vm440, %v426, 0
        %v463 = vsel %vm440, %v427, 0
        %v466 = vsel %vm440, %v428, 0
        %v469 = vsel %vm440, %v429, 0
        %v472 = vsel %vm440, %v430, 0
        %v475 = vsel %vm440, %v431, 0
        %v478 = vsel %vm440, %v432, 0
        %v481 = vsel %vm440, %v433, 0
        %v484 = vsel %vm440, %v434, 0
        %v487 = vsel %vm440, %v435, 0
        %489 = vmatprep.subr.mxu0 0.0
        %490 = vmatpush1.msra.mxu0 %v436
        %491 = vmatprep.subr.mxu0 0.0
        %492 = vmatpush1.msra.mxu0 %v437
        %493 = vmatprep.subr.mxu0 0.0
        %494 = vmatpush1.msra.mxu0 %v438
        %495 = vmatprep.subr.mxu0 0.0
        %496 = vmatpush1.msra.mxu0 %v439
        %497 = vmatprep.subr.mxu0 0.0
        %498 = vmatpush1.msra.mxu0 0.0
        %499 = vmatprep.subr.mxu0 0.0
        %500 = vmatpush1.msra.mxu0 0.0
        %501 = vmatprep.subr.mxu0 0.0
        %502 = vmatpush1.msra.mxu0 0.0
        %503 = vmatprep.subr.mxu0 0.0
        %504 = vmatpush1.msra.mxu0 0.0
        %505 = vmatprep.subr.mxu0 0.0
        %506 = vmatpush1.msra.mxu0 0.0
        %507 = vmatprep.subr.mxu0 0.0
        %508 = vmatpush1.msra.mxu0 0.0
        %509 = vmatprep.subr.mxu0 0.0
        %510 = vmatpush1.msra.mxu0 0.0
        %511 = vmatprep.subr.mxu0 0.0
        %512 = vmatpush1.msra.mxu0 0.0
        %513 = vmatprep.subr.mxu0 0.0
        %514 = vmatpush1.msra.mxu0 0.0
        %515 = vmatprep.subr.mxu0 0.0
        %516 = vmatpush1.msra.mxu0 0.0
        %517 = vmatprep.subr.mxu0 0.0
        %518 = vmatpush1.msra.mxu0 0.0
        %519 = vmatprep.subr.mxu0 0.0
        %520 = vmatpush1.msra.mxu0 0.0
        %521 = vmatprep.subr.mxu0 0.0
        %522 = vmatpush1.msra.mxu0 0.0
        %523 = vmatprep.subr.mxu0 0.0
        %524 = vmatpush1.msra.mxu0 0.0
        %525 = vmatprep.subr.mxu0 0.0
        %526 = vmatpush1.msra.mxu0 0.0
        %527 = vmatprep.subr.mxu0 0.0
        %528 = vmatpush1.msra.mxu0 0.0
        %529 = vmatprep.subr.mxu0 0.0
        %530 = vmatpush1.msra.mxu0 0.0
        %531 = vmatprep.subr.mxu0 0.0
        %532 = vmatpush1.msra.mxu0 0.0
        %533 = vmatprep.subr.mxu0 0.0
        %534 = vmatpush1.msra.mxu0 0.0
        %535 = vmatprep.subr.mxu0 0.0
        %536 = vmatpush1.msra.mxu0 0.0
        %537 = vmatprep.subr.mxu0 0.0
        %538 = vmatpush1.msra.mxu0 0.0
        %539 = vmatprep.subr.mxu0 0.0
        %540 = vmatpush1.msra.mxu0 0.0
        %541 = vmatprep.subr.mxu0 0.0
        %542 = vmatpush1.msra.mxu0 0.0
        %543 = vmatprep.subr.mxu0 0.0
        %544 = vmatpush1.msra.mxu0 0.0
        %545 = vmatprep.subr.mxu0 0.0
        %546 = vmatpush1.msra.mxu0 0.0
        %547 = vmatprep.subr.mxu0 0.0
        %548 = vmatpush1.msra.mxu0 0.0
        %549 = vmatprep.subr.mxu0 0.0
        %550 = vmatpush1.msra.mxu0 0.0
        %551 = vmatprep.subr.mxu0 0.0
        %552 = vmatpush1.msra.mxu0 0.0
        %553 = vmatprep.mubr.f32.mxu0 0.0
        %554 = vmatmul.mubr.f32.gmra.mrb[0].mxu0 %v442
        %v555 = vpop.f32.mrb[0].mxu0
        %v556 = vadd.f32 0.0, %v555
        %v557 = vpop.f32.mrb[0].mxu0
        %558 = vmatprep.mubr.f32.mxu0 0.0
        %559 = vmatmul.mubr.f32.gmra.mrb[0].mxu0 %v445
        %v560 = vpop.f32.mrb[0].mxu0
        %v561 = vadd.f32 0.0, %v560
        %v562 = vpop.f32.mrb[0].mxu0
        %563 = vmatprep.mubr.f32.mxu0 0.0
        %564 = vmatmul.mubr.f32.gmra.mrb[0].mxu0 %v448
        %v565 = vpop.f32.mrb[0].mxu0
        %v566 = vadd.f32 0.0, %v565
        %v567 = vpop.f32.mrb[0].mxu0
        %568 = vmatprep.mubr.f32.mxu0 0.0
        %569 = vmatmul.mubr.f32.gmra.mrb[0].mxu0 %v451
        %v570 = vpop.f32.mrb[0].mxu0
        %v571 = vadd.f32 0.0, %v570
        %v572 = vpop.f32.mrb[0].mxu0
        %573 = vmatprep.mubr.f32.mxu0 0.0
        %574 = vmatmul.mubr.f32.gmra.mrb[0].mxu0 %v454
        %v575 = vpop.f32.mrb[0].mxu0
        %v576 = vadd.f32 0.0, %v575
        %v577 = vpop.f32.mrb[0].mxu0
        %578 = vmatprep.mubr.f32.mxu0 0.0
        %579 = vmatmul.mubr.f32.gmra.mrb[0].mxu0 %v457
        %v580 = vpop.f32.mrb[0].mxu0
        %v581 = vadd.f32 0.0, %v580
        %v582 = vpop.f32.mrb[0].mxu0
        %583 = vmatprep.mubr.f32.mxu0 0.0
        %584 = vmatmul.mubr.f32.gmra.mrb[0].mxu0 %v460
        %v585 = vpop.f32.mrb[0].mxu0
        %v586 = vadd.f32 0.0, %v585
        %v587 = vpop.f32.mrb[0].mxu0
        %588 = vmatprep.mubr.f32.mxu0 0.0
        %589 = vmatmul.mubr.f32.gmra.mrb[0].mxu0 %v463
        %v590 = vpop.f32.mrb[0].mxu0
        %v591 = vadd.f32 0.0, %v590
        %v592 = vpop.f32.mrb[0].mxu0
        %593 = vmatprep.mubr.f32.mxu0 0.0
        %594 = vmatmul.mubr.f32.gmra.mrb[0].mxu0 %v466
        %v595 = vpop.f32.mrb[0].mxu0
        %v596 = vadd.f32 0.0, %v595
        %v597 = vpop.f32.mrb[0].mxu0
        %598 = vmatprep.mubr.f32.mxu0 0.0
        %599 = vmatmul.mubr.f32.gmra.mrb[0].mxu0 %v469
        %v600 = vpop.f32.mrb[0].mxu0
        %v601 = vadd.f32 0.0, %v600
        %v602 = vpop.f32.mrb[0].mxu0
        %603 = vmatprep.mubr.f32.mxu0 0.0
        %604 = vmatmul.mubr.f32.gmra.mrb[0].mxu0 %v472
        %v605 = vpop.f32.mrb[0].mxu0
        %v606 = vadd.f32 0.0, %v605
        %v607 = vpop.f32.mrb[0].mxu0
        %608 = vmatprep.mubr.f32.mxu0 0.0
        %609 = vmatmul.mubr.f32.gmra.mrb[0].mxu0 %v475
        %v610 = vpop.f32.mrb[0].mxu0
        %v611 = vadd.f32 0.0, %v610
        %v612 = vpop.f32.mrb[0].mxu0
        %613 = vmatprep.mubr.f32.mxu0 0.0
        %614 = vmatmul.mubr.f32.gmra.mrb[0].mxu0 %v478
        %v615 = vpop.f32.mrb[0].mxu0
        %v616 = vadd.f32 0.0, %v615
        %v617 = vpop.f32.mrb[0].mxu0
        %618 = vmatprep.mubr.f32.mxu0 0.0
        %619 = vmatmul.mubr.f32.gmra.mrb[0].mxu0 %v481
        %v620 = vpop.f32.mrb[0].mxu0
        %v621 = vadd.f32 0.0, %v620
        %v622 = vpop.f32.mrb[0].mxu0
        %623 = vmatprep.mubr.f32.mxu0 0.0
        %624 = vmatmul.mubr.f32.gmra.mrb[0].mxu0 %v484
        %v625 = vpop.f32.mrb[0].mxu0
        %v626 = vadd.f32 0.0, %v625
        %v627 = vpop.f32.mrb[0].mxu0
        %628 = vmatprep.mubr.f32.mxu0 0.0
        %629 = vmatmul.mubr.f32.gmra.mrb[0].mxu0 %v487
        %v630 = vpop.f32.mrb[0].mxu0
        %v631 = vadd.f32 0.0, %v630
        %v632 = vpop.f32.mrb[0].mxu0
        %633 = vdwg.mxu0
        %634 = vst [vmem:[#allocation2 + $0x7] sm:$0x1] 0.0
        %635 = vst [vmem:[#allocation2 + $0x88] sm:$0x1] 0.0
        %636 = vst [vmem:[#allocation2 + $0x8] sm:$0xff] %v556
        %637 = vst [vmem:[#allocation2 + $0x10] sm:$0xff] %v561
        %638 = vst [vmem:[#allocation2 + $0x18] sm:$0xff] %v566
        %639 = vst [vmem:[#allocation2 + $0x20] sm:$0xff] %v571
        %640 = vst [vmem:[#allocation2 + $0x28] sm:$0xff] %v576
        %641 = vst [vmem:[#allocation2 + $0x30] sm:$0xff] %v581
        %642 = vst [vmem:[#allocation2 + $0x38] sm:$0xff] %v586
        %643 = vst [vmem:[#allocation2 + $0x40] sm:$0xff] %v591
        %644 = vst [vmem:[#allocation2 + $0x48] sm:$0xff] %v596
        %645 = vst [vmem:[#allocation2 + $0x50] sm:$0xff] %v601
        %646 = vst [vmem:[#allocation2 + $0x58] sm:$0xff] %v606
        %647 = vst [vmem:[#allocation2 + $0x60] sm:$0xff] %v611
        %648 = vst [vmem:[#allocation2 + $0x68] sm:$0xff] %v616
        %649 = vst [vmem:[#allocation2 + $0x70] sm:$0xff] %v621
        %650 = vst [vmem:[#allocation2 + $0x78] sm:$0xff] %v626
        %651 = vst [vmem:[#allocation2 + $0x80] sm:$0xff] %v631
        %v652 = vld [vmem:[#allocation6] sm:$0xf]
        %v653 = vld [vmem:[#allocation6 + $0x4] sm:$0xf]
        %v654 = vld [vmem:[#allocation6 + $0x8] sm:$0xf]
        %v655 = vld [vmem:[#allocation6 + $0xc] sm:$0xf]
        %v656 = vld [vmem:[#allocation6 + $0x10] sm:$0xf]
        %v657 = vld [vmem:[#allocation6 + $0x14] sm:$0xf]
        %v658 = vld [vmem:[#allocation6 + $0x18] sm:$0xf]
        %v659 = vld [vmem:[#allocation6 + $0x1c] sm:$0xf]
        %v660 = vld [vmem:[#allocation6 + $0x20] sm:$0xf]
        %v661 = vld [vmem:[#allocation6 + $0x24] sm:$0xf]
        %v662 = vld [vmem:[#allocation6 + $0x28] sm:$0xf]
        %v663 = vld [vmem:[#allocation6 + $0x2c] sm:$0xf]
        %v664 = vld [vmem:[#allocation6 + $0x30] sm:$0xf]
        %v665 = vld [vmem:[#allocation6 + $0x34] sm:$0xf]
        %v666 = vld [vmem:[#allocation6 + $0x38] sm:$0xf]
        %v667 = vld [vmem:[#allocation6 + $0x3c] sm:$0xf]
        %v668 = vld [vmem:[#allocation6 + $0x40] sm:$0xf]
        %v669 = vld [vmem:[#allocation6 + $0x44] sm:$0xf]
        %v670 = vld [vmem:[#allocation6 + $0x48] sm:$0xf]
        %v671 = vld [vmem:[#allocation6 + $0x4c] sm:$0xf]
        %v672 = vld [vmem:[#allocation6 + $0x50] sm:$0xf]
        %v673 = vld [vmem:[#allocation6 + $0x54] sm:$0xf]
        %v674 = vld [vmem:[#allocation6 + $0x58] sm:$0xf]
        %v675 = vld [vmem:[#allocation6 + $0x5c] sm:$0xf]
        %v676 = vld [vmem:[#allocation6 + $0x60] sm:$0xf]
        %v677 = vld [vmem:[#allocation6 + $0x64] sm:$0xf]
        %v678 = vld [vmem:[#allocation6 + $0x68] sm:$0xf]
        %v679 = vld [vmem:[#allocation6 + $0x6c] sm:$0xf]
        %v680 = vld [vmem:[#allocation6 + $0x70] sm:$0xf]
        %v681 = vld [vmem:[#allocation6 + $0x74] sm:$0xf]
        %v682 = vld [vmem:[#allocation6 + $0x78] sm:$0xf]
        %v683 = vld [vmem:[#allocation6 + $0x7c] sm:$0xf]
        %v684 = vld [vmem:[#allocation6 + $0x80] sm:$0xf]
        %v685 = vld [vmem:[#allocation6 + $0x84] sm:$0xf]
        %v686 = vld [vmem:[#allocation6 + $0x88] sm:$0xf]
        %v687 = vld [vmem:[#allocation6 + $0x8c] sm:$0xf]
        %v688 = vld [vmem:[#allocation6 + $0x90] sm:$0xf]
        %v689 = vld [vmem:[#allocation6 + $0x94] sm:$0xf]
        %v690 = vld [vmem:[#allocation6 + $0x98] sm:$0xf]
        %v691 = vld [vmem:[#allocation6 + $0x9c] sm:$0xf]
        %v692 = vld [vmem:[#allocation6 + $0xa0] sm:$0xf]
        %v693 = vld [vmem:[#allocation6 + $0xa4] sm:$0xf]
        %v694 = vld [vmem:[#allocation6 + $0xa8] sm:$0xf]
        %v695 = vld [vmem:[#allocation6 + $0xac] sm:$0xf]
        %v696 = vld [vmem:[#allocation6 + $0xb0] sm:$0xf]
        %v697 = vld [vmem:[#allocation6 + $0xb4] sm:$0xf]
        %v698 = vld [vmem:[#allocation6 + $0xb8] sm:$0xf]
        %v699 = vld [vmem:[#allocation6 + $0xbc] sm:$0xf]
        %v700 = vld [vmem:[#allocation6 + $0xc0] sm:$0xf]
        %v701 = vld [vmem:[#allocation6 + $0xc4] sm:$0xf]
        %v702 = vld [vmem:[#allocation6 + $0xc8] sm:$0xf]
        %v703 = vld [vmem:[#allocation6 + $0xcc] sm:$0xf]
        %v704 = vld [vmem:[#allocation6 + $0xd0] sm:$0xf]
        %v705 = vld [vmem:[#allocation6 + $0xd4] sm:$0xf]
        %v706 = vld [vmem:[#allocation6 + $0xd8] sm:$0xf]
        %v707 = vld [vmem:[#allocation6 + $0xdc] sm:$0xf]
        %v708 = vld [vmem:[#allocation6 + $0xe0] sm:$0xf]
        %v709 = vld [vmem:[#allocation6 + $0xe4] sm:$0xf]
        %v710 = vld [vmem:[#allocation6 + $0xe8] sm:$0xf]
        %v711 = vld [vmem:[#allocation6 + $0xec] sm:$0xf]
        %v712 = vld [vmem:[#allocation6 + $0xf0] sm:$0xf]
        %v713 = vld [vmem:[#allocation6 + $0xf4] sm:$0xf]
        %v714 = vld [vmem:[#allocation6 + $0xf8] sm:$0xf]
        %v715 = vld [vmem:[#allocation6 + $0xfc] sm:$0xf]
        %v716 = vld [vmem:[#allocation9] sm:$0x1]
        %s717 = scalar_lea.vmem [#allocation2], 7
        %v718 = vld [vmem:[%s717] ss:$2 sm:$0xff]
        %s719 = scalar_lea.vmem [#allocation2], 23
        %v720 = vld [vmem:[%s719] ss:$2 sm:$0xff]
        %s721 = scalar_lea.vmem [#allocation2], 39
        %v722 = vld [vmem:[%s721] ss:$2 sm:$0xff]
        %s723 = scalar_lea.vmem [#allocation2], 55
        %v724 = vld [vmem:[%s723] ss:$2 sm:$0xff]
        %s725 = scalar_lea.vmem [#allocation2], 71
        %v726 = vld [vmem:[%s725] ss:$2 sm:$0xff]
        %s727 = scalar_lea.vmem [#allocation2], 87
        %v728 = vld [vmem:[%s727] ss:$2 sm:$0xff]
        %s729 = scalar_lea.vmem [#allocation2], 103
        %v730 = vld [vmem:[%s729] ss:$2 sm:$0xff]
        %s731 = scalar_lea.vmem [#allocation2], 119
        %v732 = vld [vmem:[%s731] ss:$2 sm:$0xff]
        %s733 = scalar_lea.vmem [#allocation2], 8
        %v734 = vld [vmem:[%s733] ss:$2 sm:$0xff]
        %s735 = scalar_lea.vmem [#allocation2], 24
        %v736 = vld [vmem:[%s735] ss:$2 sm:$0xff]
        %s737 = scalar_lea.vmem [#allocation2], 40
        %v738 = vld [vmem:[%s737] ss:$2 sm:$0xff]
        %s739 = scalar_lea.vmem [#allocation2], 56
        %v740 = vld [vmem:[%s739] ss:$2 sm:$0xff]
        %s741 = scalar_lea.vmem [#allocation2], 72
        %v742 = vld [vmem:[%s741] ss:$2 sm:$0xff]
        %s743 = scalar_lea.vmem [#allocation2], 88
        %v744 = vld [vmem:[%s743] ss:$2 sm:$0xff]
        %s745 = scalar_lea.vmem [#allocation2], 104
        %v746 = vld [vmem:[%s745] ss:$2 sm:$0xff]
        %s747 = scalar_lea.vmem [#allocation2], 120
        %v748 = vld [vmem:[%s747] ss:$2 sm:$0xff]
        %s749 = scalar_lea.vmem [#allocation2], 9
        %v750 = vld [vmem:[%s749] ss:$2 sm:$0xff]
        %s751 = scalar_lea.vmem [#allocation2], 25
        %v752 = vld [vmem:[%s751] ss:$2 sm:$0xff]
        %s753 = scalar_lea.vmem [#allocation2], 41
        %v754 = vld [vmem:[%s753] ss:$2 sm:$0xff]
        %s755 = scalar_lea.vmem [#allocation2], 57
        %v756 = vld [vmem:[%s755] ss:$2 sm:$0xff]
        %s757 = scalar_lea.vmem [#allocation2], 73
        %v758 = vld [vmem:[%s757] ss:$2 sm:$0xff]
        %s759 = scalar_lea.vmem [#allocation2], 89
        %v760 = vld [vmem:[%s759] ss:$2 sm:$0xff]
        %s761 = scalar_lea.vmem [#allocation2], 105
        %v762 = vld [vmem:[%s761] ss:$2 sm:$0xff]
        %s763 = scalar_lea.vmem [#allocation2], 121
        %v764 = vld [vmem:[%s763] ss:$2 sm:$0xff]
        %s765 = scalar_lea.vmem [#allocation2], 10
        %v766 = vld [vmem:[%s765] ss:$2 sm:$0xff]
        %s767 = scalar_lea.vmem [#allocation2], 26
        %v768 = vld [vmem:[%s767] ss:$2 sm:$0xff]
        %s769 = scalar_lea.vmem [#allocation2], 42
        %v770 = vld [vmem:[%s769] ss:$2 sm:$0xff]
        %s771 = scalar_lea.vmem [#allocation2], 58
        %v772 = vld [vmem:[%s771] ss:$2 sm:$0xff]
        %s773 = scalar_lea.vmem [#allocation2], 74
        %v774 = vld [vmem:[%s773] ss:$2 sm:$0xff]
        %s775 = scalar_lea.vmem [#allocation2], 90
        %v776 = vld [vmem:[%s775] ss:$2 sm:$0xff]
        %s777 = scalar_lea.vmem [#allocation2], 106
        %v778 = vld [vmem:[%s777] ss:$2 sm:$0xff]
        %s779 = scalar_lea.vmem [#allocation2], 122
        %v780 = vld [vmem:[%s779] ss:$2 sm:$0xff]
        %v781 = vpack.c.bf16 %v720, %v718
        %v782 = vpack.c.bf16 %v736, %v734
        %v783 = vpack.c.bf16 %v752, %v750
        %v784 = vpack.c.bf16 %v768, %v766
        %v785 = vpack.c.bf16 %v724, %v722
        %v786 = vpack.c.bf16 %v740, %v738
        %v787 = vpack.c.bf16 %v756, %v754
        %v788 = vpack.c.bf16 %v772, %v770
        %v789 = vpack.c.bf16 %v728, %v726
        %v790 = vpack.c.bf16 %v744, %v742
        %v791 = vpack.c.bf16 %v760, %v758
        %v792 = vpack.c.bf16 %v776, %v774
        %v793 = vpack.c.bf16 %v732, %v730
        %v794 = vpack.c.bf16 %v748, %v746
        %v795 = vpack.c.bf16 %v764, %v762
        %v796 = vpack.c.bf16 %v780, %v778
        %v797 = vlaneseq
        %v798 = vshrl.u32 %v797, 7
        %v799 = vsub.s32 0, %v798
        %v800 = vrot.slane %v716, %v799
        %v865 = vunpack.c.l.b16 %v652
        %v866 = vunpack.c.l.b16 %v653
        %v867 = vunpack.c.l.b16 %v654
        %v868 = vunpack.c.l.b16 %v655
        %v869 = vunpack.c.l.b16 %v656
        %v870 = vunpack.c.l.b16 %v657
        %v871 = vunpack.c.l.b16 %v658
        %v872 = vunpack.c.l.b16 %v659
        %v873 = vunpack.c.l.b16 %v660
        %v874 = vunpack.c.l.b16 %v661
        %v875 = vunpack.c.l.b16 %v662
        %v876 = vunpack.c.l.b16 %v663
        %v877 = vunpack.c.l.b16 %v664
        %v878 = vunpack.c.l.b16 %v665
        %v879 = vunpack.c.l.b16 %v666
        %v880 = vunpack.c.l.b16 %v667
        %v881 = vunpack.c.l.b16 %v668
        %v882 = vunpack.c.l.b16 %v669
        %v883 = vunpack.c.l.b16 %v670
        %v884 = vunpack.c.l.b16 %v671
        %v885 = vunpack.c.l.b16 %v672
        %v886 = vunpack.c.l.b16 %v673
        %v887 = vunpack.c.l.b16 %v674
        %v888 = vunpack.c.l.b16 %v675
        %v889 = vunpack.c.l.b16 %v676
        %v890 = vunpack.c.l.b16 %v677
        %v891 = vunpack.c.l.b16 %v678
        %v892 = vunpack.c.l.b16 %v679
        %v893 = vunpack.c.l.b16 %v680
        %v894 = vunpack.c.l.b16 %v681
        %v895 = vunpack.c.l.b16 %v682
        %v896 = vunpack.c.l.b16 %v683
        %v897 = vunpack.c.l.b16 %v684
        %v898 = vunpack.c.l.b16 %v685
        %v899 = vunpack.c.l.b16 %v686
        %v900 = vunpack.c.l.b16 %v687
        %v901 = vunpack.c.l.b16 %v688
        %v902 = vunpack.c.l.b16 %v689
        %v903 = vunpack.c.l.b16 %v690
        %v904 = vunpack.c.l.b16 %v691
        %v905 = vunpack.c.l.b16 %v692
        %v906 = vunpack.c.l.b16 %v693
        %v907 = vunpack.c.l.b16 %v694
        %v908 = vunpack.c.l.b16 %v695
        %v909 = vunpack.c.l.b16 %v696
        %v910 = vunpack.c.l.b16 %v697
        %v911 = vunpack.c.l.b16 %v698
        %v912 = vunpack.c.l.b16 %v699
        %v913 = vunpack.c.l.b16 %v700
        %v914 = vunpack.c.l.b16 %v701
        %v915 = vunpack.c.l.b16 %v702
        %v916 = vunpack.c.l.b16 %v703
        %v917 = vunpack.c.l.b16 %v704
        %v918 = vunpack.c.l.b16 %v705
        %v919 = vunpack.c.l.b16 %v706
        %v920 = vunpack.c.l.b16 %v707
        %v921 = vunpack.c.l.b16 %v708
        %v922 = vunpack.c.l.b16 %v709
        %v923 = vunpack.c.l.b16 %v710
        %v924 = vunpack.c.l.b16 %v711
        %v925 = vunpack.c.l.b16 %v712
        %v926 = vunpack.c.l.b16 %v713
        %v927 = vunpack.c.l.b16 %v714
        %v928 = vunpack.c.l.b16 %v715
        %v929 = vpack.c.b16 %v866, %v865
        %v930 = vpack.c.b16 %v868, %v867
        %v931 = vpack.c.b16 %v870, %v869
        %v932 = vpack.c.b16 %v872, %v871
        %v933 = vpack.c.b16 %v874, %v873
        %v934 = vpack.c.b16 %v876, %v875
        %v935 = vpack.c.b16 %v878, %v877
        %v936 = vpack.c.b16 %v880, %v879
        %v937 = vpack.c.b16 %v882, %v881
        %v938 = vpack.c.b16 %v884, %v883
        %v939 = vpack.c.b16 %v886, %v885
        %v940 = vpack.c.b16 %v888, %v887
        %v941 = vpack.c.b16 %v890, %v889
        %v942 = vpack.c.b16 %v892, %v891
        %v943 = vpack.c.b16 %v894, %v893
        %v944 = vpack.c.b16 %v896, %v895
        %v945 = vpack.c.b16 %v898, %v897
        %v946 = vpack.c.b16 %v900, %v899
        %v947 = vpack.c.b16 %v902, %v901
        %v948 = vpack.c.b16 %v904, %v903
        %v949 = vpack.c.b16 %v906, %v905
        %v950 = vpack.c.b16 %v908, %v907
        %v951 = vpack.c.b16 %v910, %v909
        %v952 = vpack.c.b16 %v912, %v911
        %v953 = vpack.c.b16 %v914, %v913
        %v954 = vpack.c.b16 %v916, %v915
        %v955 = vpack.c.b16 %v918, %v917
        %v956 = vpack.c.b16 %v920, %v919
        %v957 = vpack.c.b16 %v922, %v921
        %v958 = vpack.c.b16 %v924, %v923
        %v959 = vpack.c.b16 %v926, %v925
        %v960 = vpack.c.b16 %v928, %v927
        %993 = vmatprep.subr.bf16.mxu0 0
        %994 = vmatpush1.bf16.msra.mxu0 %v929
        %995 = vmatprep.subr.bf16.mxu0 0
        %996 = vmatpush1.bf16.msra.mxu0 %v930
        %997 = vmatprep.subr.bf16.mxu0 0
        %998 = vmatpush1.bf16.msra.mxu0 %v931
        %999 = vmatprep.subr.bf16.mxu0 0
        %1000 = vmatpush1.bf16.msra.mxu0 %v932
        %1001 = vmatprep.subr.bf16.mxu0 0
        %1002 = vmatpush1.bf16.msra.mxu0 %v933
        %1003 = vmatprep.subr.bf16.mxu0 0
        %1004 = vmatpush1.bf16.msra.mxu0 %v934
        %1005 = vmatprep.subr.bf16.mxu0 0
        %1006 = vmatpush1.bf16.msra.mxu0 %v935
        %1007 = vmatprep.subr.bf16.mxu0 0
        %1008 = vmatpush1.bf16.msra.mxu0 %v936
        %1009 = vmatprep.subr.bf16.mxu0 0
        %1010 = vmatpush1.bf16.msra.mxu0 %v937
        %1011 = vmatprep.subr.bf16.mxu0 0
        %1012 = vmatpush1.bf16.msra.mxu0 %v938
        %1013 = vmatprep.subr.bf16.mxu0 0
        %1014 = vmatpush1.bf16.msra.mxu0 %v939
        %1015 = vmatprep.subr.bf16.mxu0 0
        %1016 = vmatpush1.bf16.msra.mxu0 %v940
        %1017 = vmatprep.subr.bf16.mxu0 0
        %1018 = vmatpush1.bf16.msra.mxu0 %v941
        %1019 = vmatprep.subr.bf16.mxu0 0
        %1020 = vmatpush1.bf16.msra.mxu0 %v942
        %1021 = vmatprep.subr.bf16.mxu0 0
        %1022 = vmatpush1.bf16.msra.mxu0 %v943
        %1023 = vmatprep.subr.bf16.mxu0 0
        %1024 = vmatpush1.bf16.msra.mxu0 %v944
        %1025 = vmatprep.mubr.bf16.mxu0 %v782
        %1026 = vmatmul.mubr.bf16.gmra.mrb[0].mxu0 %v781
        %v1027 = vpop.f32.mrb[0].mxu0
        %v1028 = vadd.f32 %v800, %v1027
        %v1029 = vpop.f32.mrb[0].mxu0
        %v1030 = vpop.f32.mrb[0].mxu0
        %v1031 = vadd.f32 %v800, %v1030
        %v1032 = vpop.f32.mrb[0].mxu0
        %1033 = vmatprep.mubr.bf16.mxu0 %v786
        %1034 = vmatmul.mubr.bf16.gmra.mrb[0].mxu0 %v785
        %v1035 = vpop.f32.mrb[0].mxu0
        %v1036 = vadd.f32 %v800, %v1035
        %v1037 = vpop.f32.mrb[0].mxu0
        %v1038 = vpop.f32.mrb[0].mxu0
        %v1039 = vadd.f32 %v800, %v1038
        %v1040 = vpop.f32.mrb[0].mxu0
        %1041 = vmatprep.mubr.bf16.mxu0 %v790
        %1042 = vmatmul.mubr.bf16.gmra.mrb[0].mxu0 %v789
        %v1043 = vpop.f32.mrb[0].mxu0
        %v1044 = vadd.f32 %v800, %v1043
        %v1045 = vpop.f32.mrb[0].mxu0
        %v1046 = vpop.f32.mrb[0].mxu0
        %v1047 = vadd.f32 %v800, %v1046
        %v1048 = vpop.f32.mrb[0].mxu0
        %1049 = vmatprep.mubr.bf16.mxu0 %v794
        %1050 = vmatmul.mubr.bf16.gmra.mrb[0].mxu0 %v793
        %v1051 = vpop.f32.mrb[0].mxu0
        %v1052 = vadd.f32 %v800, %v1051
        %v1053 = vpop.f32.mrb[0].mxu0
        %v1054 = vpop.f32.mrb[0].mxu0
        %v1055 = vadd.f32 %v800, %v1054
        %v1056 = vpop.f32.mrb[0].mxu0
        %1057 = vdwg.mxu0
        %1058 = vmatprep.subr.bf16.mxu0 0
        %1059 = vmatpush1.bf16.msra.mxu0 %v945
        %1060 = vmatprep.subr.bf16.mxu0 0
        %1061 = vmatpush1.bf16.msra.mxu0 %v946
        %1062 = vmatprep.subr.bf16.mxu0 0
        %1063 = vmatpush1.bf16.msra.mxu0 %v947
        %1064 = vmatprep.subr.bf16.mxu0 0
        %1065 = vmatpush1.bf16.msra.mxu0 %v948
        %1066 = vmatprep.subr.bf16.mxu0 0
        %1067 = vmatpush1.bf16.msra.mxu0 %v949
        %1068 = vmatprep.subr.bf16.mxu0 0
        %1069 = vmatpush1.bf16.msra.mxu0 %v950
        %1070 = vmatprep.subr.bf16.mxu0 0
        %1071 = vmatpush1.bf16.msra.mxu0 %v951
        %1072 = vmatprep.subr.bf16.mxu0 0
        %1073 = vmatpush1.bf16.msra.mxu0 %v952
        %1074 = vmatprep.subr.bf16.mxu0 0
        %1075 = vmatpush1.bf16.msra.mxu0 %v953
        %1076 = vmatprep.subr.bf16.mxu0 0
        %1077 = vmatpush1.bf16.msra.mxu0 %v954
        %1078 = vmatprep.subr.bf16.mxu0 0
        %1079 = vmatpush1.bf16.msra.mxu0 %v955
        %1080 = vmatprep.subr.bf16.mxu0 0
        %1081 = vmatpush1.bf16.msra.mxu0 %v956
        %1082 = vmatprep.subr.bf16.mxu0 0
        %1083 = vmatpush1.bf16.msra.mxu0 %v957
        %1084 = vmatprep.subr.bf16.mxu0 0
        %1085 = vmatpush1.bf16.msra.mxu0 %v958
        %1086 = vmatprep.subr.bf16.mxu0 0
        %1087 = vmatpush1.bf16.msra.mxu0 %v959
        %1088 = vmatprep.subr.bf16.mxu0 0
        %1089 = vmatpush1.bf16.msra.mxu0 %v960
        %1090 = vmatprep.mubr.bf16.mxu0 %v784
        %1091 = vmatmul.mubr.bf16.gmra.mrb[0].mxu0 %v783
        %v1092 = vpop.f32.mrb[0].mxu0
        %v1093 = vadd.f32 %v1028, %v1092
        %v1094 = vpop.f32.mrb[0].mxu0
        %v1095 = vpop.f32.mrb[0].mxu0
        %v1096 = vadd.f32 %v1031, %v1095
        %v1097 = vpop.f32.mrb[0].mxu0
        %1098 = vmatprep.mubr.bf16.mxu0 %v788
        %1099 = vmatmul.mubr.bf16.gmra.mrb[0].mxu0 %v787
        %v1100 = vpop.f32.mrb[0].mxu0
        %v1101 = vadd.f32 %v1036, %v1100
        %v1102 = vpop.f32.mrb[0].mxu0
        %v1103 = vpop.f32.mrb[0].mxu0
        %v1104 = vadd.f32 %v1039, %v1103
        %v1105 = vpop.f32.mrb[0].mxu0
        %1106 = vmatprep.mubr.bf16.mxu0 %v792
        %1107 = vmatmul.mubr.bf16.gmra.mrb[0].mxu0 %v791
        %v1108 = vpop.f32.mrb[0].mxu0
        %v1109 = vadd.f32 %v1044, %v1108
        %v1110 = vpop.f32.mrb[0].mxu0
        %v1111 = vpop.f32.mrb[0].mxu0
        %v1112 = vadd.f32 %v1047, %v1111
        %v1113 = vpop.f32.mrb[0].mxu0
        %1114 = vmatprep.mubr.bf16.mxu0 %v796
        %1115 = vmatmul.mubr.bf16.gmra.mrb[0].mxu0 %v795
        %v1116 = vpop.f32.mrb[0].mxu0
        %v1117 = vadd.f32 %v1052, %v1116
        %v1118 = vpop.f32.mrb[0].mxu0
        %v1119 = vpop.f32.mrb[0].mxu0
        %v1120 = vadd.f32 %v1055, %v1119
        %v1121 = vpop.f32.mrb[0].mxu0
        %1122 = vdwg.mxu0
        %v1123 = vld [vmem:[#allocation9 + $0x1] sm:$0x1]
        %v1124 = vlaneseq
        %v1125 = vshrl.u32 %v1124, 7
        %v1126 = vsub.s32 0, %v1125
        %v1127 = vrot.slane %v1123, %v1126
        %v1128 = vmul.f32 %v1093, %v1127
        %v1129 = vmul.f32 %v1096, %v1127
        %v1130 = vmul.f32 %v1101, %v1127
        %v1131 = vmul.f32 %v1104, %v1127
        %v1132 = vmul.f32 %v1109, %v1127
        %v1133 = vmul.f32 %v1112, %v1127
        %v1134 = vmul.f32 %v1117, %v1127
        %v1135 = vmul.f32 %v1120, %v1127
        %v1136 = vld [vmem:[#allocation9 + $0x2] sm:$0x1]
        %v1137 = vlaneseq
        %v1138 = vshrl.u32 %v1137, 7
        %v1139 = vsub.s32 0, %v1138
        %v1140 = vrot.slane %v1136, %v1139
        %v1141 = vadd.f32 %v1128, %v1140
        %v1142 = vadd.f32 %v1129, %v1140
        %v1143 = vadd.f32 %v1130, %v1140
        %v1144 = vadd.f32 %v1131, %v1140
        %v1145 = vadd.f32 %v1132, %v1140
        %v1146 = vadd.f32 %v1133, %v1140
        %v1147 = vadd.f32 %v1134, %v1140
        %v1148 = vadd.f32 %v1135, %v1140
        %v1149 = vmax.f32 %v1141, 0.0
        %v1150 = vmax.f32 %v1142, 0.0
        %v1151 = vmax.f32 %v1143, 0.0
        %v1152 = vmax.f32 %v1144, 0.0
        %v1153 = vmax.f32 %v1145, 0.0
        %v1154 = vmax.f32 %v1146, 0.0
        %v1155 = vmax.f32 %v1147, 0.0
        %v1156 = vmax.f32 %v1148, 0.0
        %v1157 = vpack.c.bf16 %v1150, %v1149
        %v1158 = vpack.c.bf16 %v1152, %v1151
        %v1159 = vpack.c.bf16 %v1154, %v1153
        %v1160 = vpack.c.bf16 %v1156, %v1155
        %v1161 = vld [vmem:[#allocation8] sm:$0xf]
        %v1162 = vld [vmem:[#allocation8 + $0x4] sm:$0xf]
        %v1163 = vld [vmem:[#allocation8 + $0x8] sm:$0xf]
        %v1164 = vld [vmem:[#allocation8 + $0xc] sm:$0xf]
        %v1165 = vld [vmem:[#allocation8 + $0x10] sm:$0xf]
        %v1166 = vld [vmem:[#allocation8 + $0x14] sm:$0xf]
        %v1167 = vld [vmem:[#allocation8 + $0x18] sm:$0xf]
        %v1168 = vld [vmem:[#allocation8 + $0x1c] sm:$0xf]
        %v1169 = vld [vmem:[#allocation8 + $0x20] sm:$0xf]
        %v1170 = vld [vmem:[#allocation8 + $0x24] sm:$0xf]
        %v1171 = vld [vmem:[#allocation8 + $0x28] sm:$0xf]
        %v1172 = vld [vmem:[#allocation8 + $0x2c] sm:$0xf]
        %v1173 = vld [vmem:[#allocation8 + $0x30] sm:$0xf]
        %v1174 = vld [vmem:[#allocation8 + $0x34] sm:$0xf]
        %v1175 = vld [vmem:[#allocation8 + $0x38] sm:$0xf]
        %v1176 = vld [vmem:[#allocation8 + $0x3c] sm:$0xf]
        %v1177 = vld [vmem:[#allocation9 + $0x3] sm:$0x1]
        %v1178 = vlaneseq
        %v1179 = vshrl.u32 %v1178, 7
        %v1180 = vsub.s32 0, %v1179
        %v1181 = vrot.slane %v1177, %v1180
        %v1198 = vunpack.c.l.b16 %v1161
        %v1199 = vunpack.c.l.b16 %v1162
        %v1200 = vunpack.c.l.b16 %v1163
        %v1201 = vunpack.c.l.b16 %v1164
        %v1202 = vunpack.c.l.b16 %v1165
        %v1203 = vunpack.c.l.b16 %v1166
        %v1204 = vunpack.c.l.b16 %v1167
        %v1205 = vunpack.c.l.b16 %v1168
        %v1206 = vunpack.c.l.b16 %v1169
        %v1207 = vunpack.c.l.b16 %v1170
        %v1208 = vunpack.c.l.b16 %v1171
        %v1209 = vunpack.c.l.b16 %v1172
        %v1210 = vunpack.c.l.b16 %v1173
        %v1211 = vunpack.c.l.b16 %v1174
        %v1212 = vunpack.c.l.b16 %v1175
        %v1213 = vunpack.c.l.b16 %v1176
        %v1214 = vpack.c.b16 %v1199, %v1198
        %v1215 = vpack.c.b16 %v1201, %v1200
        %v1216 = vpack.c.b16 %v1203, %v1202
        %v1217 = vpack.c.b16 %v1205, %v1204
        %v1218 = vpack.c.b16 %v1207, %v1206
        %v1219 = vpack.c.b16 %v1209, %v1208
        %v1220 = vpack.c.b16 %v1211, %v1210
        %v1221 = vpack.c.b16 %v1213, %v1212
        %1230 = vmatprep.subr.bf16.mxu0 0
        %1231 = vmatpush1.bf16.msra.mxu0 %v1214
        %1232 = vmatprep.subr.bf16.mxu0 0
        %1233 = vmatpush1.bf16.msra.mxu0 %v1215
        %1234 = vmatprep.subr.bf16.mxu0 0
        %1235 = vmatpush1.bf16.msra.mxu0 %v1216
        %1236 = vmatprep.subr.bf16.mxu0 0
        %1237 = vmatpush1.bf16.msra.mxu0 %v1217
        %1238 = vmatprep.subr.bf16.mxu0 0
        %1239 = vmatpush1.bf16.msra.mxu0 %v1218
        %1240 = vmatprep.subr.bf16.mxu0 0
        %1241 = vmatpush1.bf16.msra.mxu0 %v1219
        %1242 = vmatprep.subr.bf16.mxu0 0
        %1243 = vmatpush1.bf16.msra.mxu0 %v1220
        %1244 = vmatprep.subr.bf16.mxu0 0
        %1245 = vmatpush1.bf16.msra.mxu0 %v1221
        %1246 = vmatprep.subr.bf16.mxu0 0
        %1247 = vmatpush1.bf16.msra.mxu0 0
        %1248 = vmatprep.subr.bf16.mxu0 0
        %1249 = vmatpush1.bf16.msra.mxu0 0
        %1250 = vmatprep.subr.bf16.mxu0 0
        %1251 = vmatpush1.bf16.msra.mxu0 0
        %1252 = vmatprep.subr.bf16.mxu0 0
        %1253 = vmatpush1.bf16.msra.mxu0 0
        %1254 = vmatprep.subr.bf16.mxu0 0
        %1255 = vmatpush1.bf16.msra.mxu0 0
        %1256 = vmatprep.subr.bf16.mxu0 0
        %1257 = vmatpush1.bf16.msra.mxu0 0
        %1258 = vmatprep.subr.bf16.mxu0 0
        %1259 = vmatpush1.bf16.msra.mxu0 0
        %1260 = vmatprep.subr.bf16.mxu0 0
        %1261 = vmatpush1.bf16.msra.mxu0 0
        %1262 = vmatprep.mubr.bf16.mxu0 0
        %1263 = vmatmul.mubr.bf16.gmra.mrb[0].mxu0 %v1157
        %v1264 = vpop.f32.mrb[0].mxu0
        %v1265 = vadd.f32 %v1181, %v1264
        %v1266 = vpop.f32.mrb[0].mxu0
        %v1267 = vpop.f32.mrb[0].mxu0
        %v1268 = vadd.f32 %v1181, %v1267
        %v1269 = vpop.f32.mrb[0].mxu0
        %1270 = vmatprep.mubr.bf16.mxu0 0
        %1271 = vmatmul.mubr.bf16.gmra.mrb[0].mxu0 %v1158
        %v1272 = vpop.f32.mrb[0].mxu0
        %v1273 = vadd.f32 %v1181, %v1272
        %v1274 = vpop.f32.mrb[0].mxu0
        %v1275 = vpop.f32.mrb[0].mxu0
        %v1276 = vadd.f32 %v1181, %v1275
        %v1277 = vpop.f32.mrb[0].mxu0
        %1278 = vmatprep.mubr.bf16.mxu0 0
        %1279 = vmatmul.mubr.bf16.gmra.mrb[0].mxu0 %v1159
        %v1280 = vpop.f32.mrb[0].mxu0
        %v1281 = vadd.f32 %v1181, %v1280
        %v1282 = vpop.f32.mrb[0].mxu0
        %v1283 = vpop.f32.mrb[0].mxu0
        %v1284 = vadd.f32 %v1181, %v1283
        %v1285 = vpop.f32.mrb[0].mxu0
        %1286 = vmatprep.mubr.bf16.mxu0 0
        %1287 = vmatmul.mubr.bf16.gmra.mrb[0].mxu0 %v1160
        %v1288 = vpop.f32.mrb[0].mxu0
        %v1289 = vadd.f32 %v1181, %v1288
        %v1290 = vpop.f32.mrb[0].mxu0
        %v1291 = vpop.f32.mrb[0].mxu0
        %v1292 = vadd.f32 %v1181, %v1291
        %v1293 = vpop.f32.mrb[0].mxu0
        %1294 = vdwg.mxu0
        %v1295 = vld [vmem:[#allocation9 + $0x4] sm:$0x1]
        %v1296 = vlaneseq
        %v1297 = vshrl.u32 %v1296, 7
        %v1298 = vsub.s32 0, %v1297
        %v1299 = vrot.slane %v1295, %v1298
        %v1300 = vmul.f32 %v1265, %v1299
        %v1301 = vmul.f32 %v1268, %v1299
        %v1302 = vmul.f32 %v1273, %v1299
        %v1303 = vmul.f32 %v1276, %v1299
        %v1304 = vmul.f32 %v1281, %v1299
        %v1305 = vmul.f32 %v1284, %v1299
        %v1306 = vmul.f32 %v1289, %v1299
        %v1307 = vmul.f32 %v1292, %v1299
        %v1308 = vld [vmem:[#allocation9 + $0x5] sm:$0x1]
        %v1309 = vlaneseq
        %v1310 = vshrl.u32 %v1309, 7
        %v1311 = vsub.s32 0, %v1310
        %v1312 = vrot.slane %v1308, %v1311
        %v1313 = vadd.f32 %v1300, %v1312
        %v1314 = vadd.f32 %v1301, %v1312
        %v1315 = vadd.f32 %v1302, %v1312
        %v1316 = vadd.f32 %v1303, %v1312
        %v1317 = vadd.f32 %v1304, %v1312
        %v1318 = vadd.f32 %v1305, %v1312
        %v1319 = vadd.f32 %v1306, %v1312
        %v1320 = vadd.f32 %v1307, %v1312
        %v1321 = vmax.f32 %v1313, 0.0
        %v1322 = vmax.f32 %v1314, 0.0
        %v1323 = vmax.f32 %v1315, 0.0
        %v1324 = vmax.f32 %v1316, 0.0
        %v1325 = vmax.f32 %v1317, 0.0
        %v1326 = vmax.f32 %v1318, 0.0
        %v1327 = vmax.f32 %v1319, 0.0
        %v1328 = vmax.f32 %v1320, 0.0
        %1329 = vst [vmem:[#allocation2 + $0x7] sm:$0x1] 0.0
        %1330 = vst [vmem:[#allocation2 + $0x48] sm:$0x1] 0.0
        %1331 = vst [vmem:[#allocation2 + $0x8] sm:$0xff] %v1321
        %1332 = vst [vmem:[#allocation2 + $0x10] sm:$0xff] %v1322
        %1333 = vst [vmem:[#allocation2 + $0x18] sm:$0xff] %v1323
        %1334 = vst [vmem:[#allocation2 + $0x20] sm:$0xff] %v1324
        %1335 = vst [vmem:[#allocation2 + $0x28] sm:$0xff] %v1325
        %1336 = vst [vmem:[#allocation2 + $0x30] sm:$0xff] %v1326
        %1337 = vst [vmem:[#allocation2 + $0x38] sm:$0xff] %v1327
        %1338 = vst [vmem:[#allocation2 + $0x40] sm:$0xff] %v1328
        %1339 = vst [vmem:[#allocation3 + $0x7] sm:$0x1] 0.0
        %1340 = vst [vmem:[#allocation3 + $0x48] sm:$0x1] 0.0
        %1341 = vst [vmem:[#allocation3 + $0x8] sm:$0xff] %v1093
        %1342 = vst [vmem:[#allocation3 + $0x10] sm:$0xff] %v1096
        %1343 = vst [vmem:[#allocation3 + $0x18] sm:$0xff] %v1101
        %1344 = vst [vmem:[#allocation3 + $0x20] sm:$0xff] %v1104
        %1345 = vst [vmem:[#allocation3 + $0x28] sm:$0xff] %v1109
        %1346 = vst [vmem:[#allocation3 + $0x30] sm:$0xff] %v1112
        %1347 = vst [vmem:[#allocation3 + $0x38] sm:$0xff] %v1117
        %1348 = vst [vmem:[#allocation3 + $0x40] sm:$0xff] %v1120
        %s1349 = scalar_lea.vmem [#allocation6], 256
        %v1350 = vld [vmem:[%s1349] sm:$0xf]
        %v1351 = vld [vmem:[%s1349 + $0x4] sm:$0xf]
        %v1352 = vld [vmem:[%s1349 + $0x8] sm:$0xf]
        %v1353 = vld [vmem:[%s1349 + $0xc] sm:$0xf]
        %v1354 = vld [vmem:[%s1349 + $0x10] sm:$0xf]
        %v1355 = vld [vmem:[%s1349 + $0x14] sm:$0xf]
        %v1356 = vld [vmem:[%s1349 + $0x18] sm:$0xf]
        %v1357 = vld [vmem:[%s1349 + $0x1c] sm:$0xf]
        %v1358 = vld [vmem:[%s1349 + $0x20] sm:$0xf]
        %v1359 = vld [vmem:[%s1349 + $0x24] sm:$0xf]
        %v1360 = vld [vmem:[%s1349 + $0x28] sm:$0xf]
        %v1361 = vld [vmem:[%s1349 + $0x2c] sm:$0xf]
        %v1362 = vld [vmem:[%s1349 + $0x30] sm:$0xf]
        %v1363 = vld [vmem:[%s1349 + $0x34] sm:$0xf]
        %v1364 = vld [vmem:[%s1349 + $0x38] sm:$0xf]
        %v1365 = vld [vmem:[%s1349 + $0x3c] sm:$0xf]
        %v1366 = vld [vmem:[%s1349 + $0x40] sm:$0xf]
        %v1367 = vld [vmem:[%s1349 + $0x44] sm:$0xf]
        %v1368 = vld [vmem:[%s1349 + $0x48] sm:$0xf]
        %v1369 = vld [vmem:[%s1349 + $0x4c] sm:$0xf]
        %v1370 = vld [vmem:[%s1349 + $0x50] sm:$0xf]
        %v1371 = vld [vmem:[%s1349 + $0x54] sm:$0xf]
        %v1372 = vld [vmem:[%s1349 + $0x58] sm:$0xf]
        %v1373 = vld [vmem:[%s1349 + $0x5c] sm:$0xf]
        %v1374 = vld [vmem:[%s1349 + $0x60] sm:$0xf]
        %v1375 = vld [vmem:[%s1349 + $0x64] sm:$0xf]
        %v1376 = vld [vmem:[%s1349 + $0x68] sm:$0xf]
        %v1377 = vld [vmem:[%s1349 + $0x6c] sm:$0xf]
        %v1378 = vld [vmem:[%s1349 + $0x70] sm:$0xf]
        %v1379 = vld [vmem:[%s1349 + $0x74] sm:$0xf]
        %v1380 = vld [vmem:[%s1349 + $0x78] sm:$0xf]
        %v1381 = vld [vmem:[%s1349 + $0x7c] sm:$0xf]
        %v1382 = vld [vmem:[%s1349 + $0x80] sm:$0xf]
        %v1383 = vld [vmem:[%s1349 + $0x84] sm:$0xf]
        %v1384 = vld [vmem:[%s1349 + $0x88] sm:$0xf]
        %v1385 = vld [vmem:[%s1349 + $0x8c] sm:$0xf]
        %v1386 = vld [vmem:[%s1349 + $0x90] sm:$0xf]
        %v1387 = vld [vmem:[%s1349 + $0x94] sm:$0xf]
        %v1388 = vld [vmem:[%s1349 + $0x98] sm:$0xf]
        %v1389 = vld [vmem:[%s1349 + $0x9c] sm:$0xf]
        %v1390 = vld [vmem:[%s1349 + $0xa0] sm:$0xf]
        %v1391 = vld [vmem:[%s1349 + $0xa4] sm:$0xf]
        %v1392 = vld [vmem:[%s1349 + $0xa8] sm:$0xf]
        %v1393 = vld [vmem:[%s1349 + $0xac] sm:$0xf]
        %v1394 = vld [vmem:[%s1349 + $0xb0] sm:$0xf]
        %v1395 = vld [vmem:[%s1349 + $0xb4] sm:$0xf]
        %v1396 = vld [vmem:[%s1349 + $0xb8] sm:$0xf]
        %v1397 = vld [vmem:[%s1349 + $0xbc] sm:$0xf]
        %v1398 = vld [vmem:[%s1349 + $0xc0] sm:$0xf]
        %v1399 = vld [vmem:[%s1349 + $0xc4] sm:$0xf]
        %v1400 = vld [vmem:[%s1349 + $0xc8] sm:$0xf]
        %v1401 = vld [vmem:[%s1349 + $0xcc] sm:$0xf]
        %v1402 = vld [vmem:[%s1349 + $0xd0] sm:$0xf]
        %v1403 = vld [vmem:[%s1349 + $0xd4] sm:$0xf]
        %v1404 = vld [vmem:[%s1349 + $0xd8] sm:$0xf]
        %v1405 = vld [vmem:[%s1349 + $0xdc] sm:$0xf]
        %v1406 = vld [vmem:[%s1349 + $0xe0] sm:$0xf]
        %v1407 = vld [vmem:[%s1349 + $0xe4] sm:$0xf]
        %v1408 = vld [vmem:[%s1349 + $0xe8] sm:$0xf]
        %v1409 = vld [vmem:[%s1349 + $0xec] sm:$0xf]
        %v1410 = vld [vmem:[%s1349 + $0xf0] sm:$0xf]
        %v1411 = vld [vmem:[%s1349 + $0xf4] sm:$0xf]
        %v1412 = vld [vmem:[%s1349 + $0xf8] sm:$0xf]
        %v1413 = vld [vmem:[%s1349 + $0xfc] sm:$0xf]
        %v1414 = vld [vmem:[#allocation9 + $0x6] sm:$0x1]
        %v1415 = vld [vmem:[%s717] ss:$2 sm:$0xff]
        %v1416 = vld [vmem:[%s719] ss:$2 sm:$0xff]
        %v1417 = vld [vmem:[%s721] ss:$2 sm:$0xff]
        %v1418 = vld [vmem:[%s723] ss:$2 sm:$0xff]
        %v1419 = vld [vmem:[%s733] ss:$2 sm:$0xff]
        %v1420 = vld [vmem:[%s735] ss:$2 sm:$0xff]
        %v1421 = vld [vmem:[%s737] ss:$2 sm:$0xff]
        %v1422 = vld [vmem:[%s739] ss:$2 sm:$0xff]
        %v1423 = vld [vmem:[%s749] ss:$2 sm:$0xff]
        %v1424 = vld [vmem:[%s751] ss:$2 sm:$0xff]
        %v1425 = vld [vmem:[%s753] ss:$2 sm:$0xff]
        %v1426 = vld [vmem:[%s755] ss:$2 sm:$0xff]
        %v1427 = vld [vmem:[%s765] ss:$2 sm:$0xff]
        %v1428 = vld [vmem:[%s767] ss:$2 sm:$0xff]
        %v1429 = vld [vmem:[%s769] ss:$2 sm:$0xff]
        %v1430 = vld [vmem:[%s771] ss:$2 sm:$0xff]
        %v1431 = vpack.c.bf16 %v1416, %v1415
        %v1432 = vpack.c.bf16 %v1420, %v1419
        %v1433 = vpack.c.bf16 %v1424, %v1423
        %v1434 = vpack.c.bf16 %v1428, %v1427
        %v1435 = vpack.c.bf16 %v1418, %v1417
        %v1436 = vpack.c.bf16 %v1422, %v1421
        %v1437 = vpack.c.bf16 %v1426, %v1425
        %v1438 = vpack.c.bf16 %v1430, %v1429
        %v1439 = vlaneseq
        %v1440 = vshrl.u32 %v1439, 7
        %v1441 = vsub.s32 0, %v1440
        %v1442 = vrot.slane %v1414, %v1441
        %v1507 = vunpack.c.l.b16 %v1350
        %v1508 = vunpack.c.l.b16 %v1351
        %v1509 = vunpack.c.l.b16 %v1352
        %v1510 = vunpack.c.l.b16 %v1353
        %v1511 = vunpack.c.l.b16 %v1354
        %v1512 = vunpack.c.l.b16 %v1355
        %v1513 = vunpack.c.l.b16 %v1356
        %v1514 = vunpack.c.l.b16 %v1357
        %v1515 = vunpack.c.l.b16 %v1358
        %v1516 = vunpack.c.l.b16 %v1359
        %v1517 = vunpack.c.l.b16 %v1360
        %v1518 = vunpack.c.l.b16 %v1361
        %v1519 = vunpack.c.l.b16 %v1362
        %v1520 = vunpack.c.l.b16 %v1363
        %v1521 = vunpack.c.l.b16 %v1364
        %v1522 = vunpack.c.l.b16 %v1365
        %v1523 = vunpack.c.l.b16 %v1366
        %v1524 = vunpack.c.l.b16 %v1367
        %v1525 = vunpack.c.l.b16 %v1368
        %v1526 = vunpack.c.l.b16 %v1369
        %v1527 = vunpack.c.l.b16 %v1370
        %v1528 = vunpack.c.l.b16 %v1371
        %v1529 = vunpack.c.l.b16 %v1372
        %v1530 = vunpack.c.l.b16 %v1373
        %v1531 = vunpack.c.l.b16 %v1374
        %v1532 = vunpack.c.l.b16 %v1375
        %v1533 = vunpack.c.l.b16 %v1376
        %v1534 = vunpack.c.l.b16 %v1377
        %v1535 = vunpack.c.l.b16 %v1378
        %v1536 = vunpack.c.l.b16 %v1379
        %v1537 = vunpack.c.l.b16 %v1380
        %v1538 = vunpack.c.l.b16 %v1381
        %v1539 = vunpack.c.l.b16 %v1382
        %v1540 = vunpack.c.l.b16 %v1383
        %v1541 = vunpack.c.l.b16 %v1384
        %v1542 = vunpack.c.l.b16 %v1385
        %v1543 = vunpack.c.l.b16 %v1386
        %v1544 = vunpack.c.l.b16 %v1387
        %v1545 = vunpack.c.l.b16 %v1388
        %v1546 = vunpack.c.l.b16 %v1389
        %v1547 = vunpack.c.l.b16 %v1390
        %v1548 = vunpack.c.l.b16 %v1391
        %v1549 = vunpack.c.l.b16 %v1392
        %v1550 = vunpack.c.l.b16 %v1393
        %v1551 = vunpack.c.l.b16 %v1394
        %v1552 = vunpack.c.l.b16 %v1395
        %v1553 = vunpack.c.l.b16 %v1396
        %v1554 = vunpack.c.l.b16 %v1397
        %v1555 = vunpack.c.l.b16 %v1398
        %v1556 = vunpack.c.l.b16 %v1399
        %v1557 = vunpack.c.l.b16 %v1400
        %v1558 = vunpack.c.l.b16 %v1401
        %v1559 = vunpack.c.l.b16 %v1402
        %v1560 = vunpack.c.l.b16 %v1403
        %v1561 = vunpack.c.l.b16 %v1404
        %v1562 = vunpack.c.l.b16 %v1405
        %v1563 = vunpack.c.l.b16 %v1406
        %v1564 = vunpack.c.l.b16 %v1407
        %v1565 = vunpack.c.l.b16 %v1408
        %v1566 = vunpack.c.l.b16 %v1409
        %v1567 = vunpack.c.l.b16 %v1410
        %v1568 = vunpack.c.l.b16 %v1411
        %v1569 = vunpack.c.l.b16 %v1412
        %v1570 = vunpack.c.l.b16 %v1413
        %v1571 = vpack.c.b16 %v1508, %v1507
        %v1572 = vpack.c.b16 %v1510, %v1509
        %v1573 = vpack.c.b16 %v1512, %v1511
        %v1574 = vpack.c.b16 %v1514, %v1513
        %v1575 = vpack.c.b16 %v1516, %v1515
        %v1576 = vpack.c.b16 %v1518, %v1517
        %v1577 = vpack.c.b16 %v1520, %v1519
        %v1578 = vpack.c.b16 %v1522, %v1521
        %v1579 = vpack.c.b16 %v1524, %v1523
        %v1580 = vpack.c.b16 %v1526, %v1525
        %v1581 = vpack.c.b16 %v1528, %v1527
        %v1582 = vpack.c.b16 %v1530, %v1529
        %v1583 = vpack.c.b16 %v1532, %v1531
        %v1584 = vpack.c.b16 %v1534, %v1533
        %v1585 = vpack.c.b16 %v1536, %v1535
        %v1586 = vpack.c.b16 %v1538, %v1537
        %v1587 = vpack.c.b16 %v1540, %v1539
        %v1588 = vpack.c.b16 %v1542, %v1541
        %v1589 = vpack.c.b16 %v1544, %v1543
        %v1590 = vpack.c.b16 %v1546, %v1545
        %v1591 = vpack.c.b16 %v1548, %v1547
        %v1592 = vpack.c.b16 %v1550, %v1549
        %v1593 = vpack.c.b16 %v1552, %v1551
        %v1594 = vpack.c.b16 %v1554, %v1553
        %v1595 = vpack.c.b16 %v1556, %v1555
        %v1596 = vpack.c.b16 %v1558, %v1557
        %v1597 = vpack.c.b16 %v1560, %v1559
        %v1598 = vpack.c.b16 %v1562, %v1561
        %v1599 = vpack.c.b16 %v1564, %v1563
        %v1600 = vpack.c.b16 %v1566, %v1565
        %v1601 = vpack.c.b16 %v1568, %v1567
        %v1602 = vpack.c.b16 %v1570, %v1569
        %1635 = vmatprep.subr.bf16.mxu0 0
        %1636 = vmatpush1.bf16.msra.mxu0 %v1571
        %1637 = vmatprep.subr.bf16.mxu0 0
        %1638 = vmatpush1.bf16.msra.mxu0 %v1572
        %1639 = vmatprep.subr.bf16.mxu0 0
        %1640 = vmatpush1.bf16.msra.mxu0 %v1573
        %1641 = vmatprep.subr.bf16.mxu0 0
        %1642 = vmatpush1.bf16.msra.mxu0 %v1574
        %1643 = vmatprep.subr.bf16.mxu0 0
        %1644 = vmatpush1.bf16.msra.mxu0 %v1575
        %1645 = vmatprep.subr.bf16.mxu0 0
        %1646 = vmatpush1.bf16.msra.mxu0 %v1576
        %1647 = vmatprep.subr.bf16.mxu0 0
        %1648 = vmatpush1.bf16.msra.mxu0 %v1577
        %1649 = vmatprep.subr.bf16.mxu0 0
        %1650 = vmatpush1.bf16.msra.mxu0 %v1578
        %1651 = vmatprep.subr.bf16.mxu0 0
        %1652 = vmatpush1.bf16.msra.mxu0 %v1579
        %1653 = vmatprep.subr.bf16.mxu0 0
        %1654 = vmatpush1.bf16.msra.mxu0 %v1580
        %1655 = vmatprep.subr.bf16.mxu0 0
        %1656 = vmatpush1.bf16.msra.mxu0 %v1581
        %1657 = vmatprep.subr.bf16.mxu0 0
        %1658 = vmatpush1.bf16.msra.mxu0 %v1582
        %1659 = vmatprep.subr.bf16.mxu0 0
        %1660 = vmatpush1.bf16.msra.mxu0 %v1583
        %1661 = vmatprep.subr.bf16.mxu0 0
        %1662 = vmatpush1.bf16.msra.mxu0 %v1584
        %1663 = vmatprep.subr.bf16.mxu0 0
        %1664 = vmatpush1.bf16.msra.mxu0 %v1585
        %1665 = vmatprep.subr.bf16.mxu0 0
        %1666 = vmatpush1.bf16.msra.mxu0 %v1586
        %1667 = vmatprep.mubr.bf16.mxu0 %v1432
        %1668 = vmatmul.mubr.bf16.gmra.mrb[0].mxu0 %v1431
        %v1669 = vpop.f32.mrb[0].mxu0
        %v1670 = vadd.f32 %v1442, %v1669
        %v1671 = vpop.f32.mrb[0].mxu0
        %v1672 = vpop.f32.mrb[0].mxu0
        %v1673 = vadd.f32 %v1442, %v1672
        %v1674 = vpop.f32.mrb[0].mxu0
        %1675 = vmatprep.mubr.bf16.mxu0 %v1436
        %1676 = vmatmul.mubr.bf16.gmra.mrb[0].mxu0 %v1435
        %v1677 = vpop.f32.mrb[0].mxu0
        %v1678 = vadd.f32 %v1442, %v1677
        %v1679 = vpop.f32.mrb[0].mxu0
        %v1680 = vpop.f32.mrb[0].mxu0
        %v1681 = vadd.f32 %v1442, %v1680
        %v1682 = vpop.f32.mrb[0].mxu0
        %1683 = vdwg.mxu0
        %1684 = vmatprep.subr.bf16.mxu0 0
        %1685 = vmatpush1.bf16.msra.mxu0 %v1587
        %1686 = vmatprep.subr.bf16.mxu0 0
        %1687 = vmatpush1.bf16.msra.mxu0 %v1588
        %1688 = vmatprep.subr.bf16.mxu0 0
        %1689 = vmatpush1.bf16.msra.mxu0 %v1589
        %1690 = vmatprep.subr.bf16.mxu0 0
        %1691 = vmatpush1.bf16.msra.mxu0 %v1590
        %1692 = vmatprep.subr.bf16.mxu0 0
        %1693 = vmatpush1.bf16.msra.mxu0 %v1591
        %1694 = vmatprep.subr.bf16.mxu0 0
        %1695 = vmatpush1.bf16.msra.mxu0 %v1592
        %1696 = vmatprep.subr.bf16.mxu0 0
        %1697 = vmatpush1.bf16.msra.mxu0 %v1593
        %1698 = vmatprep.subr.bf16.mxu0 0
        %1699 = vmatpush1.bf16.msra.mxu0 %v1594
        %1700 = vmatprep.subr.bf16.mxu0 0
        %1701 = vmatpush1.bf16.msra.mxu0 %v1595
        %1702 = vmatprep.subr.bf16.mxu0 0
        %1703 = vmatpush1.bf16.msra.mxu0 %v1596
        %1704 = vmatprep.subr.bf16.mxu0 0
        %1705 = vmatpush1.bf16.msra.mxu0 %v1597
        %1706 = vmatprep.subr.bf16.mxu0 0
        %1707 = vmatpush1.bf16.msra.mxu0 %v1598
        %1708 = vmatprep.subr.bf16.mxu0 0
        %1709 = vmatpush1.bf16.msra.mxu0 %v1599
        %1710 = vmatprep.subr.bf16.mxu0 0
        %1711 = vmatpush1.bf16.msra.mxu0 %v1600
        %1712 = vmatprep.subr.bf16.mxu0 0
        %1713 = vmatpush1.bf16.msra.mxu0 %v1601
        %1714 = vmatprep.subr.bf16.mxu0 0
        %1715 = vmatpush1.bf16.msra.mxu0 %v1602
        %1716 = vmatprep.mubr.bf16.mxu0 %v1434
        %1717 = vmatmul.mubr.bf16.gmra.mrb[0].mxu0 %v1433
        %v1718 = vpop.f32.mrb[0].mxu0
        %v1719 = vadd.f32 %v1670, %v1718
        %v1720 = vpop.f32.mrb[0].mxu0
        %v1721 = vpop.f32.mrb[0].mxu0
        %v1722 = vadd.f32 %v1673, %v1721
        %v1723 = vpop.f32.mrb[0].mxu0
        %1724 = vmatprep.mubr.bf16.mxu0 %v1438
        %1725 = vmatmul.mubr.bf16.gmra.mrb[0].mxu0 %v1437
        %v1726 = vpop.f32.mrb[0].mxu0
        %v1727 = vadd.f32 %v1678, %v1726
        %v1728 = vpop.f32.mrb[0].mxu0
        %v1729 = vpop.f32.mrb[0].mxu0
        %v1730 = vadd.f32 %v1681, %v1729
        %v1731 = vpop.f32.mrb[0].mxu0
        %1732 = vdwg.mxu0
        %s1733 = scalar_lea.vmem [#allocation6], 512
        %v1734 = vld [vmem:[%s1733] sm:$0xf]
        %v1735 = vld [vmem:[%s1733 + $0x4] sm:$0xf]
        %v1736 = vld [vmem:[%s1733 + $0x8] sm:$0xf]
        %v1737 = vld [vmem:[%s1733 + $0xc] sm:$0xf]
        %v1738 = vld [vmem:[%s1733 + $0x10] sm:$0xf]
        %v1739 = vld [vmem:[%s1733 + $0x14] sm:$0xf]
        %v1740 = vld [vmem:[%s1733 + $0x18] sm:$0xf]
        %v1741 = vld [vmem:[%s1733 + $0x1c] sm:$0xf]
        %v1742 = vld [vmem:[%s1733 + $0x20] sm:$0xf]
        %v1743 = vld [vmem:[%s1733 + $0x24] sm:$0xf]
        %v1744 = vld [vmem:[%s1733 + $0x28] sm:$0xf]
        %v1745 = vld [vmem:[%s1733 + $0x2c] sm:$0xf]
        %v1746 = vld [vmem:[%s1733 + $0x30] sm:$0xf]
        %v1747 = vld [vmem:[%s1733 + $0x34] sm:$0xf]
        %v1748 = vld [vmem:[%s1733 + $0x38] sm:$0xf]
        %v1749 = vld [vmem:[%s1733 + $0x3c] sm:$0xf]
        %v1750 = vld [vmem:[%s1733 + $0x40] sm:$0xf]
        %v1751 = vld [vmem:[%s1733 + $0x44] sm:$0xf]
        %v1752 = vld [vmem:[%s1733 + $0x48] sm:$0xf]
        %v1753 = vld [vmem:[%s1733 + $0x4c] sm:$0xf]
        %v1754 = vld [vmem:[%s1733 + $0x50] sm:$0xf]
        %v1755 = vld [vmem:[%s1733 + $0x54] sm:$0xf]
        %v1756 = vld [vmem:[%s1733 + $0x58] sm:$0xf]
        %v1757 = vld [vmem:[%s1733 + $0x5c] sm:$0xf]
        %v1758 = vld [vmem:[%s1733 + $0x60] sm:$0xf]
        %v1759 = vld [vmem:[%s1733 + $0x64] sm:$0xf]
        %v1760 = vld [vmem:[%s1733 + $0x68] sm:$0xf]
        %v1761 = vld [vmem:[%s1733 + $0x6c] sm:$0xf]
        %v1762 = vld [vmem:[%s1733 + $0x70] sm:$0xf]
        %v1763 = vld [vmem:[%s1733 + $0x74] sm:$0xf]
        %v1764 = vld [vmem:[%s1733 + $0x78] sm:$0xf]
        %v1765 = vld [vmem:[%s1733 + $0x7c] sm:$0xf]
        %v1766 = vld [vmem:[%s1733 + $0x80] sm:$0xf]
        %v1767 = vld [vmem:[%s1733 + $0x84] sm:$0xf]
        %v1768 = vld [vmem:[%s1733 + $0x88] sm:$0xf]
        %v1769 = vld [vmem:[%s1733 + $0x8c] sm:$0xf]
        %v1770 = vld [vmem:[%s1733 + $0x90] sm:$0xf]
        %v1771 = vld [vmem:[%s1733 + $0x94] sm:$0xf]
        %v1772 = vld [vmem:[%s1733 + $0x98] sm:$0xf]
        %v1773 = vld [vmem:[%s1733 + $0x9c] sm:$0xf]
        %v1774 = vld [vmem:[%s1733 + $0xa0] sm:$0xf]
        %v1775 = vld [vmem:[%s1733 + $0xa4] sm:$0xf]
        %v1776 = vld [vmem:[%s1733 + $0xa8] sm:$0xf]
        %v1777 = vld [vmem:[%s1733 + $0xac] sm:$0xf]
        %v1778 = vld [vmem:[%s1733 + $0xb0] sm:$0xf]
        %v1779 = vld [vmem:[%s1733 + $0xb4] sm:$0xf]
        %v1780 = vld [vmem:[%s1733 + $0xb8] sm:$0xf]
        %v1781 = vld [vmem:[%s1733 + $0xbc] sm:$0xf]
        %v1782 = vld [vmem:[%s1733 + $0xc0] sm:$0xf]
        %v1783 = vld [vmem:[%s1733 + $0xc4] sm:$0xf]
        %v1784 = vld [vmem:[%s1733 + $0xc8] sm:$0xf]
        %v1785 = vld [vmem:[%s1733 + $0xcc] sm:$0xf]
        %v1786 = vld [vmem:[%s1733 + $0xd0] sm:$0xf]
        %v1787 = vld [vmem:[%s1733 + $0xd4] sm:$0xf]
        %v1788 = vld [vmem:[%s1733 + $0xd8] sm:$0xf]
        %v1789 = vld [vmem:[%s1733 + $0xdc] sm:$0xf]
        %v1790 = vld [vmem:[%s1733 + $0xe0] sm:$0xf]
        %v1791 = vld [vmem:[%s1733 + $0xe4] sm:$0xf]
        %v1792 = vld [vmem:[%s1733 + $0xe8] sm:$0xf]
        %v1793 = vld [vmem:[%s1733 + $0xec] sm:$0xf]
        %v1794 = vld [vmem:[%s1733 + $0xf0] sm:$0xf]
        %v1795 = vld [vmem:[%s1733 + $0xf4] sm:$0xf]
        %v1796 = vld [vmem:[%s1733 + $0xf8] sm:$0xf]
        %v1797 = vld [vmem:[%s1733 + $0xfc] sm:$0xf]
        %v1798 = vld [vmem:[#allocation9 + $0x7] sm:$0x1]
        %s1799 = scalar_lea.vmem [#allocation3], 7
        %v1800 = vld [vmem:[%s1799] ss:$2 sm:$0xff]
        %s1801 = scalar_lea.vmem [#allocation3], 23
        %v1802 = vld [vmem:[%s1801] ss:$2 sm:$0xff]
        %s1803 = scalar_lea.vmem [#allocation3], 39
        %v1804 = vld [vmem:[%s1803] ss:$2 sm:$0xff]
        %s1805 = scalar_lea.vmem [#allocation3], 55
        %v1806 = vld [vmem:[%s1805] ss:$2 sm:$0xff]
        %s1807 = scalar_lea.vmem [#allocation3], 8
        %v1808 = vld [vmem:[%s1807] ss:$2 sm:$0xff]
        %s1809 = scalar_lea.vmem [#allocation3], 24
        %v1810 = vld [vmem:[%s1809] ss:$2 sm:$0xff]
        %s1811 = scalar_lea.vmem [#allocation3], 40
        %v1812 = vld [vmem:[%s1811] ss:$2 sm:$0xff]
        %s1813 = scalar_lea.vmem [#allocation3], 56
        %v1814 = vld [vmem:[%s1813] ss:$2 sm:$0xff]
        %s1815 = scalar_lea.vmem [#allocation3], 9
        %v1816 = vld [vmem:[%s1815] ss:$2 sm:$0xff]
        %s1817 = scalar_lea.vmem [#allocation3], 25
        %v1818 = vld [vmem:[%s1817] ss:$2 sm:$0xff]
        %s1819 = scalar_lea.vmem [#allocation3], 41
        %v1820 = vld [vmem:[%s1819] ss:$2 sm:$0xff]
        %s1821 = scalar_lea.vmem [#allocation3], 57
        %v1822 = vld [vmem:[%s1821] ss:$2 sm:$0xff]
        %s1823 = scalar_lea.vmem [#allocation3], 10
        %v1824 = vld [vmem:[%s1823] ss:$2 sm:$0xff]
        %s1825 = scalar_lea.vmem [#allocation3], 26
        %v1826 = vld [vmem:[%s1825] ss:$2 sm:$0xff]
        %s1827 = scalar_lea.vmem [#allocation3], 42
        %v1828 = vld [vmem:[%s1827] ss:$2 sm:$0xff]
        %s1829 = scalar_lea.vmem [#allocation3], 58
        %v1830 = vld [vmem:[%s1829] ss:$2 sm:$0xff]
        %v1831 = vpack.c.bf16 %v1802, %v1800
        %v1832 = vpack.c.bf16 %v1810, %v1808
        %v1833 = vpack.c.bf16 %v1818, %v1816
        %v1834 = vpack.c.bf16 %v1826, %v1824
        %v1835 = vpack.c.bf16 %v1806, %v1804
        %v1836 = vpack.c.bf16 %v1814, %v1812
        %v1837 = vpack.c.bf16 %v1822, %v1820
        %v1838 = vpack.c.bf16 %v1830, %v1828
        %v1839 = vlaneseq
        %v1840 = vshrl.u32 %v1839, 7
        %v1841 = vsub.s32 0, %v1840
        %v1842 = vrot.slane %v1798, %v1841
        %v1907 = vunpack.c.l.b16 %v1734
        %v1908 = vunpack.c.l.b16 %v1735
        %v1909 = vunpack.c.l.b16 %v1736
        %v1910 = vunpack.c.l.b16 %v1737
        %v1911 = vunpack.c.l.b16 %v1738
        %v1912 = vunpack.c.l.b16 %v1739
        %v1913 = vunpack.c.l.b16 %v1740
        %v1914 = vunpack.c.l.b16 %v1741
        %v1915 = vunpack.c.l.b16 %v1742
        %v1916 = vunpack.c.l.b16 %v1743
        %v1917 = vunpack.c.l.b16 %v1744
        %v1918 = vunpack.c.l.b16 %v1745
        %v1919 = vunpack.c.l.b16 %v1746
        %v1920 = vunpack.c.l.b16 %v1747
        %v1921 = vunpack.c.l.b16 %v1748
        %v1922 = vunpack.c.l.b16 %v1749
        %v1923 = vunpack.c.l.b16 %v1750
        %v1924 = vunpack.c.l.b16 %v1751
        %v1925 = vunpack.c.l.b16 %v1752
        %v1926 = vunpack.c.l.b16 %v1753
        %v1927 = vunpack.c.l.b16 %v1754
        %v1928 = vunpack.c.l.b16 %v1755
        %v1929 = vunpack.c.l.b16 %v1756
        %v1930 = vunpack.c.l.b16 %v1757
        %v1931 = vunpack.c.l.b16 %v1758
        %v1932 = vunpack.c.l.b16 %v1759
        %v1933 = vunpack.c.l.b16 %v1760
        %v1934 = vunpack.c.l.b16 %v1761
        %v1935 = vunpack.c.l.b16 %v1762
        %v1936 = vunpack.c.l.b16 %v1763
        %v1937 = vunpack.c.l.b16 %v1764
        %v1938 = vunpack.c.l.b16 %v1765
        %v1939 = vunpack.c.l.b16 %v1766
        %v1940 = vunpack.c.l.b16 %v1767
        %v1941 = vunpack.c.l.b16 %v1768
        %v1942 = vunpack.c.l.b16 %v1769
        %v1943 = vunpack.c.l.b16 %v1770
        %v1944 = vunpack.c.l.b16 %v1771
        %v1945 = vunpack.c.l.b16 %v1772
        %v1946 = vunpack.c.l.b16 %v1773
        %v1947 = vunpack.c.l.b16 %v1774
        %v1948 = vunpack.c.l.b16 %v1775
        %v1949 = vunpack.c.l.b16 %v1776
        %v1950 = vunpack.c.l.b16 %v1777
        %v1951 = vunpack.c.l.b16 %v1778
        %v1952 = vunpack.c.l.b16 %v1779
        %v1953 = vunpack.c.l.b16 %v1780
        %v1954 = vunpack.c.l.b16 %v1781
        %v1955 = vunpack.c.l.b16 %v1782
        %v1956 = vunpack.c.l.b16 %v1783
        %v1957 = vunpack.c.l.b16 %v1784
        %v1958 = vunpack.c.l.b16 %v1785
        %v1959 = vunpack.c.l.b16 %v1786
        %v1960 = vunpack.c.l.b16 %v1787
        %v1961 = vunpack.c.l.b16 %v1788
        %v1962 = vunpack.c.l.b16 %v1789
        %v1963 = vunpack.c.l.b16 %v1790
        %v1964 = vunpack.c.l.b16 %v1791
        %v1965 = vunpack.c.l.b16 %v1792
        %v1966 = vunpack.c.l.b16 %v1793
        %v1967 = vunpack.c.l.b16 %v1794
        %v1968 = vunpack.c.l.b16 %v1795
        %v1969 = vunpack.c.l.b16 %v1796
        %v1970 = vunpack.c.l.b16 %v1797
        %v1971 = vpack.c.b16 %v1908, %v1907
        %v1972 = vpack.c.b16 %v1910, %v1909
        %v1973 = vpack.c.b16 %v1912, %v1911
        %v1974 = vpack.c.b16 %v1914, %v1913
        %v1975 = vpack.c.b16 %v1916, %v1915
        %v1976 = vpack.c.b16 %v1918, %v1917
        %v1977 = vpack.c.b16 %v1920, %v1919
        %v1978 = vpack.c.b16 %v1922, %v1921
        %v1979 = vpack.c.b16 %v1924, %v1923
        %v1980 = vpack.c.b16 %v1926, %v1925
        %v1981 = vpack.c.b16 %v1928, %v1927
        %v1982 = vpack.c.b16 %v1930, %v1929
        %v1983 = vpack.c.b16 %v1932, %v1931
        %v1984 = vpack.c.b16 %v1934, %v1933
        %v1985 = vpack.c.b16 %v1936, %v1935
        %v1986 = vpack.c.b16 %v1938, %v1937
        %v1987 = vpack.c.b16 %v1940, %v1939
        %v1988 = vpack.c.b16 %v1942, %v1941
        %v1989 = vpack.c.b16 %v1944, %v1943
        %v1990 = vpack.c.b16 %v1946, %v1945
        %v1991 = vpack.c.b16 %v1948, %v1947
        %v1992 = vpack.c.b16 %v1950, %v1949
        %v1993 = vpack.c.b16 %v1952, %v1951
        %v1994 = vpack.c.b16 %v1954, %v1953
        %v1995 = vpack.c.b16 %v1956, %v1955
        %v1996 = vpack.c.b16 %v1958, %v1957
        %v1997 = vpack.c.b16 %v1960, %v1959
        %v1998 = vpack.c.b16 %v1962, %v1961
        %v1999 = vpack.c.b16 %v1964, %v1963
        %v2000 = vpack.c.b16 %v1966, %v1965
        %v2001 = vpack.c.b16 %v1968, %v1967
        %v2002 = vpack.c.b16 %v1970, %v1969
        %2035 = vmatprep.subr.bf16.mxu0 0
        %2036 = vmatpush1.bf16.msra.mxu0 %v1971
        %2037 = vmatprep.subr.bf16.mxu0 0
        %2038 = vmatpush1.bf16.msra.mxu0 %v1972
        %2039 = vmatprep.subr.bf16.mxu0 0
        %2040 = vmatpush1.bf16.msra.mxu0 %v1973
        %2041 = vmatprep.subr.bf16.mxu0 0
        %2042 = vmatpush1.bf16.msra.mxu0 %v1974
        %2043 = vmatprep.subr.bf16.mxu0 0
        %2044 = vmatpush1.bf16.msra.mxu0 %v1975
        %2045 = vmatprep.subr.bf16.mxu0 0
        %2046 = vmatpush1.bf16.msra.mxu0 %v1976
        %2047 = vmatprep.subr.bf16.mxu0 0
        %2048 = vmatpush1.bf16.msra.mxu0 %v1977
        %2049 = vmatprep.subr.bf16.mxu0 0
        %2050 = vmatpush1.bf16.msra.mxu0 %v1978
        %2051 = vmatprep.subr.bf16.mxu0 0
        %2052 = vmatpush1.bf16.msra.mxu0 %v1979
        %2053 = vmatprep.subr.bf16.mxu0 0
        %2054 = vmatpush1.bf16.msra.mxu0 %v1980
        %2055 = vmatprep.subr.bf16.mxu0 0
        %2056 = vmatpush1.bf16.msra.mxu0 %v1981
        %2057 = vmatprep.subr.bf16.mxu0 0
        %2058 = vmatpush1.bf16.msra.mxu0 %v1982
        %2059 = vmatprep.subr.bf16.mxu0 0
        %2060 = vmatpush1.bf16.msra.mxu0 %v1983
        %2061 = vmatprep.subr.bf16.mxu0 0
        %2062 = vmatpush1.bf16.msra.mxu0 %v1984
        %2063 = vmatprep.subr.bf16.mxu0 0
        %2064 = vmatpush1.bf16.msra.mxu0 %v1985
        %2065 = vmatprep.subr.bf16.mxu0 0
        %2066 = vmatpush1.bf16.msra.mxu0 %v1986
        %2067 = vmatprep.mubr.bf16.mxu0 %v1832
        %2068 = vmatmul.mubr.bf16.gmra.mrb[0].mxu0 %v1831
        %v2069 = vpop.f32.mrb[0].mxu0
        %v2070 = vadd.f32 %v1842, %v2069
        %v2071 = vpop.f32.mrb[0].mxu0
        %v2072 = vpop.f32.mrb[0].mxu0
        %v2073 = vadd.f32 %v1842, %v2072
        %v2074 = vpop.f32.mrb[0].mxu0
        %2075 = vmatprep.mubr.bf16.mxu0 %v1836
        %2076 = vmatmul.mubr.bf16.gmra.mrb[0].mxu0 %v1835
        %v2077 = vpop.f32.mrb[0].mxu0
        %v2078 = vadd.f32 %v1842, %v2077
        %v2079 = vpop.f32.mrb[0].mxu0
        %v2080 = vpop.f32.mrb[0].mxu0
        %v2081 = vadd.f32 %v1842, %v2080
        %v2082 = vpop.f32.mrb[0].mxu0
        %2083 = vdwg.mxu0
        %2084 = vmatprep.subr.bf16.mxu0 0
        %2085 = vmatpush1.bf16.msra.mxu0 %v1987
        %2086 = vmatprep.subr.bf16.mxu0 0
        %2087 = vmatpush1.bf16.msra.mxu0 %v1988
        %2088 = vmatprep.subr.bf16.mxu0 0
        %2089 = vmatpush1.bf16.msra.mxu0 %v1989
        %2090 = vmatprep.subr.bf16.mxu0 0
        %2091 = vmatpush1.bf16.msra.mxu0 %v1990
        %2092 = vmatprep.subr.bf16.mxu0 0
        %2093 = vmatpush1.bf16.msra.mxu0 %v1991
        %2094 = vmatprep.subr.bf16.mxu0 0
        %2095 = vmatpush1.bf16.msra.mxu0 %v1992
        %2096 = vmatprep.subr.bf16.mxu0 0
        %2097 = vmatpush1.bf16.msra.mxu0 %v1993
        %2098 = vmatprep.subr.bf16.mxu0 0
        %2099 = vmatpush1.bf16.msra.mxu0 %v1994
        %2100 = vmatprep.subr.bf16.mxu0 0
        %2101 = vmatpush1.bf16.msra.mxu0 %v1995
        %2102 = vmatprep.subr.bf16.mxu0 0
        %2103 = vmatpush1.bf16.msra.mxu0 %v1996
        %2104 = vmatprep.subr.bf16.mxu0 0
        %2105 = vmatpush1.bf16.msra.mxu0 %v1997
        %2106 = vmatprep.subr.bf16.mxu0 0
        %2107 = vmatpush1.bf16.msra.mxu0 %v1998
        %2108 = vmatprep.subr.bf16.mxu0 0
        %2109 = vmatpush1.bf16.msra.mxu0 %v1999
        %2110 = vmatprep.subr.bf16.mxu0 0
        %2111 = vmatpush1.bf16.msra.mxu0 %v2000
        %2112 = vmatprep.subr.bf16.mxu0 0
        %2113 = vmatpush1.bf16.msra.mxu0 %v2001
        %2114 = vmatprep.subr.bf16.mxu0 0
        %2115 = vmatpush1.bf16.msra.mxu0 %v2002
        %2116 = vmatprep.mubr.bf16.mxu0 %v1834
        %2117 = vmatmul.mubr.bf16.gmra.mrb[0].mxu0 %v1833
        %v2118 = vpop.f32.mrb[0].mxu0
        %v2119 = vadd.f32 %v2070, %v2118
        %v2120 = vpop.f32.mrb[0].mxu0
        %v2121 = vpop.f32.mrb[0].mxu0
        %v2122 = vadd.f32 %v2073, %v2121
        %v2123 = vpop.f32.mrb[0].mxu0
        %2124 = vmatprep.mubr.bf16.mxu0 %v1838
        %2125 = vmatmul.mubr.bf16.gmra.mrb[0].mxu0 %v1837
        %v2126 = vpop.f32.mrb[0].mxu0
        %v2127 = vadd.f32 %v2078, %v2126
        %v2128 = vpop.f32.mrb[0].mxu0
        %v2129 = vpop.f32.mrb[0].mxu0
        %v2130 = vadd.f32 %v2081, %v2129
        %v2131 = vpop.f32.mrb[0].mxu0
        %2132 = vdwg.mxu0
        %v2133 = vmul.f32 %v2119, 2.0
        %v2134 = vmul.f32 %v2122, 2.0
        %v2135 = vmul.f32 %v2127, 2.0
        %v2136 = vmul.f32 %v2130, 2.0
        %v2137 = vmul.f32 %v1719, 0.3
        %v2138 = vmul.f32 %v1722, 0.3
        %v2139 = vmul.f32 %v1727, 0.3
        %v2140 = vmul.f32 %v1730, 0.3
        %v2141 = vadd.f32 %v2133, %v2137
        %v2142 = vadd.f32 %v2134, %v2138
        %v2143 = vadd.f32 %v2135, %v2139
        %v2144 = vadd.f32 %v2136, %v2140
        %v2145 = vld [vmem:[#allocation9 + $0x8] sm:$0x1]
        %v2146 = vlaneseq
        %v2147 = vshrl.u32 %v2146, 7
        %v2148 = vsub.s32 0, %v2147
        %v2149 = vrot.slane %v2145, %v2148
        %v2150 = vmul.f32 %v2141, %v2149
        %v2151 = vmul.f32 %v2142, %v2149
        %v2152 = vmul.f32 %v2143, %v2149
        %v2153 = vmul.f32 %v2144, %v2149
        %v2154 = vld [vmem:[#allocation9 + $0x9] sm:$0x1]
        %v2155 = vlaneseq
        %v2156 = vshrl.u32 %v2155, 7
        %v2157 = vsub.s32 0, %v2156
        %v2158 = vrot.slane %v2154, %v2157
        %v2159 = vadd.f32 %v2150, %v2158
        %v2160 = vadd.f32 %v2151, %v2158
        %v2161 = vadd.f32 %v2152, %v2158
        %v2162 = vadd.f32 %v2153, %v2158
        %v2163 = vmax.f32 %v2159, 0.0
        %v2164 = vmax.f32 %v2160, 0.0
        %v2165 = vmax.f32 %v2161, 0.0
        %v2166 = vmax.f32 %v2162, 0.0
        %v2167 = vpack.c.bf16 %v2164, %v2163
        %v2168 = vpack.c.bf16 %v2166, %v2165
        %s2169 = scalar_lea.vmem [#allocation8], 64
        %v2170 = vld [vmem:[%s2169] sm:$0xf]
        %v2171 = vld [vmem:[%s2169 + $0x4] sm:$0xf]
        %v2172 = vld [vmem:[%s2169 + $0x8] sm:$0xf]
        %v2173 = vld [vmem:[%s2169 + $0xc] sm:$0xf]
        %v2174 = vld [vmem:[%s2169 + $0x10] sm:$0xf]
        %v2175 = vld [vmem:[%s2169 + $0x14] sm:$0xf]
        %v2176 = vld [vmem:[%s2169 + $0x18] sm:$0xf]
        %v2177 = vld [vmem:[%s2169 + $0x1c] sm:$0xf]
        %v2178 = vld [vmem:[%s2169 + $0x20] sm:$0xf]
        %v2179 = vld [vmem:[%s2169 + $0x24] sm:$0xf]
        %v2180 = vld [vmem:[%s2169 + $0x28] sm:$0xf]
        %v2181 = vld [vmem:[%s2169 + $0x2c] sm:$0xf]
        %v2182 = vld [vmem:[%s2169 + $0x30] sm:$0xf]
        %v2183 = vld [vmem:[%s2169 + $0x34] sm:$0xf]
        %v2184 = vld [vmem:[%s2169 + $0x38] sm:$0xf]
        %v2185 = vld [vmem:[%s2169 + $0x3c] sm:$0xf]
        %v2186 = vld [vmem:[#allocation9 + $0xa] sm:$0x1]
        %v2187 = vlaneseq
        %v2188 = vshrl.u32 %v2187, 7
        %v2189 = vsub.s32 0, %v2188
        %v2190 = vrot.slane %v2186, %v2189
        %v2207 = vunpack.c.l.b16 %v2170
        %v2208 = vunpack.c.l.b16 %v2171
        %v2209 = vunpack.c.l.b16 %v2172
        %v2210 = vunpack.c.l.b16 %v2173
        %v2211 = vunpack.c.l.b16 %v2174
        %v2212 = vunpack.c.l.b16 %v2175
        %v2213 = vunpack.c.l.b16 %v2176
        %v2214 = vunpack.c.l.b16 %v2177
        %v2215 = vunpack.c.l.b16 %v2178
        %v2216 = vunpack.c.l.b16 %v2179
        %v2217 = vunpack.c.l.b16 %v2180
        %v2218 = vunpack.c.l.b16 %v2181
        %v2219 = vunpack.c.l.b16 %v2182
        %v2220 = vunpack.c.l.b16 %v2183
        %v2221 = vunpack.c.l.b16 %v2184
        %v2222 = vunpack.c.l.b16 %v2185
        %v2223 = vpack.c.b16 %v2208, %v2207
        %v2224 = vpack.c.b16 %v2210, %v2209
        %v2225 = vpack.c.b16 %v2212, %v2211
        %v2226 = vpack.c.b16 %v2214, %v2213
        %v2227 = vpack.c.b16 %v2216, %v2215
        %v2228 = vpack.c.b16 %v2218, %v2217
        %v2229 = vpack.c.b16 %v2220, %v2219
        %v2230 = vpack.c.b16 %v2222, %v2221
        %2239 = vmatprep.subr.bf16.mxu0 0
        %2240 = vmatpush1.bf16.msra.mxu0 %v2223
        %2241 = vmatprep.subr.bf16.mxu0 0
        %2242 = vmatpush1.bf16.msra.mxu0 %v2224
        %2243 = vmatprep.subr.bf16.mxu0 0
        %2244 = vmatpush1.bf16.msra.mxu0 %v2225
        %2245 = vmatprep.subr.bf16.mxu0 0
        %2246 = vmatpush1.bf16.msra.mxu0 %v2226
        %2247 = vmatprep.subr.bf16.mxu0 0
        %2248 = vmatpush1.bf16.msra.mxu0 %v2227
        %2249 = vmatprep.subr.bf16.mxu0 0
        %2250 = vmatpush1.bf16.msra.mxu0 %v2228
        %2251 = vmatprep.subr.bf16.mxu0 0
        %2252 = vmatpush1.bf16.msra.mxu0 %v2229
        %2253 = vmatprep.subr.bf16.mxu0 0
        %2254 = vmatpush1.bf16.msra.mxu0 %v2230
        %2255 = vmatprep.subr.bf16.mxu0 0
        %2256 = vmatpush1.bf16.msra.mxu0 0
        %2257 = vmatprep.subr.bf16.mxu0 0
        %2258 = vmatpush1.bf16.msra.mxu0 0
        %2259 = vmatprep.subr.bf16.mxu0 0
        %2260 = vmatpush1.bf16.msra.mxu0 0
        %2261 = vmatprep.subr.bf16.mxu0 0
        %2262 = vmatpush1.bf16.msra.mxu0 0
        %2263 = vmatprep.subr.bf16.mxu0 0
        %2264 = vmatpush1.bf16.msra.mxu0 0
        %2265 = vmatprep.subr.bf16.mxu0 0
        %2266 = vmatpush1.bf16.msra.mxu0 0
        %2267 = vmatprep.subr.bf16.mxu0 0
        %2268 = vmatpush1.bf16.msra.mxu0 0
        %2269 = vmatprep.subr.bf16.mxu0 0
        %2270 = vmatpush1.bf16.msra.mxu0 0
        %2271 = vmatprep.mubr.bf16.mxu0 0
        %2272 = vmatmul.mubr.bf16.gmra.mrb[0].mxu0 %v2167
        %v2273 = vpop.f32.mrb[0].mxu0
        %v2274 = vadd.f32 %v2190, %v2273
        %v2275 = vpop.f32.mrb[0].mxu0
        %v2276 = vpop.f32.mrb[0].mxu0
        %v2277 = vadd.f32 %v2190, %v2276
        %v2278 = vpop.f32.mrb[0].mxu0
        %2279 = vmatprep.mubr.bf16.mxu0 0
        %2280 = vmatmul.mubr.bf16.gmra.mrb[0].mxu0 %v2168
        %v2281 = vpop.f32.mrb[0].mxu0
        %v2282 = vadd.f32 %v2190, %v2281
        %v2283 = vpop.f32.mrb[0].mxu0
        %v2284 = vpop.f32.mrb[0].mxu0
        %v2285 = vadd.f32 %v2190, %v2284
        %v2286 = vpop.f32.mrb[0].mxu0
        %2287 = vdwg.mxu0
        %v2288 = vld [vmem:[#allocation9 + $0xb] sm:$0x1]
        %v2289 = vlaneseq
        %v2290 = vshrl.u32 %v2289, 7
        %v2291 = vsub.s32 0, %v2290
        %v2292 = vrot.slane %v2288, %v2291
        %v2293 = vmul.f32 %v2274, %v2292
        %v2294 = vmul.f32 %v2277, %v2292
        %v2295 = vmul.f32 %v2282, %v2292
        %v2296 = vmul.f32 %v2285, %v2292
        %v2297 = vld [vmem:[#allocation9 + $0xc] sm:$0x1]
        %v2298 = vlaneseq
        %v2299 = vshrl.u32 %v2298, 7
        %v2300 = vsub.s32 0, %v2299
        %v2301 = vrot.slane %v2297, %v2300
        %v2302 = vadd.f32 %v2293, %v2301
        %v2303 = vadd.f32 %v2294, %v2301
        %v2304 = vadd.f32 %v2295, %v2301
        %v2305 = vadd.f32 %v2296, %v2301
        %v2306 = vmax.f32 %v2302, 0.0
        %v2307 = vmax.f32 %v2303, 0.0
        %v2308 = vmax.f32 %v2304, 0.0
        %v2309 = vmax.f32 %v2305, 0.0
        %2310 = vst [vmem:[#allocation2 + $0x7] sm:$0x1] 0.0
        %2311 = vst [vmem:[#allocation2 + $0x28] sm:$0x1] 0.0
        %2312 = vst [vmem:[#allocation2 + $0x8] sm:$0xff] %v2306
        %2313 = vst [vmem:[#allocation2 + $0x10] sm:$0xff] %v2307
        %2314 = vst [vmem:[#allocation2 + $0x18] sm:$0xff] %v2308
        %2315 = vst [vmem:[#allocation2 + $0x20] sm:$0xff] %v2309
        %2316 = vst [vmem:[#allocation3 + $0x7] sm:$0x1] 0.0
        %2317 = vst [vmem:[#allocation3 + $0x28] sm:$0x1] 0.0
        %2318 = vst [vmem:[#allocation3 + $0x8] sm:$0xff] %v2141
        %2319 = vst [vmem:[#allocation3 + $0x10] sm:$0xff] %v2142
        %2320 = vst [vmem:[#allocation3 + $0x18] sm:$0xff] %v2143
        %2321 = vst [vmem:[#allocation3 + $0x20] sm:$0xff] %v2144
        %s2322 = scalar_lea.vmem [#allocation6], 768
        %v2323 = vld [vmem:[%s2322] sm:$0xf]
        %v2324 = vld [vmem:[%s2322 + $0x4] sm:$0xf]
        %v2325 = vld [vmem:[%s2322 + $0x8] sm:$0xf]
        %v2326 = vld [vmem:[%s2322 + $0xc] sm:$0xf]
        %v2327 = vld [vmem:[%s2322 + $0x10] sm:$0xf]
        %v2328 = vld [vmem:[%s2322 + $0x14] sm:$0xf]
        %v2329 = vld [vmem:[%s2322 + $0x18] sm:$0xf]
        %v2330 = vld [vmem:[%s2322 + $0x1c] sm:$0xf]
        %v2331 = vld [vmem:[%s2322 + $0x20] sm:$0xf]
        %v2332 = vld [vmem:[%s2322 + $0x24] sm:$0xf]
        %v2333 = vld [vmem:[%s2322 + $0x28] sm:$0xf]
        %v2334 = vld [vmem:[%s2322 + $0x2c] sm:$0xf]
        %v2335 = vld [vmem:[%s2322 + $0x30] sm:$0xf]
        %v2336 = vld [vmem:[%s2322 + $0x34] sm:$0xf]
        %v2337 = vld [vmem:[%s2322 + $0x38] sm:$0xf]
        %v2338 = vld [vmem:[%s2322 + $0x3c] sm:$0xf]
        %v2339 = vld [vmem:[%s2322 + $0x40] sm:$0xf]
        %v2340 = vld [vmem:[%s2322 + $0x44] sm:$0xf]
        %v2341 = vld [vmem:[%s2322 + $0x48] sm:$0xf]
        %v2342 = vld [vmem:[%s2322 + $0x4c] sm:$0xf]
        %v2343 = vld [vmem:[%s2322 + $0x50] sm:$0xf]
        %v2344 = vld [vmem:[%s2322 + $0x54] sm:$0xf]
        %v2345 = vld [vmem:[%s2322 + $0x58] sm:$0xf]
        %v2346 = vld [vmem:[%s2322 + $0x5c] sm:$0xf]
        %v2347 = vld [vmem:[%s2322 + $0x60] sm:$0xf]
        %v2348 = vld [vmem:[%s2322 + $0x64] sm:$0xf]
        %v2349 = vld [vmem:[%s2322 + $0x68] sm:$0xf]
        %v2350 = vld [vmem:[%s2322 + $0x6c] sm:$0xf]
        %v2351 = vld [vmem:[%s2322 + $0x70] sm:$0xf]
        %v2352 = vld [vmem:[%s2322 + $0x74] sm:$0xf]
        %v2353 = vld [vmem:[%s2322 + $0x78] sm:$0xf]
        %v2354 = vld [vmem:[%s2322 + $0x7c] sm:$0xf]
        %v2355 = vld [vmem:[%s2322 + $0x80] sm:$0xf]
        %v2356 = vld [vmem:[%s2322 + $0x84] sm:$0xf]
        %v2357 = vld [vmem:[%s2322 + $0x88] sm:$0xf]
        %v2358 = vld [vmem:[%s2322 + $0x8c] sm:$0xf]
        %v2359 = vld [vmem:[%s2322 + $0x90] sm:$0xf]
        %v2360 = vld [vmem:[%s2322 + $0x94] sm:$0xf]
        %v2361 = vld [vmem:[%s2322 + $0x98] sm:$0xf]
        %v2362 = vld [vmem:[%s2322 + $0x9c] sm:$0xf]
        %v2363 = vld [vmem:[%s2322 + $0xa0] sm:$0xf]
        %v2364 = vld [vmem:[%s2322 + $0xa4] sm:$0xf]
        %v2365 = vld [vmem:[%s2322 + $0xa8] sm:$0xf]
        %v2366 = vld [vmem:[%s2322 + $0xac] sm:$0xf]
        %v2367 = vld [vmem:[%s2322 + $0xb0] sm:$0xf]
        %v2368 = vld [vmem:[%s2322 + $0xb4] sm:$0xf]
        %v2369 = vld [vmem:[%s2322 + $0xb8] sm:$0xf]
        %v2370 = vld [vmem:[%s2322 + $0xbc] sm:$0xf]
        %v2371 = vld [vmem:[%s2322 + $0xc0] sm:$0xf]
        %v2372 = vld [vmem:[%s2322 + $0xc4] sm:$0xf]
        %v2373 = vld [vmem:[%s2322 + $0xc8] sm:$0xf]
        %v2374 = vld [vmem:[%s2322 + $0xcc] sm:$0xf]
        %v2375 = vld [vmem:[%s2322 + $0xd0] sm:$0xf]
        %v2376 = vld [vmem:[%s2322 + $0xd4] sm:$0xf]
        %v2377 = vld [vmem:[%s2322 + $0xd8] sm:$0xf]
        %v2378 = vld [vmem:[%s2322 + $0xdc] sm:$0xf]
        %v2379 = vld [vmem:[%s2322 + $0xe0] sm:$0xf]
        %v2380 = vld [vmem:[%s2322 + $0xe4] sm:$0xf]
        %v2381 = vld [vmem:[%s2322 + $0xe8] sm:$0xf]
        %v2382 = vld [vmem:[%s2322 + $0xec] sm:$0xf]
        %v2383 = vld [vmem:[%s2322 + $0xf0] sm:$0xf]
        %v2384 = vld [vmem:[%s2322 + $0xf4] sm:$0xf]
        %v2385 = vld [vmem:[%s2322 + $0xf8] sm:$0xf]
        %v2386 = vld [vmem:[%s2322 + $0xfc] sm:$0xf]
        %v2387 = vld [vmem:[#allocation9 + $0xd] sm:$0x1]
        %v2388 = vld [vmem:[%s717] ss:$2 sm:$0xff]
        %v2389 = vld [vmem:[%s719] ss:$2 sm:$0xff]
        %v2390 = vld [vmem:[%s733] ss:$2 sm:$0xff]
        %v2391 = vld [vmem:[%s735] ss:$2 sm:$0xff]
        %v2392 = vld [vmem:[%s749] ss:$2 sm:$0xff]
        %v2393 = vld [vmem:[%s751] ss:$2 sm:$0xff]
        %v2394 = vld [vmem:[%s765] ss:$2 sm:$0xff]
        %v2395 = vld [vmem:[%s767] ss:$2 sm:$0xff]
        %v2396 = vpack.c.bf16 %v2389, %v2388
        %v2397 = vpack.c.bf16 %v2391, %v2390
        %v2398 = vpack.c.bf16 %v2393, %v2392
        %v2399 = vpack.c.bf16 %v2395, %v2394
        %v2400 = vlaneseq
        %v2401 = vshrl.u32 %v2400, 7
        %v2402 = vsub.s32 0, %v2401
        %v2403 = vrot.slane %v2387, %v2402
        %v2468 = vunpack.c.l.b16 %v2323
        %v2469 = vunpack.c.l.b16 %v2324
        %v2470 = vunpack.c.l.b16 %v2325
        %v2471 = vunpack.c.l.b16 %v2326
        %v2472 = vunpack.c.l.b16 %v2327
        %v2473 = vunpack.c.l.b16 %v2328
        %v2474 = vunpack.c.l.b16 %v2329
        %v2475 = vunpack.c.l.b16 %v2330
        %v2476 = vunpack.c.l.b16 %v2331
        %v2477 = vunpack.c.l.b16 %v2332
        %v2478 = vunpack.c.l.b16 %v2333
        %v2479 = vunpack.c.l.b16 %v2334
        %v2480 = vunpack.c.l.b16 %v2335
        %v2481 = vunpack.c.l.b16 %v2336
        %v2482 = vunpack.c.l.b16 %v2337
        %v2483 = vunpack.c.l.b16 %v2338
        %v2484 = vunpack.c.l.b16 %v2339
        %v2485 = vunpack.c.l.b16 %v2340
        %v2486 = vunpack.c.l.b16 %v2341
        %v2487 = vunpack.c.l.b16 %v2342
        %v2488 = vunpack.c.l.b16 %v2343
        %v2489 = vunpack.c.l.b16 %v2344
        %v2490 = vunpack.c.l.b16 %v2345
        %v2491 = vunpack.c.l.b16 %v2346
        %v2492 = vunpack.c.l.b16 %v2347
        %v2493 = vunpack.c.l.b16 %v2348
        %v2494 = vunpack.c.l.b16 %v2349
        %v2495 = vunpack.c.l.b16 %v2350
        %v2496 = vunpack.c.l.b16 %v2351
        %v2497 = vunpack.c.l.b16 %v2352
        %v2498 = vunpack.c.l.b16 %v2353
        %v2499 = vunpack.c.l.b16 %v2354
        %v2500 = vunpack.c.l.b16 %v2355
        %v2501 = vunpack.c.l.b16 %v2356
        %v2502 = vunpack.c.l.b16 %v2357
        %v2503 = vunpack.c.l.b16 %v2358
        %v2504 = vunpack.c.l.b16 %v2359
        %v2505 = vunpack.c.l.b16 %v2360
        %v2506 = vunpack.c.l.b16 %v2361
        %v2507 = vunpack.c.l.b16 %v2362
        %v2508 = vunpack.c.l.b16 %v2363
        %v2509 = vunpack.c.l.b16 %v2364
        %v2510 = vunpack.c.l.b16 %v2365
        %v2511 = vunpack.c.l.b16 %v2366
        %v2512 = vunpack.c.l.b16 %v2367
        %v2513 = vunpack.c.l.b16 %v2368
        %v2514 = vunpack.c.l.b16 %v2369
        %v2515 = vunpack.c.l.b16 %v2370
        %v2516 = vunpack.c.l.b16 %v2371
        %v2517 = vunpack.c.l.b16 %v2372
        %v2518 = vunpack.c.l.b16 %v2373
        %v2519 = vunpack.c.l.b16 %v2374
        %v2520 = vunpack.c.l.b16 %v2375
        %v2521 = vunpack.c.l.b16 %v2376
        %v2522 = vunpack.c.l.b16 %v2377
        %v2523 = vunpack.c.l.b16 %v2378
        %v2524 = vunpack.c.l.b16 %v2379
        %v2525 = vunpack.c.l.b16 %v2380
        %v2526 = vunpack.c.l.b16 %v2381
        %v2527 = vunpack.c.l.b16 %v2382
        %v2528 = vunpack.c.l.b16 %v2383
        %v2529 = vunpack.c.l.b16 %v2384
        %v2530 = vunpack.c.l.b16 %v2385
        %v2531 = vunpack.c.l.b16 %v2386
        %v2532 = vpack.c.b16 %v2469, %v2468
        %v2533 = vpack.c.b16 %v2471, %v2470
        %v2534 = vpack.c.b16 %v2473, %v2472
        %v2535 = vpack.c.b16 %v2475, %v2474
        %v2536 = vpack.c.b16 %v2477, %v2476
        %v2537 = vpack.c.b16 %v2479, %v2478
        %v2538 = vpack.c.b16 %v2481, %v2480
        %v2539 = vpack.c.b16 %v2483, %v2482
        %v2540 = vpack.c.b16 %v2485, %v2484
        %v2541 = vpack.c.b16 %v2487, %v2486
        %v2542 = vpack.c.b16 %v2489, %v2488
        %v2543 = vpack.c.b16 %v2491, %v2490
        %v2544 = vpack.c.b16 %v2493, %v2492
        %v2545 = vpack.c.b16 %v2495, %v2494
        %v2546 = vpack.c.b16 %v2497, %v2496
        %v2547 = vpack.c.b16 %v2499, %v2498
        %v2548 = vpack.c.b16 %v2501, %v2500
        %v2549 = vpack.c.b16 %v2503, %v2502
        %v2550 = vpack.c.b16 %v2505, %v2504
        %v2551 = vpack.c.b16 %v2507, %v2506
        %v2552 = vpack.c.b16 %v2509, %v2508
        %v2553 = vpack.c.b16 %v2511, %v2510
        %v2554 = vpack.c.b16 %v2513, %v2512
        %v2555 = vpack.c.b16 %v2515, %v2514
        %v2556 = vpack.c.b16 %v2517, %v2516
        %v2557 = vpack.c.b16 %v2519, %v2518
        %v2558 = vpack.c.b16 %v2521, %v2520
        %v2559 = vpack.c.b16 %v2523, %v2522
        %v2560 = vpack.c.b16 %v2525, %v2524
        %v2561 = vpack.c.b16 %v2527, %v2526
        %v2562 = vpack.c.b16 %v2529, %v2528
        %v2563 = vpack.c.b16 %v2531, %v2530
        %2596 = vmatprep.subr.bf16.mxu0 0
        %2597 = vmatpush1.bf16.msra.mxu0 %v2532
        %2598 = vmatprep.subr.bf16.mxu0 0
        %2599 = vmatpush1.bf16.msra.mxu0 %v2533
        %2600 = vmatprep.subr.bf16.mxu0 0
        %2601 = vmatpush1.bf16.msra.mxu0 %v2534
        %2602 = vmatprep.subr.bf16.mxu0 0
        %2603 = vmatpush1.bf16.msra.mxu0 %v2535
        %2604 = vmatprep.subr.bf16.mxu0 0
        %2605 = vmatpush1.bf16.msra.mxu0 %v2536
        %2606 = vmatprep.subr.bf16.mxu0 0
        %2607 = vmatpush1.bf16.msra.mxu0 %v2537
        %2608 = vmatprep.subr.bf16.mxu0 0
        %2609 = vmatpush1.bf16.msra.mxu0 %v2538
        %2610 = vmatprep.subr.bf16.mxu0 0
        %2611 = vmatpush1.bf16.msra.mxu0 %v2539
        %2612 = vmatprep.subr.bf16.mxu0 0
        %2613 = vmatpush1.bf16.msra.mxu0 %v2540
        %2614 = vmatprep.subr.bf16.mxu0 0
        %2615 = vmatpush1.bf16.msra.mxu0 %v2541
        %2616 = vmatprep.subr.bf16.mxu0 0
        %2617 = vmatpush1.bf16.msra.mxu0 %v2542
        %2618 = vmatprep.subr.bf16.mxu0 0
        %2619 = vmatpush1.bf16.msra.mxu0 %v2543
        %2620 = vmatprep.subr.bf16.mxu0 0
        %2621 = vmatpush1.bf16.msra.mxu0 %v2544
        %2622 = vmatprep.subr.bf16.mxu0 0
        %2623 = vmatpush1.bf16.msra.mxu0 %v2545
        %2624 = vmatprep.subr.bf16.mxu0 0
        %2625 = vmatpush1.bf16.msra.mxu0 %v2546
        %2626 = vmatprep.subr.bf16.mxu0 0
        %2627 = vmatpush1.bf16.msra.mxu0 %v2547
        %2628 = vmatprep.mubr.bf16.mxu0 %v2397
        %2629 = vmatmul.mubr.bf16.gmra.mrb[0].mxu0 %v2396
        %v2630 = vpop.f32.mrb[0].mxu0
        %v2631 = vadd.f32 %v2403, %v2630
        %v2632 = vpop.f32.mrb[0].mxu0
        %v2633 = vpop.f32.mrb[0].mxu0
        %v2634 = vadd.f32 %v2403, %v2633
        %v2635 = vpop.f32.mrb[0].mxu0
        %2636 = vdwg.mxu0
        %2637 = vmatprep.subr.bf16.mxu0 0
        %2638 = vmatpush1.bf16.msra.mxu0 %v2548
        %2639 = vmatprep.subr.bf16.mxu0 0
        %2640 = vmatpush1.bf16.msra.mxu0 %v2549
        %2641 = vmatprep.subr.bf16.mxu0 0
        %2642 = vmatpush1.bf16.msra.mxu0 %v2550
        %2643 = vmatprep.subr.bf16.mxu0 0
        %2644 = vmatpush1.bf16.msra.mxu0 %v2551
        %2645 = vmatprep.subr.bf16.mxu0 0
        %2646 = vmatpush1.bf16.msra.mxu0 %v2552
        %2647 = vmatprep.subr.bf16.mxu0 0
        %2648 = vmatpush1.bf16.msra.mxu0 %v2553
        %2649 = vmatprep.subr.bf16.mxu0 0
        %2650 = vmatpush1.bf16.msra.mxu0 %v2554
        %2651 = vmatprep.subr.bf16.mxu0 0
        %2652 = vmatpush1.bf16.msra.mxu0 %v2555
        %2653 = vmatprep.subr.bf16.mxu0 0
        %2654 = vmatpush1.bf16.msra.mxu0 %v2556
        %2655 = vmatprep.subr.bf16.mxu0 0
        %2656 = vmatpush1.bf16.msra.mxu0 %v2557
        %2657 = vmatprep.subr.bf16.mxu0 0
        %2658 = vmatpush1.bf16.msra.mxu0 %v2558
        %2659 = vmatprep.subr.bf16.mxu0 0
        %2660 = vmatpush1.bf16.msra.mxu0 %v2559
        %2661 = vmatprep.subr.bf16.mxu0 0
        %2662 = vmatpush1.bf16.msra.mxu0 %v2560
        %2663 = vmatprep.subr.bf16.mxu0 0
        %2664 = vmatpush1.bf16.msra.mxu0 %v2561
        %2665 = vmatprep.subr.bf16.mxu0 0
        %2666 = vmatpush1.bf16.msra.mxu0 %v2562
        %2667 = vmatprep.subr.bf16.mxu0 0
        %2668 = vmatpush1.bf16.msra.mxu0 %v2563
        %2669 = vmatprep.mubr.bf16.mxu0 %v2399
        %2670 = vmatmul.mubr.bf16.gmra.mrb[0].mxu0 %v2398
        %v2671 = vpop.f32.mrb[0].mxu0
        %v2672 = vadd.f32 %v2631, %v2671
        %v2673 = vpop.f32.mrb[0].mxu0
        %v2674 = vpop.f32.mrb[0].mxu0
        %v2675 = vadd.f32 %v2634, %v2674
        %v2676 = vpop.f32.mrb[0].mxu0
        %2677 = vdwg.mxu0
        %s2678 = scalar_lea.vmem [#allocation6], 1024
        %v2679 = vld [vmem:[%s2678] sm:$0xf]
        %v2680 = vld [vmem:[%s2678 + $0x4] sm:$0xf]
        %v2681 = vld [vmem:[%s2678 + $0x8] sm:$0xf]
        %v2682 = vld [vmem:[%s2678 + $0xc] sm:$0xf]
        %v2683 = vld [vmem:[%s2678 + $0x10] sm:$0xf]
        %v2684 = vld [vmem:[%s2678 + $0x14] sm:$0xf]
        %v2685 = vld [vmem:[%s2678 + $0x18] sm:$0xf]
        %v2686 = vld [vmem:[%s2678 + $0x1c] sm:$0xf]
        %v2687 = vld [vmem:[%s2678 + $0x20] sm:$0xf]
        %v2688 = vld [vmem:[%s2678 + $0x24] sm:$0xf]
        %v2689 = vld [vmem:[%s2678 + $0x28] sm:$0xf]
        %v2690 = vld [vmem:[%s2678 + $0x2c] sm:$0xf]
        %v2691 = vld [vmem:[%s2678 + $0x30] sm:$0xf]
        %v2692 = vld [vmem:[%s2678 + $0x34] sm:$0xf]
        %v2693 = vld [vmem:[%s2678 + $0x38] sm:$0xf]
        %v2694 = vld [vmem:[%s2678 + $0x3c] sm:$0xf]
        %v2695 = vld [vmem:[%s2678 + $0x40] sm:$0xf]
        %v2696 = vld [vmem:[%s2678 + $0x44] sm:$0xf]
        %v2697 = vld [vmem:[%s2678 + $0x48] sm:$0xf]
        %v2698 = vld [vmem:[%s2678 + $0x4c] sm:$0xf]
        %v2699 = vld [vmem:[%s2678 + $0x50] sm:$0xf]
        %v2700 = vld [vmem:[%s2678 + $0x54] sm:$0xf]
        %v2701 = vld [vmem:[%s2678 + $0x58] sm:$0xf]
        %v2702 = vld [vmem:[%s2678 + $0x5c] sm:$0xf]
        %v2703 = vld [vmem:[%s2678 + $0x60] sm:$0xf]
        %v2704 = vld [vmem:[%s2678 + $0x64] sm:$0xf]
        %v2705 = vld [vmem:[%s2678 + $0x68] sm:$0xf]
        %v2706 = vld [vmem:[%s2678 + $0x6c] sm:$0xf]
        %v2707 = vld [vmem:[%s2678 + $0x70] sm:$0xf]
        %v2708 = vld [vmem:[%s2678 + $0x74] sm:$0xf]
        %v2709 = vld [vmem:[%s2678 + $0x78] sm:$0xf]
        %v2710 = vld [vmem:[%s2678 + $0x7c] sm:$0xf]
        %v2711 = vld [vmem:[%s2678 + $0x80] sm:$0xf]
        %v2712 = vld [vmem:[%s2678 + $0x84] sm:$0xf]
        %v2713 = vld [vmem:[%s2678 + $0x88] sm:$0xf]
        %v2714 = vld [vmem:[%s2678 + $0x8c] sm:$0xf]
        %v2715 = vld [vmem:[%s2678 + $0x90] sm:$0xf]
        %v2716 = vld [vmem:[%s2678 + $0x94] sm:$0xf]
        %v2717 = vld [vmem:[%s2678 + $0x98] sm:$0xf]
        %v2718 = vld [vmem:[%s2678 + $0x9c] sm:$0xf]
        %v2719 = vld [vmem:[%s2678 + $0xa0] sm:$0xf]
        %v2720 = vld [vmem:[%s2678 + $0xa4] sm:$0xf]
        %v2721 = vld [vmem:[%s2678 + $0xa8] sm:$0xf]
        %v2722 = vld [vmem:[%s2678 + $0xac] sm:$0xf]
        %v2723 = vld [vmem:[%s2678 + $0xb0] sm:$0xf]
        %v2724 = vld [vmem:[%s2678 + $0xb4] sm:$0xf]
        %v2725 = vld [vmem:[%s2678 + $0xb8] sm:$0xf]
        %v2726 = vld [vmem:[%s2678 + $0xbc] sm:$0xf]
        %v2727 = vld [vmem:[%s2678 + $0xc0] sm:$0xf]
        %v2728 = vld [vmem:[%s2678 + $0xc4] sm:$0xf]
        %v2729 = vld [vmem:[%s2678 + $0xc8] sm:$0xf]
        %v2730 = vld [vmem:[%s2678 + $0xcc] sm:$0xf]
        %v2731 = vld [vmem:[%s2678 + $0xd0] sm:$0xf]
        %v2732 = vld [vmem:[%s2678 + $0xd4] sm:$0xf]
        %v2733 = vld [vmem:[%s2678 + $0xd8] sm:$0xf]
        %v2734 = vld [vmem:[%s2678 + $0xdc] sm:$0xf]
        %v2735 = vld [vmem:[%s2678 + $0xe0] sm:$0xf]
        %v2736 = vld [vmem:[%s2678 + $0xe4] sm:$0xf]
        %v2737 = vld [vmem:[%s2678 + $0xe8] sm:$0xf]
        %v2738 = vld [vmem:[%s2678 + $0xec] sm:$0xf]
        %v2739 = vld [vmem:[%s2678 + $0xf0] sm:$0xf]
        %v2740 = vld [vmem:[%s2678 + $0xf4] sm:$0xf]
        %v2741 = vld [vmem:[%s2678 + $0xf8] sm:$0xf]
        %v2742 = vld [vmem:[%s2678 + $0xfc] sm:$0xf]
        %v2743 = vld [vmem:[#allocation9 + $0xe] sm:$0x1]
        %v2744 = vld [vmem:[%s1799] ss:$2 sm:$0xff]
        %v2745 = vld [vmem:[%s1801] ss:$2 sm:$0xff]
        %v2746 = vld [vmem:[%s1807] ss:$2 sm:$0xff]
        %v2747 = vld [vmem:[%s1809] ss:$2 sm:$0xff]
        %v2748 = vld [vmem:[%s1815] ss:$2 sm:$0xff]
        %v2749 = vld [vmem:[%s1817] ss:$2 sm:$0xff]
        %v2750 = vld [vmem:[%s1823] ss:$2 sm:$0xff]
        %v2751 = vld [vmem:[%s1825] ss:$2 sm:$0xff]
        %v2752 = vpack.c.bf16 %v2745, %v2744
        %v2753 = vpack.c.bf16 %v2747, %v2746
        %v2754 = vpack.c.bf16 %v2749, %v2748
        %v2755 = vpack.c.bf16 %v2751, %v2750
        %v2756 = vlaneseq
        %v2757 = vshrl.u32 %v2756, 7
        %v2758 = vsub.s32 0, %v2757
        %v2759 = vrot.slane %v2743, %v2758
        %v2824 = vunpack.c.l.b16 %v2679
        %v2825 = vunpack.c.l.b16 %v2680
        %v2826 = vunpack.c.l.b16 %v2681
        %v2827 = vunpack.c.l.b16 %v2682
        %v2828 = vunpack.c.l.b16 %v2683
        %v2829 = vunpack.c.l.b16 %v2684
        %v2830 = vunpack.c.l.b16 %v2685
        %v2831 = vunpack.c.l.b16 %v2686
        %v2832 = vunpack.c.l.b16 %v2687
        %v2833 = vunpack.c.l.b16 %v2688
        %v2834 = vunpack.c.l.b16 %v2689
        %v2835 = vunpack.c.l.b16 %v2690
        %v2836 = vunpack.c.l.b16 %v2691
        %v2837 = vunpack.c.l.b16 %v2692
        %v2838 = vunpack.c.l.b16 %v2693
        %v2839 = vunpack.c.l.b16 %v2694
        %v2840 = vunpack.c.l.b16 %v2695
        %v2841 = vunpack.c.l.b16 %v2696
        %v2842 = vunpack.c.l.b16 %v2697
        %v2843 = vunpack.c.l.b16 %v2698
        %v2844 = vunpack.c.l.b16 %v2699
        %v2845 = vunpack.c.l.b16 %v2700
        %v2846 = vunpack.c.l.b16 %v2701
        %v2847 = vunpack.c.l.b16 %v2702
        %v2848 = vunpack.c.l.b16 %v2703
        %v2849 = vunpack.c.l.b16 %v2704
        %v2850 = vunpack.c.l.b16 %v2705
        %v2851 = vunpack.c.l.b16 %v2706
        %v2852 = vunpack.c.l.b16 %v2707
        %v2853 = vunpack.c.l.b16 %v2708
        %v2854 = vunpack.c.l.b16 %v2709
        %v2855 = vunpack.c.l.b16 %v2710
        %v2856 = vunpack.c.l.b16 %v2711
        %v2857 = vunpack.c.l.b16 %v2712
        %v2858 = vunpack.c.l.b16 %v2713
        %v2859 = vunpack.c.l.b16 %v2714
        %v2860 = vunpack.c.l.b16 %v2715
        %v2861 = vunpack.c.l.b16 %v2716
        %v2862 = vunpack.c.l.b16 %v2717
        %v2863 = vunpack.c.l.b16 %v2718
        %v2864 = vunpack.c.l.b16 %v2719
        %v2865 = vunpack.c.l.b16 %v2720
        %v2866 = vunpack.c.l.b16 %v2721
        %v2867 = vunpack.c.l.b16 %v2722
        %v2868 = vunpack.c.l.b16 %v2723
        %v2869 = vunpack.c.l.b16 %v2724
        %v2870 = vunpack.c.l.b16 %v2725
        %v2871 = vunpack.c.l.b16 %v2726
        %v2872 = vunpack.c.l.b16 %v2727
        %v2873 = vunpack.c.l.b16 %v2728
        %v2874 = vunpack.c.l.b16 %v2729
        %v2875 = vunpack.c.l.b16 %v2730
        %v2876 = vunpack.c.l.b16 %v2731
        %v2877 = vunpack.c.l.b16 %v2732
        %v2878 = vunpack.c.l.b16 %v2733
        %v2879 = vunpack.c.l.b16 %v2734
        %v2880 = vunpack.c.l.b16 %v2735
        %v2881 = vunpack.c.l.b16 %v2736
        %v2882 = vunpack.c.l.b16 %v2737
        %v2883 = vunpack.c.l.b16 %v2738
        %v2884 = vunpack.c.l.b16 %v2739
        %v2885 = vunpack.c.l.b16 %v2740
        %v2886 = vunpack.c.l.b16 %v2741
        %v2887 = vunpack.c.l.b16 %v2742
        %v2888 = vpack.c.b16 %v2825, %v2824
        %v2889 = vpack.c.b16 %v2827, %v2826
        %v2890 = vpack.c.b16 %v2829, %v2828
        %v2891 = vpack.c.b16 %v2831, %v2830
        %v2892 = vpack.c.b16 %v2833, %v2832
        %v2893 = vpack.c.b16 %v2835, %v2834
        %v2894 = vpack.c.b16 %v2837, %v2836
        %v2895 = vpack.c.b16 %v2839, %v2838
        %v2896 = vpack.c.b16 %v2841, %v2840
        %v2897 = vpack.c.b16 %v2843, %v2842
        %v2898 = vpack.c.b16 %v2845, %v2844
        %v2899 = vpack.c.b16 %v2847, %v2846
        %v2900 = vpack.c.b16 %v2849, %v2848
        %v2901 = vpack.c.b16 %v2851, %v2850
        %v2902 = vpack.c.b16 %v2853, %v2852
        %v2903 = vpack.c.b16 %v2855, %v2854
        %v2904 = vpack.c.b16 %v2857, %v2856
        %v2905 = vpack.c.b16 %v2859, %v2858
        %v2906 = vpack.c.b16 %v2861, %v2860
        %v2907 = vpack.c.b16 %v2863, %v2862
        %v2908 = vpack.c.b16 %v2865, %v2864
        %v2909 = vpack.c.b16 %v2867, %v2866
        %v2910 = vpack.c.b16 %v2869, %v2868
        %v2911 = vpack.c.b16 %v2871, %v2870
        %v2912 = vpack.c.b16 %v2873, %v2872
        %v2913 = vpack.c.b16 %v2875, %v2874
        %v2914 = vpack.c.b16 %v2877, %v2876
        %v2915 = vpack.c.b16 %v2879, %v2878
        %v2916 = vpack.c.b16 %v2881, %v2880
        %v2917 = vpack.c.b16 %v2883, %v2882
        %v2918 = vpack.c.b16 %v2885, %v2884
        %v2919 = vpack.c.b16 %v2887, %v2886
        %2952 = vmatprep.subr.bf16.mxu0 0
        %2953 = vmatpush1.bf16.msra.mxu0 %v2888
        %2954 = vmatprep.subr.bf16.mxu0 0
        %2955 = vmatpush1.bf16.msra.mxu0 %v2889
        %2956 = vmatprep.subr.bf16.mxu0 0
        %2957 = vmatpush1.bf16.msra.mxu0 %v2890
        %2958 = vmatprep.subr.bf16.mxu0 0
        %2959 = vmatpush1.bf16.msra.mxu0 %v2891
        %2960 = vmatprep.subr.bf16.mxu0 0
        %2961 = vmatpush1.bf16.msra.mxu0 %v2892
        %2962 = vmatprep.subr.bf16.mxu0 0
        %2963 = vmatpush1.bf16.msra.mxu0 %v2893
        %2964 = vmatprep.subr.bf16.mxu0 0
        %2965 = vmatpush1.bf16.msra.mxu0 %v2894
        %2966 = vmatprep.subr.bf16.mxu0 0
        %2967 = vmatpush1.bf16.msra.mxu0 %v2895
        %2968 = vmatprep.subr.bf16.mxu0 0
        %2969 = vmatpush1.bf16.msra.mxu0 %v2896
        %2970 = vmatprep.subr.bf16.mxu0 0
        %2971 = vmatpush1.bf16.msra.mxu0 %v2897
        %2972 = vmatprep.subr.bf16.mxu0 0
        %2973 = vmatpush1.bf16.msra.mxu0 %v2898
        %2974 = vmatprep.subr.bf16.mxu0 0
        %2975 = vmatpush1.bf16.msra.mxu0 %v2899
        %2976 = vmatprep.subr.bf16.mxu0 0
        %2977 = vmatpush1.bf16.msra.mxu0 %v2900
        %2978 = vmatprep.subr.bf16.mxu0 0
        %2979 = vmatpush1.bf16.msra.mxu0 %v2901
        %2980 = vmatprep.subr.bf16.mxu0 0
        %2981 = vmatpush1.bf16.msra.mxu0 %v2902
        %2982 = vmatprep.subr.bf16.mxu0 0
        %2983 = vmatpush1.bf16.msra.mxu0 %v2903
        %2984 = vmatprep.mubr.bf16.mxu0 %v2753
        %2985 = vmatmul.mubr.bf16.gmra.mrb[0].mxu0 %v2752
        %v2986 = vpop.f32.mrb[0].mxu0
        %v2987 = vadd.f32 %v2759, %v2986
        %v2988 = vpop.f32.mrb[0].mxu0
        %v2989 = vpop.f32.mrb[0].mxu0
        %v2990 = vadd.f32 %v2759, %v2989
        %v2991 = vpop.f32.mrb[0].mxu0
        %2992 = vdwg.mxu0
        %2993 = vmatprep.subr.bf16.mxu0 0
        %2994 = vmatpush1.bf16.msra.mxu0 %v2904
        %2995 = vmatprep.subr.bf16.mxu0 0
        %2996 = vmatpush1.bf16.msra.mxu0 %v2905
        %2997 = vmatprep.subr.bf16.mxu0 0
        %2998 = vmatpush1.bf16.msra.mxu0 %v2906
        %2999 = vmatprep.subr.bf16.mxu0 0
        %3000 = vmatpush1.bf16.msra.mxu0 %v2907
        %3001 = vmatprep.subr.bf16.mxu0 0
        %3002 = vmatpush1.bf16.msra.mxu0 %v2908
        %3003 = vmatprep.subr.bf16.mxu0 0
        %3004 = vmatpush1.bf16.msra.mxu0 %v2909
        %3005 = vmatprep.subr.bf16.mxu0 0
        %3006 = vmatpush1.bf16.msra.mxu0 %v2910
        %3007 = vmatprep.subr.bf16.mxu0 0
        %3008 = vmatpush1.bf16.msra.mxu0 %v2911
        %3009 = vmatprep.subr.bf16.mxu0 0
        %3010 = vmatpush1.bf16.msra.mxu0 %v2912
        %3011 = vmatprep.subr.bf16.mxu0 0
        %3012 = vmatpush1.bf16.msra.mxu0 %v2913
        %3013 = vmatprep.subr.bf16.mxu0 0
        %3014 = vmatpush1.bf16.msra.mxu0 %v2914
        %3015 = vmatprep.subr.bf16.mxu0 0
        %3016 = vmatpush1.bf16.msra.mxu0 %v2915
        %3017 = vmatprep.subr.bf16.mxu0 0
        %3018 = vmatpush1.bf16.msra.mxu0 %v2916
        %3019 = vmatprep.subr.bf16.mxu0 0
        %3020 = vmatpush1.bf16.msra.mxu0 %v2917
        %3021 = vmatprep.subr.bf16.mxu0 0
        %3022 = vmatpush1.bf16.msra.mxu0 %v2918
        %3023 = vmatprep.subr.bf16.mxu0 0
        %3024 = vmatpush1.bf16.msra.mxu0 %v2919
        %3025 = vmatprep.mubr.bf16.mxu0 %v2755
        %3026 = vmatmul.mubr.bf16.gmra.mrb[0].mxu0 %v2754
        %v3027 = vpop.f32.mrb[0].mxu0
        %v3028 = vadd.f32 %v2987, %v3027
        %v3029 = vpop.f32.mrb[0].mxu0
        %v3030 = vpop.f32.mrb[0].mxu0
        %v3031 = vadd.f32 %v2990, %v3030
        %v3032 = vpop.f32.mrb[0].mxu0
        %3033 = vdwg.mxu0
        %v3034 = vmul.f32 %v3028, 2.0
        %v3035 = vmul.f32 %v3031, 2.0
        %v3036 = vmul.f32 %v2672, 0.3
        %v3037 = vmul.f32 %v2675, 0.3
        %v3038 = vadd.f32 %v3034, %v3036
        %v3039 = vadd.f32 %v3035, %v3037
        %v3040 = vld [vmem:[#allocation9 + $0xf] sm:$0x1]
        %v3041 = vlaneseq
        %v3042 = vshrl.u32 %v3041, 7
        %v3043 = vsub.s32 0, %v3042
        %v3044 = vrot.slane %v3040, %v3043
        %v3045 = vmul.f32 %v3038, %v3044
        %v3046 = vmul.f32 %v3039, %v3044
        %v3047 = vld [vmem:[#allocation9 + $0x10] sm:$0x1]
        %v3048 = vlaneseq
        %v3049 = vshrl.u32 %v3048, 7
        %v3050 = vsub.s32 0, %v3049
        %v3051 = vrot.slane %v3047, %v3050
        %v3052 = vadd.f32 %v3045, %v3051
        %v3053 = vadd.f32 %v3046, %v3051
        %v3054 = vmax.f32 %v3052, 0.0
        %v3055 = vmax.f32 %v3053, 0.0
        %v3056 = vpack.c.bf16 %v3055, %v3054
        %s3057 = scalar_lea.vmem [#allocation8], 128
        %v3058 = vld [vmem:[%s3057] sm:$0xf]
        %v3059 = vld [vmem:[%s3057 + $0x4] sm:$0xf]
        %v3060 = vld [vmem:[%s3057 + $0x8] sm:$0xf]
        %v3061 = vld [vmem:[%s3057 + $0xc] sm:$0xf]
        %v3062 = vld [vmem:[%s3057 + $0x10] sm:$0xf]
        %v3063 = vld [vmem:[%s3057 + $0x14] sm:$0xf]
        %v3064 = vld [vmem:[%s3057 + $0x18] sm:$0xf]
        %v3065 = vld [vmem:[%s3057 + $0x1c] sm:$0xf]
        %v3066 = vld [vmem:[%s3057 + $0x20] sm:$0xf]
        %v3067 = vld [vmem:[%s3057 + $0x24] sm:$0xf]
        %v3068 = vld [vmem:[%s3057 + $0x28] sm:$0xf]
        %v3069 = vld [vmem:[%s3057 + $0x2c] sm:$0xf]
        %v3070 = vld [vmem:[%s3057 + $0x30] sm:$0xf]
        %v3071 = vld [vmem:[%s3057 + $0x34] sm:$0xf]
        %v3072 = vld [vmem:[%s3057 + $0x38] sm:$0xf]
        %v3073 = vld [vmem:[%s3057 + $0x3c] sm:$0xf]
        %v3074 = vld [vmem:[#allocation9 + $0x11] sm:$0x1]
        %v3075 = vlaneseq
        %v3076 = vshrl.u32 %v3075, 7
        %v3077 = vsub.s32 0, %v3076
        %v3078 = vrot.slane %v3074, %v3077
        %v3095 = vunpack.c.l.b16 %v3058
        %v3096 = vunpack.c.l.b16 %v3059
        %v3097 = vunpack.c.l.b16 %v3060
        %v3098 = vunpack.c.l.b16 %v3061
        %v3099 = vunpack.c.l.b16 %v3062
        %v3100 = vunpack.c.l.b16 %v3063
        %v3101 = vunpack.c.l.b16 %v3064
        %v3102 = vunpack.c.l.b16 %v3065
        %v3103 = vunpack.c.l.b16 %v3066
        %v3104 = vunpack.c.l.b16 %v3067
        %v3105 = vunpack.c.l.b16 %v3068
        %v3106 = vunpack.c.l.b16 %v3069
        %v3107 = vunpack.c.l.b16 %v3070
        %v3108 = vunpack.c.l.b16 %v3071
        %v3109 = vunpack.c.l.b16 %v3072
        %v3110 = vunpack.c.l.b16 %v3073
        %v3111 = vpack.c.b16 %v3096, %v3095
        %v3112 = vpack.c.b16 %v3098, %v3097
        %v3113 = vpack.c.b16 %v3100, %v3099
        %v3114 = vpack.c.b16 %v3102, %v3101
        %v3115 = vpack.c.b16 %v3104, %v3103
        %v3116 = vpack.c.b16 %v3106, %v3105
        %v3117 = vpack.c.b16 %v3108, %v3107
        %v3118 = vpack.c.b16 %v3110, %v3109
        %3127 = vmatprep.subr.bf16.mxu0 0
        %3128 = vmatpush1.bf16.msra.mxu0 %v3111
        %3129 = vmatprep.subr.bf16.mxu0 0
        %3130 = vmatpush1.bf16.msra.mxu0 %v3112
        %3131 = vmatprep.subr.bf16.mxu0 0
        %3132 = vmatpush1.bf16.msra.mxu0 %v3113
        %3133 = vmatprep.subr.bf16.mxu0 0
        %3134 = vmatpush1.bf16.msra.mxu0 %v3114
        %3135 = vmatprep.subr.bf16.mxu0 0
        %3136 = vmatpush1.bf16.msra.mxu0 %v3115
        %3137 = vmatprep.subr.bf16.mxu0 0
        %3138 = vmatpush1.bf16.msra.mxu0 %v3116
        %3139 = vmatprep.subr.bf16.mxu0 0
        %3140 = vmatpush1.bf16.msra.mxu0 %v3117
        %3141 = vmatprep.subr.bf16.mxu0 0
        %3142 = vmatpush1.bf16.msra.mxu0 %v3118
        %3143 = vmatprep.subr.bf16.mxu0 0
        %3144 = vmatpush1.bf16.msra.mxu0 0
        %3145 = vmatprep.subr.bf16.mxu0 0
        %3146 = vmatpush1.bf16.msra.mxu0 0
        %3147 = vmatprep.subr.bf16.mxu0 0
        %3148 = vmatpush1.bf16.msra.mxu0 0
        %3149 = vmatprep.subr.bf16.mxu0 0
        %3150 = vmatpush1.bf16.msra.mxu0 0
        %3151 = vmatprep.subr.bf16.mxu0 0
        %3152 = vmatpush1.bf16.msra.mxu0 0
        %3153 = vmatprep.subr.bf16.mxu0 0
        %3154 = vmatpush1.bf16.msra.mxu0 0
        %3155 = vmatprep.subr.bf16.mxu0 0
        %3156 = vmatpush1.bf16.msra.mxu0 0
        %3157 = vmatprep.subr.bf16.mxu0 0
        %3158 = vmatpush1.bf16.msra.mxu0 0
        %3159 = vmatprep.mubr.bf16.mxu0 0
        %3160 = vmatmul.mubr.bf16.gmra.mrb[0].mxu0 %v3056
        %v3161 = vpop.f32.mrb[0].mxu0
        %v3162 = vadd.f32 %v3078, %v3161
        %v3163 = vpop.f32.mrb[0].mxu0
        %v3164 = vpop.f32.mrb[0].mxu0
        %v3165 = vadd.f32 %v3078, %v3164
        %v3166 = vpop.f32.mrb[0].mxu0
        %3167 = vdwg.mxu0
        %v3168 = vld [vmem:[#allocation9 + $0x12] sm:$0x1]
        %v3169 = vlaneseq
        %v3170 = vshrl.u32 %v3169, 7
        %v3171 = vsub.s32 0, %v3170
        %v3172 = vrot.slane %v3168, %v3171
        %v3173 = vmul.f32 %v3162, %v3172
        %v3174 = vmul.f32 %v3165, %v3172
        %v3175 = vld [vmem:[#allocation9 + $0x13] sm:$0x1]
        %v3176 = vlaneseq
        %v3177 = vshrl.u32 %v3176, 7
        %v3178 = vsub.s32 0, %v3177
        %v3179 = vrot.slane %v3175, %v3178
        %v3180 = vadd.f32 %v3173, %v3179
        %v3181 = vadd.f32 %v3174, %v3179
        %v3182 = vmax.f32 %v3180, 0.0
        %v3183 = vmax.f32 %v3181, 0.0
        %3184 = vst [vmem:[#allocation2 + $0x7] sm:$0x1] 0.0
        %3185 = vst [vmem:[#allocation2 + $0x18] sm:$0x1] 0.0
        %3186 = vst [vmem:[#allocation2 + $0x8] sm:$0xff] %v3182
        %3187 = vst [vmem:[#allocation2 + $0x10] sm:$0xff] %v3183
        %3188 = vst [vmem:[#allocation3 + $0x7] sm:$0x1] 0.0
        %3189 = vst [vmem:[#allocation3 + $0x18] sm:$0x1] 0.0
        %3190 = vst [vmem:[#allocation3 + $0x8] sm:$0xff] %v3038
        %3191 = vst [vmem:[#allocation3 + $0x10] sm:$0xff] %v3039
        %s3192 = scalar_lea.vmem [#allocation6], 1280
        %v3193 = vld [vmem:[%s3192] sm:$0xf]
        %v3194 = vld [vmem:[%s3192 + $0x4] sm:$0xf]
        %v3195 = vld [vmem:[%s3192 + $0x8] sm:$0xf]
        %v3196 = vld [vmem:[%s3192 + $0xc] sm:$0xf]
        %v3197 = vld [vmem:[%s3192 + $0x10] sm:$0xf]
        %v3198 = vld [vmem:[%s3192 + $0x14] sm:$0xf]
        %v3199 = vld [vmem:[%s3192 + $0x18] sm:$0xf]
        %v3200 = vld [vmem:[%s3192 + $0x1c] sm:$0xf]
        %v3201 = vld [vmem:[%s3192 + $0x20] sm:$0xf]
        %v3202 = vld [vmem:[%s3192 + $0x24] sm:$0xf]
        %v3203 = vld [vmem:[%s3192 + $0x28] sm:$0xf]
        %v3204 = vld [vmem:[%s3192 + $0x2c] sm:$0xf]
        %v3205 = vld [vmem:[%s3192 + $0x30] sm:$0xf]
        %v3206 = vld [vmem:[%s3192 + $0x34] sm:$0xf]
        %v3207 = vld [vmem:[%s3192 + $0x38] sm:$0xf]
        %v3208 = vld [vmem:[%s3192 + $0x3c] sm:$0xf]
        %v3209 = vld [vmem:[%s3192 + $0x40] sm:$0xf]
        %v3210 = vld [vmem:[%s3192 + $0x44] sm:$0xf]
        %v3211 = vld [vmem:[%s3192 + $0x48] sm:$0xf]
        %v3212 = vld [vmem:[%s3192 + $0x4c] sm:$0xf]
        %v3213 = vld [vmem:[%s3192 + $0x50] sm:$0xf]
        %v3214 = vld [vmem:[%s3192 + $0x54] sm:$0xf]
        %v3215 = vld [vmem:[%s3192 + $0x58] sm:$0xf]
        %v3216 = vld [vmem:[%s3192 + $0x5c] sm:$0xf]
        %v3217 = vld [vmem:[%s3192 + $0x60] sm:$0xf]
        %v3218 = vld [vmem:[%s3192 + $0x64] sm:$0xf]
        %v3219 = vld [vmem:[%s3192 + $0x68] sm:$0xf]
        %v3220 = vld [vmem:[%s3192 + $0x6c] sm:$0xf]
        %v3221 = vld [vmem:[%s3192 + $0x70] sm:$0xf]
        %v3222 = vld [vmem:[%s3192 + $0x74] sm:$0xf]
        %v3223 = vld [vmem:[%s3192 + $0x78] sm:$0xf]
        %v3224 = vld [vmem:[%s3192 + $0x7c] sm:$0xf]
        %v3225 = vld [vmem:[%s3192 + $0x80] sm:$0xf]
        %v3226 = vld [vmem:[%s3192 + $0x84] sm:$0xf]
        %v3227 = vld [vmem:[%s3192 + $0x88] sm:$0xf]
        %v3228 = vld [vmem:[%s3192 + $0x8c] sm:$0xf]
        %v3229 = vld [vmem:[%s3192 + $0x90] sm:$0xf]
        %v3230 = vld [vmem:[%s3192 + $0x94] sm:$0xf]
        %v3231 = vld [vmem:[%s3192 + $0x98] sm:$0xf]
        %v3232 = vld [vmem:[%s3192 + $0x9c] sm:$0xf]
        %v3233 = vld [vmem:[%s3192 + $0xa0] sm:$0xf]
        %v3234 = vld [vmem:[%s3192 + $0xa4] sm:$0xf]
        %v3235 = vld [vmem:[%s3192 + $0xa8] sm:$0xf]
        %v3236 = vld [vmem:[%s3192 + $0xac] sm:$0xf]
        %v3237 = vld [vmem:[%s3192 + $0xb0] sm:$0xf]
        %v3238 = vld [vmem:[%s3192 + $0xb4] sm:$0xf]
        %v3239 = vld [vmem:[%s3192 + $0xb8] sm:$0xf]
        %v3240 = vld [vmem:[%s3192 + $0xbc] sm:$0xf]
        %v3241 = vld [vmem:[%s3192 + $0xc0] sm:$0xf]
        %v3242 = vld [vmem:[%s3192 + $0xc4] sm:$0xf]
        %v3243 = vld [vmem:[%s3192 + $0xc8] sm:$0xf]
        %v3244 = vld [vmem:[%s3192 + $0xcc] sm:$0xf]
        %v3245 = vld [vmem:[%s3192 + $0xd0] sm:$0xf]
        %v3246 = vld [vmem:[%s3192 + $0xd4] sm:$0xf]
        %v3247 = vld [vmem:[%s3192 + $0xd8] sm:$0xf]
        %v3248 = vld [vmem:[%s3192 + $0xdc] sm:$0xf]
        %v3249 = vld [vmem:[%s3192 + $0xe0] sm:$0xf]
        %v3250 = vld [vmem:[%s3192 + $0xe4] sm:$0xf]
        %v3251 = vld [vmem:[%s3192 + $0xe8] sm:$0xf]
        %v3252 = vld [vmem:[%s3192 + $0xec] sm:$0xf]
        %v3253 = vld [vmem:[%s3192 + $0xf0] sm:$0xf]
        %v3254 = vld [vmem:[%s3192 + $0xf4] sm:$0xf]
        %v3255 = vld [vmem:[%s3192 + $0xf8] sm:$0xf]
        %v3256 = vld [vmem:[%s3192 + $0xfc] sm:$0xf]
        %v3257 = vld [vmem:[#allocation9 + $0x14] sm:$0x1]
        %v3258 = vld [vmem:[%s717] ss:$2 sm:$0xff]
        %v3259 = vld [vmem:[%s733] ss:$2 sm:$0xff]
        %v3260 = vld [vmem:[%s749] ss:$2 sm:$0xff]
        %v3261 = vld [vmem:[%s765] ss:$2 sm:$0xff]
        %v3262 = vpack.c.bf16 %v3258, %v3258
        %v3263 = vpack.c.bf16 %v3259, %v3259
        %v3264 = vpack.c.bf16 %v3260, %v3260
        %v3265 = vpack.c.bf16 %v3261, %v3261
        %v3266 = vlaneseq
        %v3267 = vshrl.u32 %v3266, 7
        %v3268 = vsub.s32 0, %v3267
        %v3269 = vrot.slane %v3257, %v3268
        %v3334 = vunpack.c.l.b16 %v3193
        %v3335 = vunpack.c.l.b16 %v3194
        %v3336 = vunpack.c.l.b16 %v3195
        %v3337 = vunpack.c.l.b16 %v3196
        %v3338 = vunpack.c.l.b16 %v3197
        %v3339 = vunpack.c.l.b16 %v3198
        %v3340 = vunpack.c.l.b16 %v3199
        %v3341 = vunpack.c.l.b16 %v3200
        %v3342 = vunpack.c.l.b16 %v3201
        %v3343 = vunpack.c.l.b16 %v3202
        %v3344 = vunpack.c.l.b16 %v3203
        %v3345 = vunpack.c.l.b16 %v3204
        %v3346 = vunpack.c.l.b16 %v3205
        %v3347 = vunpack.c.l.b16 %v3206
        %v3348 = vunpack.c.l.b16 %v3207
        %v3349 = vunpack.c.l.b16 %v3208
        %v3350 = vunpack.c.l.b16 %v3209
        %v3351 = vunpack.c.l.b16 %v3210
        %v3352 = vunpack.c.l.b16 %v3211
        %v3353 = vunpack.c.l.b16 %v3212
        %v3354 = vunpack.c.l.b16 %v3213
        %v3355 = vunpack.c.l.b16 %v3214
        %v3356 = vunpack.c.l.b16 %v3215
        %v3357 = vunpack.c.l.b16 %v3216
        %v3358 = vunpack.c.l.b16 %v3217
        %v3359 = vunpack.c.l.b16 %v3218
        %v3360 = vunpack.c.l.b16 %v3219
        %v3361 = vunpack.c.l.b16 %v3220
        %v3362 = vunpack.c.l.b16 %v3221
        %v3363 = vunpack.c.l.b16 %v3222
        %v3364 = vunpack.c.l.b16 %v3223
        %v3365 = vunpack.c.l.b16 %v3224
        %v3366 = vunpack.c.l.b16 %v3225
        %v3367 = vunpack.c.l.b16 %v3226
        %v3368 = vunpack.c.l.b16 %v3227
        %v3369 = vunpack.c.l.b16 %v3228
        %v3370 = vunpack.c.l.b16 %v3229
        %v3371 = vunpack.c.l.b16 %v3230
        %v3372 = vunpack.c.l.b16 %v3231
        %v3373 = vunpack.c.l.b16 %v3232
        %v3374 = vunpack.c.l.b16 %v3233
        %v3375 = vunpack.c.l.b16 %v3234
        %v3376 = vunpack.c.l.b16 %v3235
        %v3377 = vunpack.c.l.b16 %v3236
        %v3378 = vunpack.c.l.b16 %v3237
        %v3379 = vunpack.c.l.b16 %v3238
        %v3380 = vunpack.c.l.b16 %v3239
        %v3381 = vunpack.c.l.b16 %v3240
        %v3382 = vunpack.c.l.b16 %v3241
        %v3383 = vunpack.c.l.b16 %v3242
        %v3384 = vunpack.c.l.b16 %v3243
        %v3385 = vunpack.c.l.b16 %v3244
        %v3386 = vunpack.c.l.b16 %v3245
        %v3387 = vunpack.c.l.b16 %v3246
        %v3388 = vunpack.c.l.b16 %v3247
        %v3389 = vunpack.c.l.b16 %v3248
        %v3390 = vunpack.c.l.b16 %v3249
        %v3391 = vunpack.c.l.b16 %v3250
        %v3392 = vunpack.c.l.b16 %v3251
        %v3393 = vunpack.c.l.b16 %v3252
        %v3394 = vunpack.c.l.b16 %v3253
        %v3395 = vunpack.c.l.b16 %v3254
        %v3396 = vunpack.c.l.b16 %v3255
        %v3397 = vunpack.c.l.b16 %v3256
        %v3398 = vpack.c.b16 %v3335, %v3334
        %v3399 = vpack.c.b16 %v3337, %v3336
        %v3400 = vpack.c.b16 %v3339, %v3338
        %v3401 = vpack.c.b16 %v3341, %v3340
        %v3402 = vpack.c.b16 %v3343, %v3342
        %v3403 = vpack.c.b16 %v3345, %v3344
        %v3404 = vpack.c.b16 %v3347, %v3346
        %v3405 = vpack.c.b16 %v3349, %v3348
        %v3406 = vpack.c.b16 %v3351, %v3350
        %v3407 = vpack.c.b16 %v3353, %v3352
        %v3408 = vpack.c.b16 %v3355, %v3354
        %v3409 = vpack.c.b16 %v3357, %v3356
        %v3410 = vpack.c.b16 %v3359, %v3358
        %v3411 = vpack.c.b16 %v3361, %v3360
        %v3412 = vpack.c.b16 %v3363, %v3362
        %v3413 = vpack.c.b16 %v3365, %v3364
        %v3414 = vpack.c.b16 %v3367, %v3366
        %v3415 = vpack.c.b16 %v3369, %v3368
        %v3416 = vpack.c.b16 %v3371, %v3370
        %v3417 = vpack.c.b16 %v3373, %v3372
        %v3418 = vpack.c.b16 %v3375, %v3374
        %v3419 = vpack.c.b16 %v3377, %v3376
        %v3420 = vpack.c.b16 %v3379, %v3378
        %v3421 = vpack.c.b16 %v3381, %v3380
        %v3422 = vpack.c.b16 %v3383, %v3382
        %v3423 = vpack.c.b16 %v3385, %v3384
        %v3424 = vpack.c.b16 %v3387, %v3386
        %v3425 = vpack.c.b16 %v3389, %v3388
        %v3426 = vpack.c.b16 %v3391, %v3390
        %v3427 = vpack.c.b16 %v3393, %v3392
        %v3428 = vpack.c.b16 %v3395, %v3394
        %v3429 = vpack.c.b16 %v3397, %v3396
        %3462 = vmatprep.subr.bf16.mxu0 0
        %3463 = vmatpush1.bf16.msra.mxu0 %v3398
        %3464 = vmatprep.subr.bf16.mxu0 0
        %3465 = vmatpush1.bf16.msra.mxu0 %v3399
        %3466 = vmatprep.subr.bf16.mxu0 0
        %3467 = vmatpush1.bf16.msra.mxu0 %v3400
        %3468 = vmatprep.subr.bf16.mxu0 0
        %3469 = vmatpush1.bf16.msra.mxu0 %v3401
        %3470 = vmatprep.subr.bf16.mxu0 0
        %3471 = vmatpush1.bf16.msra.mxu0 %v3402
        %3472 = vmatprep.subr.bf16.mxu0 0
        %3473 = vmatpush1.bf16.msra.mxu0 %v3403
        %3474 = vmatprep.subr.bf16.mxu0 0
        %3475 = vmatpush1.bf16.msra.mxu0 %v3404
        %3476 = vmatprep.subr.bf16.mxu0 0
        %3477 = vmatpush1.bf16.msra.mxu0 %v3405
        %3478 = vmatprep.subr.bf16.mxu0 0
        %3479 = vmatpush1.bf16.msra.mxu0 %v3406
        %3480 = vmatprep.subr.bf16.mxu0 0
        %3481 = vmatpush1.bf16.msra.mxu0 %v3407
        %3482 = vmatprep.subr.bf16.mxu0 0
        %3483 = vmatpush1.bf16.msra.mxu0 %v3408
        %3484 = vmatprep.subr.bf16.mxu0 0
        %3485 = vmatpush1.bf16.msra.mxu0 %v3409
        %3486 = vmatprep.subr.bf16.mxu0 0
        %3487 = vmatpush1.bf16.msra.mxu0 %v3410
        %3488 = vmatprep.subr.bf16.mxu0 0
        %3489 = vmatpush1.bf16.msra.mxu0 %v3411
        %3490 = vmatprep.subr.bf16.mxu0 0
        %3491 = vmatpush1.bf16.msra.mxu0 %v3412
        %3492 = vmatprep.subr.bf16.mxu0 0
        %3493 = vmatpush1.bf16.msra.mxu0 %v3413
        %3494 = vmatprep.mubr.bf16.mxu0 %v3263
        %3495 = vmatmul.mubr.bf16.gmra.mrb[0].mxu0 %v3262
        %v3496 = vpop.f32.mrb[0].mxu0
        %v3497 = vadd.f32 %v3269, %v3496
        %v3498 = vpop.f32.mrb[0].mxu0
        %v3499 = vpop.f32.mrb[0].mxu0
        %v3500 = vpop.f32.mrb[0].mxu0
        %3501 = vdwg.mxu0
        %3502 = vmatprep.subr.bf16.mxu0 0
        %3503 = vmatpush1.bf16.msra.mxu0 %v3414
        %3504 = vmatprep.subr.bf16.mxu0 0
        %3505 = vmatpush1.bf16.msra.mxu0 %v3415
        %3506 = vmatprep.subr.bf16.mxu0 0
        %3507 = vmatpush1.bf16.msra.mxu0 %v3416
        %3508 = vmatprep.subr.bf16.mxu0 0
        %3509 = vmatpush1.bf16.msra.mxu0 %v3417
        %3510 = vmatprep.subr.bf16.mxu0 0
        %3511 = vmatpush1.bf16.msra.mxu0 %v3418
        %3512 = vmatprep.subr.bf16.mxu0 0
        %3513 = vmatpush1.bf16.msra.mxu0 %v3419
        %3514 = vmatprep.subr.bf16.mxu0 0
        %3515 = vmatpush1.bf16.msra.mxu0 %v3420
        %3516 = vmatprep.subr.bf16.mxu0 0
        %3517 = vmatpush1.bf16.msra.mxu0 %v3421
        %3518 = vmatprep.subr.bf16.mxu0 0
        %3519 = vmatpush1.bf16.msra.mxu0 %v3422
        %3520 = vmatprep.subr.bf16.mxu0 0
        %3521 = vmatpush1.bf16.msra.mxu0 %v3423
        %3522 = vmatprep.subr.bf16.mxu0 0
        %3523 = vmatpush1.bf16.msra.mxu0 %v3424
        %3524 = vmatprep.subr.bf16.mxu0 0
        %3525 = vmatpush1.bf16.msra.mxu0 %v3425
        %3526 = vmatprep.subr.bf16.mxu0 0
        %3527 = vmatpush1.bf16.msra.mxu0 %v3426
        %3528 = vmatprep.subr.bf16.mxu0 0
        %3529 = vmatpush1.bf16.msra.mxu0 %v3427
        %3530 = vmatprep.subr.bf16.mxu0 0
        %3531 = vmatpush1.bf16.msra.mxu0 %v3428
        %3532 = vmatprep.subr.bf16.mxu0 0
        %3533 = vmatpush1.bf16.msra.mxu0 %v3429
        %3534 = vmatprep.mubr.bf16.mxu0 %v3265
        %3535 = vmatmul.mubr.bf16.gmra.mrb[0].mxu0 %v3264
        %v3536 = vpop.f32.mrb[0].mxu0
        %v3537 = vadd.f32 %v3497, %v3536
        %v3538 = vpop.f32.mrb[0].mxu0
        %v3539 = vpop.f32.mrb[0].mxu0
        %v3540 = vpop.f32.mrb[0].mxu0
        %3541 = vdwg.mxu0
        %s3542 = scalar_lea.vmem [#allocation6], 1536
        %v3543 = vld [vmem:[%s3542] sm:$0xf]
        %v3544 = vld [vmem:[%s3542 + $0x4] sm:$0xf]
        %v3545 = vld [vmem:[%s3542 + $0x8] sm:$0xf]
        %v3546 = vld [vmem:[%s3542 + $0xc] sm:$0xf]
        %v3547 = vld [vmem:[%s3542 + $0x10] sm:$0xf]
        %v3548 = vld [vmem:[%s3542 + $0x14] sm:$0xf]
        %v3549 = vld [vmem:[%s3542 + $0x18] sm:$0xf]
        %v3550 = vld [vmem:[%s3542 + $0x1c] sm:$0xf]
        %v3551 = vld [vmem:[%s3542 + $0x20] sm:$0xf]
        %v3552 = vld [vmem:[%s3542 + $0x24] sm:$0xf]
        %v3553 = vld [vmem:[%s3542 + $0x28] sm:$0xf]
        %v3554 = vld [vmem:[%s3542 + $0x2c] sm:$0xf]
        %v3555 = vld [vmem:[%s3542 + $0x30] sm:$0xf]
        %v3556 = vld [vmem:[%s3542 + $0x34] sm:$0xf]
        %v3557 = vld [vmem:[%s3542 + $0x38] sm:$0xf]
        %v3558 = vld [vmem:[%s3542 + $0x3c] sm:$0xf]
        %v3559 = vld [vmem:[%s3542 + $0x40] sm:$0xf]
        %v3560 = vld [vmem:[%s3542 + $0x44] sm:$0xf]
        %v3561 = vld [vmem:[%s3542 + $0x48] sm:$0xf]
        %v3562 = vld [vmem:[%s3542 + $0x4c] sm:$0xf]
        %v3563 = vld [vmem:[%s3542 + $0x50] sm:$0xf]
        %v3564 = vld [vmem:[%s3542 + $0x54] sm:$0xf]
        %v3565 = vld [vmem:[%s3542 + $0x58] sm:$0xf]
        %v3566 = vld [vmem:[%s3542 + $0x5c] sm:$0xf]
        %v3567 = vld [vmem:[%s3542 + $0x60] sm:$0xf]
        %v3568 = vld [vmem:[%s3542 + $0x64] sm:$0xf]
        %v3569 = vld [vmem:[%s3542 + $0x68] sm:$0xf]
        %v3570 = vld [vmem:[%s3542 + $0x6c] sm:$0xf]
        %v3571 = vld [vmem:[%s3542 + $0x70] sm:$0xf]
        %v3572 = vld [vmem:[%s3542 + $0x74] sm:$0xf]
        %v3573 = vld [vmem:[%s3542 + $0x78] sm:$0xf]
        %v3574 = vld [vmem:[%s3542 + $0x7c] sm:$0xf]
        %v3575 = vld [vmem:[%s3542 + $0x80] sm:$0xf]
        %v3576 = vld [vmem:[%s3542 + $0x84] sm:$0xf]
        %v3577 = vld [vmem:[%s3542 + $0x88] sm:$0xf]
        %v3578 = vld [vmem:[%s3542 + $0x8c] sm:$0xf]
        %v3579 = vld [vmem:[%s3542 + $0x90] sm:$0xf]
        %v3580 = vld [vmem:[%s3542 + $0x94] sm:$0xf]
        %v3581 = vld [vmem:[%s3542 + $0x98] sm:$0xf]
        %v3582 = vld [vmem:[%s3542 + $0x9c] sm:$0xf]
        %v3583 = vld [vmem:[%s3542 + $0xa0] sm:$0xf]
        %v3584 = vld [vmem:[%s3542 + $0xa4] sm:$0xf]
        %v3585 = vld [vmem:[%s3542 + $0xa8] sm:$0xf]
        %v3586 = vld [vmem:[%s3542 + $0xac] sm:$0xf]
        %v3587 = vld [vmem:[%s3542 + $0xb0] sm:$0xf]
        %v3588 = vld [vmem:[%s3542 + $0xb4] sm:$0xf]
        %v3589 = vld [vmem:[%s3542 + $0xb8] sm:$0xf]
        %v3590 = vld [vmem:[%s3542 + $0xbc] sm:$0xf]
        %v3591 = vld [vmem:[%s3542 + $0xc0] sm:$0xf]
        %v3592 = vld [vmem:[%s3542 + $0xc4] sm:$0xf]
        %v3593 = vld [vmem:[%s3542 + $0xc8] sm:$0xf]
        %v3594 = vld [vmem:[%s3542 + $0xcc] sm:$0xf]
        %v3595 = vld [vmem:[%s3542 + $0xd0] sm:$0xf]
        %v3596 = vld [vmem:[%s3542 + $0xd4] sm:$0xf]
        %v3597 = vld [vmem:[%s3542 + $0xd8] sm:$0xf]
        %v3598 = vld [vmem:[%s3542 + $0xdc] sm:$0xf]
        %v3599 = vld [vmem:[%s3542 + $0xe0] sm:$0xf]
        %v3600 = vld [vmem:[%s3542 + $0xe4] sm:$0xf]
        %v3601 = vld [vmem:[%s3542 + $0xe8] sm:$0xf]
        %v3602 = vld [vmem:[%s3542 + $0xec] sm:$0xf]
        %v3603 = vld [vmem:[%s3542 + $0xf0] sm:$0xf]
        %v3604 = vld [vmem:[%s3542 + $0xf4] sm:$0xf]
        %v3605 = vld [vmem:[%s3542 + $0xf8] sm:$0xf]
        %v3606 = vld [vmem:[%s3542 + $0xfc] sm:$0xf]
        %v3607 = vld [vmem:[#allocation9 + $0x15] sm:$0x1]
        %v3608 = vld [vmem:[%s1799] ss:$2 sm:$0xff]
        %v3609 = vld [vmem:[%s1807] ss:$2 sm:$0xff]
        %v3610 = vld [vmem:[%s1815] ss:$2 sm:$0xff]
        %v3611 = vld [vmem:[%s1823] ss:$2 sm:$0xff]
        %v3612 = vpack.c.bf16 %v3608, %v3608
        %v3613 = vpack.c.bf16 %v3609, %v3609
        %v3614 = vpack.c.bf16 %v3610, %v3610
        %v3615 = vpack.c.bf16 %v3611, %v3611
        %v3616 = vlaneseq
        %v3617 = vshrl.u32 %v3616, 7
        %v3618 = vsub.s32 0, %v3617
        %v3619 = vrot.slane %v3607, %v3618
        %v3684 = vunpack.c.l.b16 %v3543
        %v3685 = vunpack.c.l.b16 %v3544
        %v3686 = vunpack.c.l.b16 %v3545
        %v3687 = vunpack.c.l.b16 %v3546
        %v3688 = vunpack.c.l.b16 %v3547
        %v3689 = vunpack.c.l.b16 %v3548
        %v3690 = vunpack.c.l.b16 %v3549
        %v3691 = vunpack.c.l.b16 %v3550
        %v3692 = vunpack.c.l.b16 %v3551
        %v3693 = vunpack.c.l.b16 %v3552
        %v3694 = vunpack.c.l.b16 %v3553
        %v3695 = vunpack.c.l.b16 %v3554
        %v3696 = vunpack.c.l.b16 %v3555
        %v3697 = vunpack.c.l.b16 %v3556
        %v3698 = vunpack.c.l.b16 %v3557
        %v3699 = vunpack.c.l.b16 %v3558
        %v3700 = vunpack.c.l.b16 %v3559
        %v3701 = vunpack.c.l.b16 %v3560
        %v3702 = vunpack.c.l.b16 %v3561
        %v3703 = vunpack.c.l.b16 %v3562
        %v3704 = vunpack.c.l.b16 %v3563
        %v3705 = vunpack.c.l.b16 %v3564
        %v3706 = vunpack.c.l.b16 %v3565
        %v3707 = vunpack.c.l.b16 %v3566
        %v3708 = vunpack.c.l.b16 %v3567
        %v3709 = vunpack.c.l.b16 %v3568
        %v3710 = vunpack.c.l.b16 %v3569
        %v3711 = vunpack.c.l.b16 %v3570
        %v3712 = vunpack.c.l.b16 %v3571
        %v3713 = vunpack.c.l.b16 %v3572
        %v3714 = vunpack.c.l.b16 %v3573
        %v3715 = vunpack.c.l.b16 %v3574
        %v3716 = vunpack.c.l.b16 %v3575
        %v3717 = vunpack.c.l.b16 %v3576
        %v3718 = vunpack.c.l.b16 %v3577
        %v3719 = vunpack.c.l.b16 %v3578
        %v3720 = vunpack.c.l.b16 %v3579
        %v3721 = vunpack.c.l.b16 %v3580
        %v3722 = vunpack.c.l.b16 %v3581
        %v3723 = vunpack.c.l.b16 %v3582
        %v3724 = vunpack.c.l.b16 %v3583
        %v3725 = vunpack.c.l.b16 %v3584
        %v3726 = vunpack.c.l.b16 %v3585
        %v3727 = vunpack.c.l.b16 %v3586
        %v3728 = vunpack.c.l.b16 %v3587
        %v3729 = vunpack.c.l.b16 %v3588
        %v3730 = vunpack.c.l.b16 %v3589
        %v3731 = vunpack.c.l.b16 %v3590
        %v3732 = vunpack.c.l.b16 %v3591
        %v3733 = vunpack.c.l.b16 %v3592
        %v3734 = vunpack.c.l.b16 %v3593
        %v3735 = vunpack.c.l.b16 %v3594
        %v3736 = vunpack.c.l.b16 %v3595
        %v3737 = vunpack.c.l.b16 %v3596
        %v3738 = vunpack.c.l.b16 %v3597
        %v3739 = vunpack.c.l.b16 %v3598
        %v3740 = vunpack.c.l.b16 %v3599
        %v3741 = vunpack.c.l.b16 %v3600
        %v3742 = vunpack.c.l.b16 %v3601
        %v3743 = vunpack.c.l.b16 %v3602
        %v3744 = vunpack.c.l.b16 %v3603
        %v3745 = vunpack.c.l.b16 %v3604
        %v3746 = vunpack.c.l.b16 %v3605
        %v3747 = vunpack.c.l.b16 %v3606
        %v3748 = vpack.c.b16 %v3685, %v3684
        %v3749 = vpack.c.b16 %v3687, %v3686
        %v3750 = vpack.c.b16 %v3689, %v3688
        %v3751 = vpack.c.b16 %v3691, %v3690
        %v3752 = vpack.c.b16 %v3693, %v3692
        %v3753 = vpack.c.b16 %v3695, %v3694
        %v3754 = vpack.c.b16 %v3697, %v3696
        %v3755 = vpack.c.b16 %v3699, %v3698
        %v3756 = vpack.c.b16 %v3701, %v3700
        %v3757 = vpack.c.b16 %v3703, %v3702
        %v3758 = vpack.c.b16 %v3705, %v3704
        %v3759 = vpack.c.b16 %v3707, %v3706
        %v3760 = vpack.c.b16 %v3709, %v3708
        %v3761 = vpack.c.b16 %v3711, %v3710
        %v3762 = vpack.c.b16 %v3713, %v3712
        %v3763 = vpack.c.b16 %v3715, %v3714
        %v3764 = vpack.c.b16 %v3717, %v3716
        %v3765 = vpack.c.b16 %v3719, %v3718
        %v3766 = vpack.c.b16 %v3721, %v3720
        %v3767 = vpack.c.b16 %v3723, %v3722
        %v3768 = vpack.c.b16 %v3725, %v3724
        %v3769 = vpack.c.b16 %v3727, %v3726
        %v3770 = vpack.c.b16 %v3729, %v3728
        %v3771 = vpack.c.b16 %v3731, %v3730
        %v3772 = vpack.c.b16 %v3733, %v3732
        %v3773 = vpack.c.b16 %v3735, %v3734
        %v3774 = vpack.c.b16 %v3737, %v3736
        %v3775 = vpack.c.b16 %v3739, %v3738
        %v3776 = vpack.c.b16 %v3741, %v3740
        %v3777 = vpack.c.b16 %v3743, %v3742
        %v3778 = vpack.c.b16 %v3745, %v3744
        %v3779 = vpack.c.b16 %v3747, %v3746
        %3812 = vmatprep.subr.bf16.mxu0 0
        %3813 = vmatpush1.bf16.msra.mxu0 %v3748
        %3814 = vmatprep.subr.bf16.mxu0 0
        %3815 = vmatpush1.bf16.msra.mxu0 %v3749
        %3816 = vmatprep.subr.bf16.mxu0 0
        %3817 = vmatpush1.bf16.msra.mxu0 %v3750
        %3818 = vmatprep.subr.bf16.mxu0 0
        %3819 = vmatpush1.bf16.msra.mxu0 %v3751
        %3820 = vmatprep.subr.bf16.mxu0 0
        %3821 = vmatpush1.bf16.msra.mxu0 %v3752
        %3822 = vmatprep.subr.bf16.mxu0 0
        %3823 = vmatpush1.bf16.msra.mxu0 %v3753
        %3824 = vmatprep.subr.bf16.mxu0 0
        %3825 = vmatpush1.bf16.msra.mxu0 %v3754
        %3826 = vmatprep.subr.bf16.mxu0 0
        %3827 = vmatpush1.bf16.msra.mxu0 %v3755
        %3828 = vmatprep.subr.bf16.mxu0 0
        %3829 = vmatpush1.bf16.msra.mxu0 %v3756
        %3830 = vmatprep.subr.bf16.mxu0 0
        %3831 = vmatpush1.bf16.msra.mxu0 %v3757
        %3832 = vmatprep.subr.bf16.mxu0 0
        %3833 = vmatpush1.bf16.msra.mxu0 %v3758
        %3834 = vmatprep.subr.bf16.mxu0 0
        %3835 = vmatpush1.bf16.msra.mxu0 %v3759
        %3836 = vmatprep.subr.bf16.mxu0 0
        %3837 = vmatpush1.bf16.msra.mxu0 %v3760
        %3838 = vmatprep.subr.bf16.mxu0 0
        %3839 = vmatpush1.bf16.msra.mxu0 %v3761
        %3840 = vmatprep.subr.bf16.mxu0 0
        %3841 = vmatpush1.bf16.msra.mxu0 %v3762
        %3842 = vmatprep.subr.bf16.mxu0 0
        %3843 = vmatpush1.bf16.msra.mxu0 %v3763
        %3844 = vmatprep.mubr.bf16.mxu0 %v3613
        %3845 = vmatmul.mubr.bf16.gmra.mrb[0].mxu0 %v3612
        %v3846 = vpop.f32.mrb[0].mxu0
        %v3847 = vadd.f32 %v3619, %v3846
        %v3848 = vpop.f32.mrb[0].mxu0
        %v3849 = vpop.f32.mrb[0].mxu0
        %v3850 = vpop.f32.mrb[0].mxu0
        %3851 = vdwg.mxu0
        %3852 = vmatprep.subr.bf16.mxu0 0
        %3853 = vmatpush1.bf16.msra.mxu0 %v3764
        %3854 = vmatprep.subr.bf16.mxu0 0
        %3855 = vmatpush1.bf16.msra.mxu0 %v3765
        %3856 = vmatprep.subr.bf16.mxu0 0
        %3857 = vmatpush1.bf16.msra.mxu0 %v3766
        %3858 = vmatprep.subr.bf16.mxu0 0
        %3859 = vmatpush1.bf16.msra.mxu0 %v3767
        %3860 = vmatprep.subr.bf16.mxu0 0
        %3861 = vmatpush1.bf16.msra.mxu0 %v3768
        %3862 = vmatprep.subr.bf16.mxu0 0
        %3863 = vmatpush1.bf16.msra.mxu0 %v3769
        %3864 = vmatprep.subr.bf16.mxu0 0
        %3865 = vmatpush1.bf16.msra.mxu0 %v3770
        %3866 = vmatprep.subr.bf16.mxu0 0
        %3867 = vmatpush1.bf16.msra.mxu0 %v3771
        %3868 = vmatprep.subr.bf16.mxu0 0
        %3869 = vmatpush1.bf16.msra.mxu0 %v3772
        %3870 = vmatprep.subr.bf16.mxu0 0
        %3871 = vmatpush1.bf16.msra.mxu0 %v3773
        %3872 = vmatprep.subr.bf16.mxu0 0
        %3873 = vmatpush1.bf16.msra.mxu0 %v3774
        %3874 = vmatprep.subr.bf16.mxu0 0
        %3875 = vmatpush1.bf16.msra.mxu0 %v3775
        %3876 = vmatprep.subr.bf16.mxu0 0
        %3877 = vmatpush1.bf16.msra.mxu0 %v3776
        %3878 = vmatprep.subr.bf16.mxu0 0
        %3879 = vmatpush1.bf16.msra.mxu0 %v3777
        %3880 = vmatprep.subr.bf16.mxu0 0
        %3881 = vmatpush1.bf16.msra.mxu0 %v3778
        %3882 = vmatprep.subr.bf16.mxu0 0
        %3883 = vmatpush1.bf16.msra.mxu0 %v3779
        %3884 = vmatprep.mubr.bf16.mxu0 %v3615
        %3885 = vmatmul.mubr.bf16.gmra.mrb[0].mxu0 %v3614
        %v3886 = vpop.f32.mrb[0].mxu0
        %v3887 = vadd.f32 %v3847, %v3886
        %v3888 = vpop.f32.mrb[0].mxu0
        %v3889 = vpop.f32.mrb[0].mxu0
        %v3890 = vpop.f32.mrb[0].mxu0
        %3891 = vdwg.mxu0
        %v3892 = vmul.f32 %v3887, 2.0
        %v3893 = vmul.f32 %v3537, 0.3
        %v3894 = vadd.f32 %v3892, %v3893
        %v3895 = vld [vmem:[#allocation9 + $0x16] sm:$0x1]
        %v3896 = vlaneseq
        %v3897 = vshrl.u32 %v3896, 7
        %v3898 = vsub.s32 0, %v3897
        %v3899 = vrot.slane %v3895, %v3898
        %v3900 = vmul.f32 %v3894, %v3899
        %v3901 = vld [vmem:[#allocation9 + $0x17] sm:$0x1]
        %v3902 = vlaneseq
        %v3903 = vshrl.u32 %v3902, 7
        %v3904 = vsub.s32 0, %v3903
        %v3905 = vrot.slane %v3901, %v3904
        %v3906 = vadd.f32 %v3900, %v3905
        %v3907 = vmax.f32 %v3906, 0.0
        %v3908 = vpack.c.bf16 %v3907, %v3907
        %s3909 = scalar_lea.vmem [#allocation8], 192
        %v3910 = vld [vmem:[%s3909] sm:$0xf]
        %v3911 = vld [vmem:[%s3909 + $0x4] sm:$0xf]
        %v3912 = vld [vmem:[%s3909 + $0x8] sm:$0xf]
        %v3913 = vld [vmem:[%s3909 + $0xc] sm:$0xf]
        %v3914 = vld [vmem:[%s3909 + $0x10] sm:$0xf]
        %v3915 = vld [vmem:[%s3909 + $0x14] sm:$0xf]
        %v3916 = vld [vmem:[%s3909 + $0x18] sm:$0xf]
        %v3917 = vld [vmem:[%s3909 + $0x1c] sm:$0xf]
        %v3918 = vld [vmem:[%s3909 + $0x20] sm:$0xf]
        %v3919 = vld [vmem:[%s3909 + $0x24] sm:$0xf]
        %v3920 = vld [vmem:[%s3909 + $0x28] sm:$0xf]
        %v3921 = vld [vmem:[%s3909 + $0x2c] sm:$0xf]
        %v3922 = vld [vmem:[%s3909 + $0x30] sm:$0xf]
        %v3923 = vld [vmem:[%s3909 + $0x34] sm:$0xf]
        %v3924 = vld [vmem:[%s3909 + $0x38] sm:$0xf]
        %v3925 = vld [vmem:[%s3909 + $0x3c] sm:$0xf]
        %v3926 = vld [vmem:[#allocation9 + $0x18] sm:$0x1]
        %v3927 = vlaneseq
        %v3928 = vshrl.u32 %v3927, 7
        %v3929 = vsub.s32 0, %v3928
        %v3930 = vrot.slane %v3926, %v3929
        %v3947 = vunpack.c.l.b16 %v3910
        %v3948 = vunpack.c.l.b16 %v3911
        %v3949 = vunpack.c.l.b16 %v3912
        %v3950 = vunpack.c.l.b16 %v3913
        %v3951 = vunpack.c.l.b16 %v3914
        %v3952 = vunpack.c.l.b16 %v3915
        %v3953 = vunpack.c.l.b16 %v3916
        %v3954 = vunpack.c.l.b16 %v3917
        %v3955 = vunpack.c.l.b16 %v3918
        %v3956 = vunpack.c.l.b16 %v3919
        %v3957 = vunpack.c.l.b16 %v3920
        %v3958 = vunpack.c.l.b16 %v3921
        %v3959 = vunpack.c.l.b16 %v3922
        %v3960 = vunpack.c.l.b16 %v3923
        %v3961 = vunpack.c.l.b16 %v3924
        %v3962 = vunpack.c.l.b16 %v3925
        %v3963 = vpack.c.b16 %v3948, %v3947
        %v3964 = vpack.c.b16 %v3950, %v3949
        %v3965 = vpack.c.b16 %v3952, %v3951
        %v3966 = vpack.c.b16 %v3954, %v3953
        %v3967 = vpack.c.b16 %v3956, %v3955
        %v3968 = vpack.c.b16 %v3958, %v3957
        %v3969 = vpack.c.b16 %v3960, %v3959
        %v3970 = vpack.c.b16 %v3962, %v3961
        %3979 = vmatprep.subr.bf16.mxu0 0
        %3980 = vmatpush1.bf16.msra.mxu0 %v3963
        %3981 = vmatprep.subr.bf16.mxu0 0
        %3982 = vmatpush1.bf16.msra.mxu0 %v3964
        %3983 = vmatprep.subr.bf16.mxu0 0
        %3984 = vmatpush1.bf16.msra.mxu0 %v3965
        %3985 = vmatprep.subr.bf16.mxu0 0
        %3986 = vmatpush1.bf16.msra.mxu0 %v3966
        %3987 = vmatprep.subr.bf16.mxu0 0
        %3988 = vmatpush1.bf16.msra.mxu0 %v3967
        %3989 = vmatprep.subr.bf16.mxu0 0
        %3990 = vmatpush1.bf16.msra.mxu0 %v3968
        %3991 = vmatprep.subr.bf16.mxu0 0
        %3992 = vmatpush1.bf16.msra.mxu0 %v3969
        %3993 = vmatprep.subr.bf16.mxu0 0
        %3994 = vmatpush1.bf16.msra.mxu0 %v3970
        %3995 = vmatprep.subr.bf16.mxu0 0
        %3996 = vmatpush1.bf16.msra.mxu0 0
        %3997 = vmatprep.subr.bf16.mxu0 0
        %3998 = vmatpush1.bf16.msra.mxu0 0
        %3999 = vmatprep.subr.bf16.mxu0 0
        %4000 = vmatpush1.bf16.msra.mxu0 0
        %4001 = vmatprep.subr.bf16.mxu0 0
        %4002 = vmatpush1.bf16.msra.mxu0 0
        %4003 = vmatprep.subr.bf16.mxu0 0
        %4004 = vmatpush1.bf16.msra.mxu0 0
        %4005 = vmatprep.subr.bf16.mxu0 0
        %4006 = vmatpush1.bf16.msra.mxu0 0
        %4007 = vmatprep.subr.bf16.mxu0 0
        %4008 = vmatpush1.bf16.msra.mxu0 0
        %4009 = vmatprep.subr.bf16.mxu0 0
        %4010 = vmatpush1.bf16.msra.mxu0 0
        %4011 = vmatprep.mubr.bf16.mxu0 0
        %4012 = vmatmul.mubr.bf16.gmra.mrb[0].mxu0 %v3908
        %v4013 = vpop.f32.mrb[0].mxu0
        %v4014 = vadd.f32 %v3930, %v4013
        %v4015 = vpop.f32.mrb[0].mxu0
        %v4016 = vpop.f32.mrb[0].mxu0
        %v4017 = vpop.f32.mrb[0].mxu0
        %4018 = vdwg.mxu0
        %v4019 = vld [vmem:[#allocation9 + $0x19] sm:$0x1]
        %v4020 = vlaneseq
        %v4021 = vshrl.u32 %v4020, 7
        %v4022 = vsub.s32 0, %v4021
        %v4023 = vrot.slane %v4019, %v4022
        %v4024 = vmul.f32 %v4014, %v4023
        %v4025 = vld [vmem:[#allocation9 + $0x1a] sm:$0x1]
        %v4026 = vlaneseq
        %v4027 = vshrl.u32 %v4026, 7
        %v4028 = vsub.s32 0, %v4027
        %v4029 = vrot.slane %v4025, %v4028
        %v4030 = vadd.f32 %v4024, %v4029
        %v4031 = vmax.f32 %v4030, 0.0
        %4032 = vst [vmem:[#allocation2 + $0x7] sm:$0x1] 0.0
        %4033 = vst [vmem:[#allocation2 + $0x10] sm:$0x1] 0.0
        %4034 = vst [vmem:[#allocation2 + $0x8] sm:$0xff] %v4031
        %4035 = vst [vmem:[#allocation3 + $0x7] sm:$0x1] 0.0
        %4036 = vst [vmem:[#allocation3 + $0x10] sm:$0x1] 0.0
        %4037 = vst [vmem:[#allocation3 + $0x8] sm:$0xff] %v3894
        %s4038 = scalar_lea.vmem [#allocation6], 1792
        %v4039 = vld [vmem:[%s4038] sm:$0xf]
        %v4040 = vld [vmem:[%s4038 + $0x4] sm:$0xf]
        %v4041 = vld [vmem:[%s4038 + $0x8] sm:$0xf]
        %v4042 = vld [vmem:[%s4038 + $0xc] sm:$0xf]
        %v4043 = vld [vmem:[%s4038 + $0x10] sm:$0xf]
        %v4044 = vld [vmem:[%s4038 + $0x14] sm:$0xf]
        %v4045 = vld [vmem:[%s4038 + $0x18] sm:$0xf]
        %v4046 = vld [vmem:[%s4038 + $0x1c] sm:$0xf]
        %v4047 = vld [vmem:[%s4038 + $0x20] sm:$0xf]
        %v4048 = vld [vmem:[%s4038 + $0x24] sm:$0xf]
        %v4049 = vld [vmem:[%s4038 + $0x28] sm:$0xf]
        %v4050 = vld [vmem:[%s4038 + $0x2c] sm:$0xf]
        %v4051 = vld [vmem:[%s4038 + $0x30] sm:$0xf]
        %v4052 = vld [vmem:[%s4038 + $0x34] sm:$0xf]
        %v4053 = vld [vmem:[%s4038 + $0x38] sm:$0xf]
        %v4054 = vld [vmem:[%s4038 + $0x3c] sm:$0xf]
        %v4055 = vld [vmem:[%s4038 + $0x40] sm:$0xf]
        %v4056 = vld [vmem:[%s4038 + $0x44] sm:$0xf]
        %v4057 = vld [vmem:[%s4038 + $0x48] sm:$0xf]
        %v4058 = vld [vmem:[%s4038 + $0x4c] sm:$0xf]
        %v4059 = vld [vmem:[%s4038 + $0x50] sm:$0xf]
        %v4060 = vld [vmem:[%s4038 + $0x54] sm:$0xf]
        %v4061 = vld [vmem:[%s4038 + $0x58] sm:$0xf]
        %v4062 = vld [vmem:[%s4038 + $0x5c] sm:$0xf]
        %v4063 = vld [vmem:[%s4038 + $0x60] sm:$0xf]
        %v4064 = vld [vmem:[%s4038 + $0x64] sm:$0xf]
        %v4065 = vld [vmem:[%s4038 + $0x68] sm:$0xf]
        %v4066 = vld [vmem:[%s4038 + $0x6c] sm:$0xf]
        %v4067 = vld [vmem:[%s4038 + $0x70] sm:$0xf]
        %v4068 = vld [vmem:[%s4038 + $0x74] sm:$0xf]
        %v4069 = vld [vmem:[%s4038 + $0x78] sm:$0xf]
        %v4070 = vld [vmem:[%s4038 + $0x7c] sm:$0xf]
        %v4071 = vld [vmem:[%s4038 + $0x80] sm:$0xf]
        %v4072 = vld [vmem:[%s4038 + $0x84] sm:$0xf]
        %v4073 = vld [vmem:[%s4038 + $0x88] sm:$0xf]
        %v4074 = vld [vmem:[%s4038 + $0x8c] sm:$0xf]
        %v4075 = vld [vmem:[%s4038 + $0x90] sm:$0xf]
        %v4076 = vld [vmem:[%s4038 + $0x94] sm:$0xf]
        %v4077 = vld [vmem:[%s4038 + $0x98] sm:$0xf]
        %v4078 = vld [vmem:[%s4038 + $0x9c] sm:$0xf]
        %v4079 = vld [vmem:[%s4038 + $0xa0] sm:$0xf]
        %v4080 = vld [vmem:[%s4038 + $0xa4] sm:$0xf]
        %v4081 = vld [vmem:[%s4038 + $0xa8] sm:$0xf]
        %v4082 = vld [vmem:[%s4038 + $0xac] sm:$0xf]
        %v4083 = vld [vmem:[%s4038 + $0xb0] sm:$0xf]
        %v4084 = vld [vmem:[%s4038 + $0xb4] sm:$0xf]
        %v4085 = vld [vmem:[%s4038 + $0xb8] sm:$0xf]
        %v4086 = vld [vmem:[%s4038 + $0xbc] sm:$0xf]
        %v4087 = vld [vmem:[%s4038 + $0xc0] sm:$0xf]
        %v4088 = vld [vmem:[%s4038 + $0xc4] sm:$0xf]
        %v4089 = vld [vmem:[%s4038 + $0xc8] sm:$0xf]
        %v4090 = vld [vmem:[%s4038 + $0xcc] sm:$0xf]
        %v4091 = vld [vmem:[%s4038 + $0xd0] sm:$0xf]
        %v4092 = vld [vmem:[%s4038 + $0xd4] sm:$0xf]
        %v4093 = vld [vmem:[%s4038 + $0xd8] sm:$0xf]
        %v4094 = vld [vmem:[%s4038 + $0xdc] sm:$0xf]
        %v4095 = vld [vmem:[%s4038 + $0xe0] sm:$0xf]
        %v4096 = vld [vmem:[%s4038 + $0xe4] sm:$0xf]
        %v4097 = vld [vmem:[%s4038 + $0xe8] sm:$0xf]
        %v4098 = vld [vmem:[%s4038 + $0xec] sm:$0xf]
        %v4099 = vld [vmem:[%s4038 + $0xf0] sm:$0xf]
        %v4100 = vld [vmem:[%s4038 + $0xf4] sm:$0xf]
        %v4101 = vld [vmem:[%s4038 + $0xf8] sm:$0xf]
        %v4102 = vld [vmem:[%s4038 + $0xfc] sm:$0xf]
        %v4103 = vld [vmem:[#allocation9 + $0x1b] sm:$0x1]
        %v4104 = vld [vmem:[%s717] ss:$2 sm:$0xf]
        %v4105 = vld [vmem:[%s733] ss:$2 sm:$0xf]
        %v4106 = vld [vmem:[%s749] ss:$2 sm:$0xf]
        %v4107 = vld [vmem:[%s765] ss:$2 sm:$0xf]
        %v4108 = vpack.c.bf16 %v4104, %v4104
        %v4109 = vpack.c.bf16 %v4105, %v4105
        %v4110 = vpack.c.bf16 %v4106, %v4106
        %v4111 = vpack.c.bf16 %v4107, %v4107
        %v4112 = vlaneseq
        %v4113 = vshrl.u32 %v4112, 7
        %v4114 = vsub.s32 0, %v4113
        %v4115 = vrot.slane %v4103, %v4114
        %v4180 = vunpack.c.l.b16 %v4039
        %v4181 = vunpack.c.l.b16 %v4040
        %v4182 = vunpack.c.l.b16 %v4041
        %v4183 = vunpack.c.l.b16 %v4042
        %v4184 = vunpack.c.l.b16 %v4043
        %v4185 = vunpack.c.l.b16 %v4044
        %v4186 = vunpack.c.l.b16 %v4045
        %v4187 = vunpack.c.l.b16 %v4046
        %v4188 = vunpack.c.l.b16 %v4047
        %v4189 = vunpack.c.l.b16 %v4048
        %v4190 = vunpack.c.l.b16 %v4049
        %v4191 = vunpack.c.l.b16 %v4050
        %v4192 = vunpack.c.l.b16 %v4051
        %v4193 = vunpack.c.l.b16 %v4052
        %v4194 = vunpack.c.l.b16 %v4053
        %v4195 = vunpack.c.l.b16 %v4054
        %v4196 = vunpack.c.l.b16 %v4055
        %v4197 = vunpack.c.l.b16 %v4056
        %v4198 = vunpack.c.l.b16 %v4057
        %v4199 = vunpack.c.l.b16 %v4058
        %v4200 = vunpack.c.l.b16 %v4059
        %v4201 = vunpack.c.l.b16 %v4060
        %v4202 = vunpack.c.l.b16 %v4061
        %v4203 = vunpack.c.l.b16 %v4062
        %v4204 = vunpack.c.l.b16 %v4063
        %v4205 = vunpack.c.l.b16 %v4064
        %v4206 = vunpack.c.l.b16 %v4065
        %v4207 = vunpack.c.l.b16 %v4066
        %v4208 = vunpack.c.l.b16 %v4067
        %v4209 = vunpack.c.l.b16 %v4068
        %v4210 = vunpack.c.l.b16 %v4069
        %v4211 = vunpack.c.l.b16 %v4070
        %v4212 = vunpack.c.l.b16 %v4071
        %v4213 = vunpack.c.l.b16 %v4072
        %v4214 = vunpack.c.l.b16 %v4073
        %v4215 = vunpack.c.l.b16 %v4074
        %v4216 = vunpack.c.l.b16 %v4075
        %v4217 = vunpack.c.l.b16 %v4076
        %v4218 = vunpack.c.l.b16 %v4077
        %v4219 = vunpack.c.l.b16 %v4078
        %v4220 = vunpack.c.l.b16 %v4079
        %v4221 = vunpack.c.l.b16 %v4080
        %v4222 = vunpack.c.l.b16 %v4081
        %v4223 = vunpack.c.l.b16 %v4082
        %v4224 = vunpack.c.l.b16 %v4083
        %v4225 = vunpack.c.l.b16 %v4084
        %v4226 = vunpack.c.l.b16 %v4085
        %v4227 = vunpack.c.l.b16 %v4086
        %v4228 = vunpack.c.l.b16 %v4087
        %v4229 = vunpack.c.l.b16 %v4088
        %v4230 = vunpack.c.l.b16 %v4089
        %v4231 = vunpack.c.l.b16 %v4090
        %v4232 = vunpack.c.l.b16 %v4091
        %v4233 = vunpack.c.l.b16 %v4092
        %v4234 = vunpack.c.l.b16 %v4093
        %v4235 = vunpack.c.l.b16 %v4094
        %v4236 = vunpack.c.l.b16 %v4095
        %v4237 = vunpack.c.l.b16 %v4096
        %v4238 = vunpack.c.l.b16 %v4097
        %v4239 = vunpack.c.l.b16 %v4098
        %v4240 = vunpack.c.l.b16 %v4099
        %v4241 = vunpack.c.l.b16 %v4100
        %v4242 = vunpack.c.l.b16 %v4101
        %v4243 = vunpack.c.l.b16 %v4102
        %v4244 = vpack.c.b16 %v4181, %v4180
        %v4245 = vpack.c.b16 %v4183, %v4182
        %v4246 = vpack.c.b16 %v4185, %v4184
        %v4247 = vpack.c.b16 %v4187, %v4186
        %v4248 = vpack.c.b16 %v4189, %v4188
        %v4249 = vpack.c.b16 %v4191, %v4190
        %v4250 = vpack.c.b16 %v4193, %v4192
        %v4251 = vpack.c.b16 %v4195, %v4194
        %v4252 = vpack.c.b16 %v4197, %v4196
        %v4253 = vpack.c.b16 %v4199, %v4198
        %v4254 = vpack.c.b16 %v4201, %v4200
        %v4255 = vpack.c.b16 %v4203, %v4202
        %v4256 = vpack.c.b16 %v4205, %v4204
        %v4257 = vpack.c.b16 %v4207, %v4206
        %v4258 = vpack.c.b16 %v4209, %v4208
        %v4259 = vpack.c.b16 %v4211, %v4210
        %v4260 = vpack.c.b16 %v4213, %v4212
        %v4261 = vpack.c.b16 %v4215, %v4214
        %v4262 = vpack.c.b16 %v4217, %v4216
        %v4263 = vpack.c.b16 %v4219, %v4218
        %v4264 = vpack.c.b16 %v4221, %v4220
        %v4265 = vpack.c.b16 %v4223, %v4222
        %v4266 = vpack.c.b16 %v4225, %v4224
        %v4267 = vpack.c.b16 %v4227, %v4226
        %v4268 = vpack.c.b16 %v4229, %v4228
        %v4269 = vpack.c.b16 %v4231, %v4230
        %v4270 = vpack.c.b16 %v4233, %v4232
        %v4271 = vpack.c.b16 %v4235, %v4234
        %v4272 = vpack.c.b16 %v4237, %v4236
        %v4273 = vpack.c.b16 %v4239, %v4238
        %v4274 = vpack.c.b16 %v4241, %v4240
        %v4275 = vpack.c.b16 %v4243, %v4242
        %4308 = vmatprep.subr.bf16.mxu0 0
        %4309 = vmatpush1.bf16.msra.mxu0 %v4244
        %4310 = vmatprep.subr.bf16.mxu0 0
        %4311 = vmatpush1.bf16.msra.mxu0 %v4245
        %4312 = vmatprep.subr.bf16.mxu0 0
        %4313 = vmatpush1.bf16.msra.mxu0 %v4246
        %4314 = vmatprep.subr.bf16.mxu0 0
        %4315 = vmatpush1.bf16.msra.mxu0 %v4247
        %4316 = vmatprep.subr.bf16.mxu0 0
        %4317 = vmatpush1.bf16.msra.mxu0 %v4248
        %4318 = vmatprep.subr.bf16.mxu0 0
        %4319 = vmatpush1.bf16.msra.mxu0 %v4249
        %4320 = vmatprep.subr.bf16.mxu0 0
        %4321 = vmatpush1.bf16.msra.mxu0 %v4250
        %4322 = vmatprep.subr.bf16.mxu0 0
        %4323 = vmatpush1.bf16.msra.mxu0 %v4251
        %4324 = vmatprep.subr.bf16.mxu0 0
        %4325 = vmatpush1.bf16.msra.mxu0 %v4252
        %4326 = vmatprep.subr.bf16.mxu0 0
        %4327 = vmatpush1.bf16.msra.mxu0 %v4253
        %4328 = vmatprep.subr.bf16.mxu0 0
        %4329 = vmatpush1.bf16.msra.mxu0 %v4254
        %4330 = vmatprep.subr.bf16.mxu0 0
        %4331 = vmatpush1.bf16.msra.mxu0 %v4255
        %4332 = vmatprep.subr.bf16.mxu0 0
        %4333 = vmatpush1.bf16.msra.mxu0 %v4256
        %4334 = vmatprep.subr.bf16.mxu0 0
        %4335 = vmatpush1.bf16.msra.mxu0 %v4257
        %4336 = vmatprep.subr.bf16.mxu0 0
        %4337 = vmatpush1.bf16.msra.mxu0 %v4258
        %4338 = vmatprep.subr.bf16.mxu0 0
        %4339 = vmatpush1.bf16.msra.mxu0 %v4259
        %4340 = vmatprep.mubr.bf16.mxu0 %v4109
        %4341 = vmatmul.mubr.bf16.gmra.mrb[0].mxu0 %v4108
        %v4342 = vpop.f32.mrb[0].mxu0
        %v4343 = vadd.f32 %v4115, %v4342
        %v4344 = vpop.f32.mrb[0].mxu0
        %v4345 = vpop.f32.mrb[0].mxu0
        %v4346 = vpop.f32.mrb[0].mxu0
        %4347 = vdwg.mxu0
        %4348 = vmatprep.subr.bf16.mxu0 0
        %4349 = vmatpush1.bf16.msra.mxu0 %v4260
        %4350 = vmatprep.subr.bf16.mxu0 0
        %4351 = vmatpush1.bf16.msra.mxu0 %v4261
        %4352 = vmatprep.subr.bf16.mxu0 0
        %4353 = vmatpush1.bf16.msra.mxu0 %v4262
        %4354 = vmatprep.subr.bf16.mxu0 0
        %4355 = vmatpush1.bf16.msra.mxu0 %v4263
        %4356 = vmatprep.subr.bf16.mxu0 0
        %4357 = vmatpush1.bf16.msra.mxu0 %v4264
        %4358 = vmatprep.subr.bf16.mxu0 0
        %4359 = vmatpush1.bf16.msra.mxu0 %v4265
        %4360 = vmatprep.subr.bf16.mxu0 0
        %4361 = vmatpush1.bf16.msra.mxu0 %v4266
        %4362 = vmatprep.subr.bf16.mxu0 0
        %4363 = vmatpush1.bf16.msra.mxu0 %v4267
        %4364 = vmatprep.subr.bf16.mxu0 0
        %4365 = vmatpush1.bf16.msra.mxu0 %v4268
        %4366 = vmatprep.subr.bf16.mxu0 0
        %4367 = vmatpush1.bf16.msra.mxu0 %v4269
        %4368 = vmatprep.subr.bf16.mxu0 0
        %4369 = vmatpush1.bf16.msra.mxu0 %v4270
        %4370 = vmatprep.subr.bf16.mxu0 0
        %4371 = vmatpush1.bf16.msra.mxu0 %v4271
        %4372 = vmatprep.subr.bf16.mxu0 0
        %4373 = vmatpush1.bf16.msra.mxu0 %v4272
        %4374 = vmatprep.subr.bf16.mxu0 0
        %4375 = vmatpush1.bf16.msra.mxu0 %v4273
        %4376 = vmatprep.subr.bf16.mxu0 0
        %4377 = vmatpush1.bf16.msra.mxu0 %v4274
        %4378 = vmatprep.subr.bf16.mxu0 0
        %4379 = vmatpush1.bf16.msra.mxu0 %v4275
        %4380 = vmatprep.mubr.bf16.mxu0 %v4111
        %4381 = vmatmul.mubr.bf16.gmra.mrb[0].mxu0 %v4110
        %v4382 = vpop.f32.mrb[0].mxu0
        %v4383 = vadd.f32 %v4343, %v4382
        %v4384 = vpop.f32.mrb[0].mxu0
        %v4385 = vpop.f32.mrb[0].mxu0
        %v4386 = vpop.f32.mrb[0].mxu0
        %4387 = vdwg.mxu0
        %s4388 = scalar_lea.vmem [#allocation6], 2048
        %v4389 = vld [vmem:[%s4388] sm:$0xf]
        %v4390 = vld [vmem:[%s4388 + $0x4] sm:$0xf]
        %v4391 = vld [vmem:[%s4388 + $0x8] sm:$0xf]
        %v4392 = vld [vmem:[%s4388 + $0xc] sm:$0xf]
        %v4393 = vld [vmem:[%s4388 + $0x10] sm:$0xf]
        %v4394 = vld [vmem:[%s4388 + $0x14] sm:$0xf]
        %v4395 = vld [vmem:[%s4388 + $0x18] sm:$0xf]
        %v4396 = vld [vmem:[%s4388 + $0x1c] sm:$0xf]
        %v4397 = vld [vmem:[%s4388 + $0x20] sm:$0xf]
        %v4398 = vld [vmem:[%s4388 + $0x24] sm:$0xf]
        %v4399 = vld [vmem:[%s4388 + $0x28] sm:$0xf]
        %v4400 = vld [vmem:[%s4388 + $0x2c] sm:$0xf]
        %v4401 = vld [vmem:[%s4388 + $0x30] sm:$0xf]
        %v4402 = vld [vmem:[%s4388 + $0x34] sm:$0xf]
        %v4403 = vld [vmem:[%s4388 + $0x38] sm:$0xf]
        %v4404 = vld [vmem:[%s4388 + $0x3c] sm:$0xf]
        %v4405 = vld [vmem:[%s4388 + $0x40] sm:$0xf]
        %v4406 = vld [vmem:[%s4388 + $0x44] sm:$0xf]
        %v4407 = vld [vmem:[%s4388 + $0x48] sm:$0xf]
        %v4408 = vld [vmem:[%s4388 + $0x4c] sm:$0xf]
        %v4409 = vld [vmem:[%s4388 + $0x50] sm:$0xf]
        %v4410 = vld [vmem:[%s4388 + $0x54] sm:$0xf]
        %v4411 = vld [vmem:[%s4388 + $0x58] sm:$0xf]
        %v4412 = vld [vmem:[%s4388 + $0x5c] sm:$0xf]
        %v4413 = vld [vmem:[%s4388 + $0x60] sm:$0xf]
        %v4414 = vld [vmem:[%s4388 + $0x64] sm:$0xf]
        %v4415 = vld [vmem:[%s4388 + $0x68] sm:$0xf]
        %v4416 = vld [vmem:[%s4388 + $0x6c] sm:$0xf]
        %v4417 = vld [vmem:[%s4388 + $0x70] sm:$0xf]
        %v4418 = vld [vmem:[%s4388 + $0x74] sm:$0xf]
        %v4419 = vld [vmem:[%s4388 + $0x78] sm:$0xf]
        %v4420 = vld [vmem:[%s4388 + $0x7c] sm:$0xf]
        %v4421 = vld [vmem:[%s4388 + $0x80] sm:$0xf]
        %v4422 = vld [vmem:[%s4388 + $0x84] sm:$0xf]
        %v4423 = vld [vmem:[%s4388 + $0x88] sm:$0xf]
        %v4424 = vld [vmem:[%s4388 + $0x8c] sm:$0xf]
        %v4425 = vld [vmem:[%s4388 + $0x90] sm:$0xf]
        %v4426 = vld [vmem:[%s4388 + $0x94] sm:$0xf]
        %v4427 = vld [vmem:[%s4388 + $0x98] sm:$0xf]
        %v4428 = vld [vmem:[%s4388 + $0x9c] sm:$0xf]
        %v4429 = vld [vmem:[%s4388 + $0xa0] sm:$0xf]
        %v4430 = vld [vmem:[%s4388 + $0xa4] sm:$0xf]
        %v4431 = vld [vmem:[%s4388 + $0xa8] sm:$0xf]
        %v4432 = vld [vmem:[%s4388 + $0xac] sm:$0xf]
        %v4433 = vld [vmem:[%s4388 + $0xb0] sm:$0xf]
        %v4434 = vld [vmem:[%s4388 + $0xb4] sm:$0xf]
        %v4435 = vld [vmem:[%s4388 + $0xb8] sm:$0xf]
        %v4436 = vld [vmem:[%s4388 + $0xbc] sm:$0xf]
        %v4437 = vld [vmem:[%s4388 + $0xc0] sm:$0xf]
        %v4438 = vld [vmem:[%s4388 + $0xc4] sm:$0xf]
        %v4439 = vld [vmem:[%s4388 + $0xc8] sm:$0xf]
        %v4440 = vld [vmem:[%s4388 + $0xcc] sm:$0xf]
        %v4441 = vld [vmem:[%s4388 + $0xd0] sm:$0xf]
        %v4442 = vld [vmem:[%s4388 + $0xd4] sm:$0xf]
        %v4443 = vld [vmem:[%s4388 + $0xd8] sm:$0xf]
        %v4444 = vld [vmem:[%s4388 + $0xdc] sm:$0xf]
        %v4445 = vld [vmem:[%s4388 + $0xe0] sm:$0xf]
        %v4446 = vld [vmem:[%s4388 + $0xe4] sm:$0xf]
        %v4447 = vld [vmem:[%s4388 + $0xe8] sm:$0xf]
        %v4448 = vld [vmem:[%s4388 + $0xec] sm:$0xf]
        %v4449 = vld [vmem:[%s4388 + $0xf0] sm:$0xf]
        %v4450 = vld [vmem:[%s4388 + $0xf4] sm:$0xf]
        %v4451 = vld [vmem:[%s4388 + $0xf8] sm:$0xf]
        %v4452 = vld [vmem:[%s4388 + $0xfc] sm:$0xf]
        %v4453 = vld [vmem:[#allocation9 + $0x1c] sm:$0x1]
        %v4454 = vld [vmem:[%s1799] ss:$2 sm:$0xf]
        %v4455 = vld [vmem:[%s1807] ss:$2 sm:$0xf]
        %v4456 = vld [vmem:[%s1815] ss:$2 sm:$0xf]
        %v4457 = vld [vmem:[%s1823] ss:$2 sm:$0xf]
        %v4458 = vpack.c.bf16 %v4454, %v4454
        %v4459 = vpack.c.bf16 %v4455, %v4455
        %v4460 = vpack.c.bf16 %v4456, %v4456
        %v4461 = vpack.c.bf16 %v4457, %v4457
        %v4462 = vlaneseq
        %v4463 = vshrl.u32 %v4462, 7
        %v4464 = vsub.s32 0, %v4463
        %v4465 = vrot.slane %v4453, %v4464
        %v4530 = vunpack.c.l.b16 %v4389
        %v4531 = vunpack.c.l.b16 %v4390
        %v4532 = vunpack.c.l.b16 %v4391
        %v4533 = vunpack.c.l.b16 %v4392
        %v4534 = vunpack.c.l.b16 %v4393
        %v4535 = vunpack.c.l.b16 %v4394
        %v4536 = vunpack.c.l.b16 %v4395
        %v4537 = vunpack.c.l.b16 %v4396
        %v4538 = vunpack.c.l.b16 %v4397
        %v4539 = vunpack.c.l.b16 %v4398
        %v4540 = vunpack.c.l.b16 %v4399
        %v4541 = vunpack.c.l.b16 %v4400
        %v4542 = vunpack.c.l.b16 %v4401
        %v4543 = vunpack.c.l.b16 %v4402
        %v4544 = vunpack.c.l.b16 %v4403
        %v4545 = vunpack.c.l.b16 %v4404
        %v4546 = vunpack.c.l.b16 %v4405
        %v4547 = vunpack.c.l.b16 %v4406
        %v4548 = vunpack.c.l.b16 %v4407
        %v4549 = vunpack.c.l.b16 %v4408
        %v4550 = vunpack.c.l.b16 %v4409
        %v4551 = vunpack.c.l.b16 %v4410
        %v4552 = vunpack.c.l.b16 %v4411
        %v4553 = vunpack.c.l.b16 %v4412
        %v4554 = vunpack.c.l.b16 %v4413
        %v4555 = vunpack.c.l.b16 %v4414
        %v4556 = vunpack.c.l.b16 %v4415
        %v4557 = vunpack.c.l.b16 %v4416
        %v4558 = vunpack.c.l.b16 %v4417
        %v4559 = vunpack.c.l.b16 %v4418
        %v4560 = vunpack.c.l.b16 %v4419
        %v4561 = vunpack.c.l.b16 %v4420
        %v4562 = vunpack.c.l.b16 %v4421
        %v4563 = vunpack.c.l.b16 %v4422
        %v4564 = vunpack.c.l.b16 %v4423
        %v4565 = vunpack.c.l.b16 %v4424
        %v4566 = vunpack.c.l.b16 %v4425
        %v4567 = vunpack.c.l.b16 %v4426
        %v4568 = vunpack.c.l.b16 %v4427
        %v4569 = vunpack.c.l.b16 %v4428
        %v4570 = vunpack.c.l.b16 %v4429
        %v4571 = vunpack.c.l.b16 %v4430
        %v4572 = vunpack.c.l.b16 %v4431
        %v4573 = vunpack.c.l.b16 %v4432
        %v4574 = vunpack.c.l.b16 %v4433
        %v4575 = vunpack.c.l.b16 %v4434
        %v4576 = vunpack.c.l.b16 %v4435
        %v4577 = vunpack.c.l.b16 %v4436
        %v4578 = vunpack.c.l.b16 %v4437
        %v4579 = vunpack.c.l.b16 %v4438
        %v4580 = vunpack.c.l.b16 %v4439
        %v4581 = vunpack.c.l.b16 %v4440
        %v4582 = vunpack.c.l.b16 %v4441
        %v4583 = vunpack.c.l.b16 %v4442
        %v4584 = vunpack.c.l.b16 %v4443
        %v4585 = vunpack.c.l.b16 %v4444
        %v4586 = vunpack.c.l.b16 %v4445
        %v4587 = vunpack.c.l.b16 %v4446
        %v4588 = vunpack.c.l.b16 %v4447
        %v4589 = vunpack.c.l.b16 %v4448
        %v4590 = vunpack.c.l.b16 %v4449
        %v4591 = vunpack.c.l.b16 %v4450
        %v4592 = vunpack.c.l.b16 %v4451
        %v4593 = vunpack.c.l.b16 %v4452
        %v4594 = vpack.c.b16 %v4531, %v4530
        %v4595 = vpack.c.b16 %v4533, %v4532
        %v4596 = vpack.c.b16 %v4535, %v4534
        %v4597 = vpack.c.b16 %v4537, %v4536
        %v4598 = vpack.c.b16 %v4539, %v4538
        %v4599 = vpack.c.b16 %v4541, %v4540
        %v4600 = vpack.c.b16 %v4543, %v4542
        %v4601 = vpack.c.b16 %v4545, %v4544
        %v4602 = vpack.c.b16 %v4547, %v4546
        %v4603 = vpack.c.b16 %v4549, %v4548
        %v4604 = vpack.c.b16 %v4551, %v4550
        %v4605 = vpack.c.b16 %v4553, %v4552
        %v4606 = vpack.c.b16 %v4555, %v4554
        %v4607 = vpack.c.b16 %v4557, %v4556
        %v4608 = vpack.c.b16 %v4559, %v4558
        %v4609 = vpack.c.b16 %v4561, %v4560
        %v4610 = vpack.c.b16 %v4563, %v4562
        %v4611 = vpack.c.b16 %v4565, %v4564
        %v4612 = vpack.c.b16 %v4567, %v4566
        %v4613 = vpack.c.b16 %v4569, %v4568
        %v4614 = vpack.c.b16 %v4571, %v4570
        %v4615 = vpack.c.b16 %v4573, %v4572
        %v4616 = vpack.c.b16 %v4575, %v4574
        %v4617 = vpack.c.b16 %v4577, %v4576
        %v4618 = vpack.c.b16 %v4579, %v4578
        %v4619 = vpack.c.b16 %v4581, %v4580
        %v4620 = vpack.c.b16 %v4583, %v4582
        %v4621 = vpack.c.b16 %v4585, %v4584
        %v4622 = vpack.c.b16 %v4587, %v4586
        %v4623 = vpack.c.b16 %v4589, %v4588
        %v4624 = vpack.c.b16 %v4591, %v4590
        %v4625 = vpack.c.b16 %v4593, %v4592
        %4658 = vmatprep.subr.bf16.mxu0 0
        %4659 = vmatpush1.bf16.msra.mxu0 %v4594
        %4660 = vmatprep.subr.bf16.mxu0 0
        %4661 = vmatpush1.bf16.msra.mxu0 %v4595
        %4662 = vmatprep.subr.bf16.mxu0 0
        %4663 = vmatpush1.bf16.msra.mxu0 %v4596
        %4664 = vmatprep.subr.bf16.mxu0 0
        %4665 = vmatpush1.bf16.msra.mxu0 %v4597
        %4666 = vmatprep.subr.bf16.mxu0 0
        %4667 = vmatpush1.bf16.msra.mxu0 %v4598
        %4668 = vmatprep.subr.bf16.mxu0 0
        %4669 = vmatpush1.bf16.msra.mxu0 %v4599
        %4670 = vmatprep.subr.bf16.mxu0 0
        %4671 = vmatpush1.bf16.msra.mxu0 %v4600
        %4672 = vmatprep.subr.bf16.mxu0 0
        %4673 = vmatpush1.bf16.msra.mxu0 %v4601
        %4674 = vmatprep.subr.bf16.mxu0 0
        %4675 = vmatpush1.bf16.msra.mxu0 %v4602
        %4676 = vmatprep.subr.bf16.mxu0 0
        %4677 = vmatpush1.bf16.msra.mxu0 %v4603
        %4678 = vmatprep.subr.bf16.mxu0 0
        %4679 = vmatpush1.bf16.msra.mxu0 %v4604
        %4680 = vmatprep.subr.bf16.mxu0 0
        %4681 = vmatpush1.bf16.msra.mxu0 %v4605
        %4682 = vmatprep.subr.bf16.mxu0 0
        %4683 = vmatpush1.bf16.msra.mxu0 %v4606
        %4684 = vmatprep.subr.bf16.mxu0 0
        %4685 = vmatpush1.bf16.msra.mxu0 %v4607
        %4686 = vmatprep.subr.bf16.mxu0 0
        %4687 = vmatpush1.bf16.msra.mxu0 %v4608
        %4688 = vmatprep.subr.bf16.mxu0 0
        %4689 = vmatpush1.bf16.msra.mxu0 %v4609
        %4690 = vmatprep.mubr.bf16.mxu0 %v4459
        %4691 = vmatmul.mubr.bf16.gmra.mrb[0].mxu0 %v4458
        %v4692 = vpop.f32.mrb[0].mxu0
        %v4693 = vadd.f32 %v4465, %v4692
        %v4694 = vpop.f32.mrb[0].mxu0
        %v4695 = vpop.f32.mrb[0].mxu0
        %v4696 = vpop.f32.mrb[0].mxu0
        %4697 = vdwg.mxu0
        %4698 = vmatprep.subr.bf16.mxu0 0
        %4699 = vmatpush1.bf16.msra.mxu0 %v4610
        %4700 = vmatprep.subr.bf16.mxu0 0
        %4701 = vmatpush1.bf16.msra.mxu0 %v4611
        %4702 = vmatprep.subr.bf16.mxu0 0
        %4703 = vmatpush1.bf16.msra.mxu0 %v4612
        %4704 = vmatprep.subr.bf16.mxu0 0
        %4705 = vmatpush1.bf16.msra.mxu0 %v4613
        %4706 = vmatprep.subr.bf16.mxu0 0
        %4707 = vmatpush1.bf16.msra.mxu0 %v4614
        %4708 = vmatprep.subr.bf16.mxu0 0
        %4709 = vmatpush1.bf16.msra.mxu0 %v4615
        %4710 = vmatprep.subr.bf16.mxu0 0
        %4711 = vmatpush1.bf16.msra.mxu0 %v4616
        %4712 = vmatprep.subr.bf16.mxu0 0
        %4713 = vmatpush1.bf16.msra.mxu0 %v4617
        %4714 = vmatprep.subr.bf16.mxu0 0
        %4715 = vmatpush1.bf16.msra.mxu0 %v4618
        %4716 = vmatprep.subr.bf16.mxu0 0
        %4717 = vmatpush1.bf16.msra.mxu0 %v4619
        %4718 = vmatprep.subr.bf16.mxu0 0
        %4719 = vmatpush1.bf16.msra.mxu0 %v4620
        %4720 = vmatprep.subr.bf16.mxu0 0
        %4721 = vmatpush1.bf16.msra.mxu0 %v4621
        %4722 = vmatprep.subr.bf16.mxu0 0
        %4723 = vmatpush1.bf16.msra.mxu0 %v4622
        %4724 = vmatprep.subr.bf16.mxu0 0
        %4725 = vmatpush1.bf16.msra.mxu0 %v4623
        %4726 = vmatprep.subr.bf16.mxu0 0
        %4727 = vmatpush1.bf16.msra.mxu0 %v4624
        %4728 = vmatprep.subr.bf16.mxu0 0
        %4729 = vmatpush1.bf16.msra.mxu0 %v4625
        %4730 = vmatprep.mubr.bf16.mxu0 %v4461
        %4731 = vmatmul.mubr.bf16.gmra.mrb[0].mxu0 %v4460
        %v4732 = vpop.f32.mrb[0].mxu0
        %v4733 = vadd.f32 %v4693, %v4732
        %v4734 = vpop.f32.mrb[0].mxu0
        %v4735 = vpop.f32.mrb[0].mxu0
        %v4736 = vpop.f32.mrb[0].mxu0
        %4737 = vdwg.mxu0
        %v4738 = vmul.f32 %v4733, 2.0
        %v4739 = vmul.f32 %v4383, 0.3
        %v4740 = vadd.f32 %v4738, %v4739
        %v4741 = vld [vmem:[#allocation9 + $0x1d] sm:$0x1]
        %v4742 = vlaneseq
        %v4743 = vshrl.u32 %v4742, 7
        %v4744 = vsub.s32 0, %v4743
        %v4745 = vrot.slane %v4741, %v4744
        %v4746 = vmul.f32 %v4740, %v4745
        %v4747 = vld [vmem:[#allocation9 + $0x1e] sm:$0x1]
        %v4748 = vlaneseq
        %v4749 = vshrl.u32 %v4748, 7
        %v4750 = vsub.s32 0, %v4749
        %v4751 = vrot.slane %v4747, %v4750
        %v4752 = vadd.f32 %v4746, %v4751
        %v4753 = vmax.f32 %v4752, 0.0
        %v4754 = vpack.c.bf16 %v4753, %v4753
        %s4755 = scalar_lea.vmem [#allocation8], 256
        %v4756 = vld [vmem:[%s4755] sm:$0xf]
        %v4757 = vld [vmem:[%s4755 + $0x4] sm:$0xf]
        %v4758 = vld [vmem:[%s4755 + $0x8] sm:$0xf]
        %v4759 = vld [vmem:[%s4755 + $0xc] sm:$0xf]
        %v4760 = vld [vmem:[%s4755 + $0x10] sm:$0xf]
        %v4761 = vld [vmem:[%s4755 + $0x14] sm:$0xf]
        %v4762 = vld [vmem:[%s4755 + $0x18] sm:$0xf]
        %v4763 = vld [vmem:[%s4755 + $0x1c] sm:$0xf]
        %v4764 = vld [vmem:[%s4755 + $0x20] sm:$0xf]
        %v4765 = vld [vmem:[%s4755 + $0x24] sm:$0xf]
        %v4766 = vld [vmem:[%s4755 + $0x28] sm:$0xf]
        %v4767 = vld [vmem:[%s4755 + $0x2c] sm:$0xf]
        %v4768 = vld [vmem:[%s4755 + $0x30] sm:$0xf]
        %v4769 = vld [vmem:[%s4755 + $0x34] sm:$0xf]
        %v4770 = vld [vmem:[%s4755 + $0x38] sm:$0xf]
        %v4771 = vld [vmem:[%s4755 + $0x3c] sm:$0xf]
        %v4772 = vld [vmem:[#allocation9 + $0x1f] sm:$0x1]
        %v4773 = vlaneseq
        %v4774 = vshrl.u32 %v4773, 7
        %v4775 = vsub.s32 0, %v4774
        %v4776 = vrot.slane %v4772, %v4775
        %v4793 = vunpack.c.l.b16 %v4756
        %v4794 = vunpack.c.l.b16 %v4757
        %v4795 = vunpack.c.l.b16 %v4758
        %v4796 = vunpack.c.l.b16 %v4759
        %v4797 = vunpack.c.l.b16 %v4760
        %v4798 = vunpack.c.l.b16 %v4761
        %v4799 = vunpack.c.l.b16 %v4762
        %v4800 = vunpack.c.l.b16 %v4763
        %v4801 = vunpack.c.l.b16 %v4764
        %v4802 = vunpack.c.l.b16 %v4765
        %v4803 = vunpack.c.l.b16 %v4766
        %v4804 = vunpack.c.l.b16 %v4767
        %v4805 = vunpack.c.l.b16 %v4768
        %v4806 = vunpack.c.l.b16 %v4769
        %v4807 = vunpack.c.l.b16 %v4770
        %v4808 = vunpack.c.l.b16 %v4771
        %v4809 = vpack.c.b16 %v4794, %v4793
        %v4810 = vpack.c.b16 %v4796, %v4795
        %v4811 = vpack.c.b16 %v4798, %v4797
        %v4812 = vpack.c.b16 %v4800, %v4799
        %v4813 = vpack.c.b16 %v4802, %v4801
        %v4814 = vpack.c.b16 %v4804, %v4803
        %v4815 = vpack.c.b16 %v4806, %v4805
        %v4816 = vpack.c.b16 %v4808, %v4807
        %4825 = vmatprep.subr.bf16.mxu0 0
        %4826 = vmatpush1.bf16.msra.mxu0 %v4809
        %4827 = vmatprep.subr.bf16.mxu0 0
        %4828 = vmatpush1.bf16.msra.mxu0 %v4810
        %4829 = vmatprep.subr.bf16.mxu0 0
        %4830 = vmatpush1.bf16.msra.mxu0 %v4811
        %4831 = vmatprep.subr.bf16.mxu0 0
        %4832 = vmatpush1.bf16.msra.mxu0 %v4812
        %4833 = vmatprep.subr.bf16.mxu0 0
        %4834 = vmatpush1.bf16.msra.mxu0 %v4813
        %4835 = vmatprep.subr.bf16.mxu0 0
        %4836 = vmatpush1.bf16.msra.mxu0 %v4814
        %4837 = vmatprep.subr.bf16.mxu0 0
        %4838 = vmatpush1.bf16.msra.mxu0 %v4815
        %4839 = vmatprep.subr.bf16.mxu0 0
        %4840 = vmatpush1.bf16.msra.mxu0 %v4816
        %4841 = vmatprep.subr.bf16.mxu0 0
        %4842 = vmatpush1.bf16.msra.mxu0 0
        %4843 = vmatprep.subr.bf16.mxu0 0
        %4844 = vmatpush1.bf16.msra.mxu0 0
        %4845 = vmatprep.subr.bf16.mxu0 0
        %4846 = vmatpush1.bf16.msra.mxu0 0
        %4847 = vmatprep.subr.bf16.mxu0 0
        %4848 = vmatpush1.bf16.msra.mxu0 0
        %4849 = vmatprep.subr.bf16.mxu0 0
        %4850 = vmatpush1.bf16.msra.mxu0 0
        %4851 = vmatprep.subr.bf16.mxu0 0
        %4852 = vmatpush1.bf16.msra.mxu0 0
        %4853 = vmatprep.subr.bf16.mxu0 0
        %4854 = vmatpush1.bf16.msra.mxu0 0
        %4855 = vmatprep.subr.bf16.mxu0 0
        %4856 = vmatpush1.bf16.msra.mxu0 0
        %4857 = vmatprep.mubr.bf16.mxu0 0
        %4858 = vmatmul.mubr.bf16.gmra.mrb[0].mxu0 %v4754
        %v4859 = vpop.f32.mrb[0].mxu0
        %v4860 = vadd.f32 %v4776, %v4859
        %v4861 = vpop.f32.mrb[0].mxu0
        %v4862 = vpop.f32.mrb[0].mxu0
        %v4863 = vpop.f32.mrb[0].mxu0
        %4864 = vdwg.mxu0
        %v4865 = vld [vmem:[#allocation9 + $0x20] sm:$0x1]
        %v4866 = vlaneseq
        %v4867 = vshrl.u32 %v4866, 7
        %v4868 = vsub.s32 0, %v4867
        %v4869 = vrot.slane %v4865, %v4868
        %v4870 = vmul.f32 %v4860, %v4869
        %v4871 = vld [vmem:[#allocation9 + $0x21] sm:$0x1]
        %v4872 = vlaneseq
        %v4873 = vshrl.u32 %v4872, 7
        %v4874 = vsub.s32 0, %v4873
        %v4875 = vrot.slane %v4871, %v4874
        %v4876 = vadd.f32 %v4870, %v4875
        %v4877 = vmax.f32 %v4876, 0.0
        %4878 = vst [vmem:[#allocation2] sm:$0xf] %v4877
        %4879 = vst [vmem:[#allocation3] sm:$0xf] %v4740
        %s4880 = scalar_lea.vmem [#allocation6], 2304
        %v4881 = vld [vmem:[%s4880] sm:$0xf]
        %v4882 = vld [vmem:[%s4880 + $0x4] sm:$0xf]
        %v4883 = vld [vmem:[%s4880 + $0x8] sm:$0xf]
        %v4884 = vld [vmem:[%s4880 + $0xc] sm:$0xf]
        %v4885 = vld [vmem:[%s4880 + $0x10] sm:$0xf]
        %v4886 = vld [vmem:[%s4880 + $0x14] sm:$0xf]
        %v4887 = vld [vmem:[%s4880 + $0x18] sm:$0xf]
        %v4888 = vld [vmem:[%s4880 + $0x1c] sm:$0xf]
        %v4889 = vld [vmem:[%s4880 + $0x20] sm:$0xf]
        %v4890 = vld [vmem:[%s4880 + $0x24] sm:$0xf]
        %v4891 = vld [vmem:[%s4880 + $0x28] sm:$0xf]
        %v4892 = vld [vmem:[%s4880 + $0x2c] sm:$0xf]
        %v4893 = vld [vmem:[%s4880 + $0x30] sm:$0xf]
        %v4894 = vld [vmem:[%s4880 + $0x34] sm:$0xf]
        %v4895 = vld [vmem:[%s4880 + $0x38] sm:$0xf]
        %v4896 = vld [vmem:[%s4880 + $0x3c] sm:$0xf]
        %v4897 = vld [vmem:[%s4880 + $0x40] sm:$0xf]
        %v4898 = vld [vmem:[%s4880 + $0x44] sm:$0xf]
        %v4899 = vld [vmem:[%s4880 + $0x48] sm:$0xf]
        %v4900 = vld [vmem:[%s4880 + $0x4c] sm:$0xf]
        %v4901 = vld [vmem:[%s4880 + $0x50] sm:$0xf]
        %v4902 = vld [vmem:[%s4880 + $0x54] sm:$0xf]
        %v4903 = vld [vmem:[%s4880 + $0x58] sm:$0xf]
        %v4904 = vld [vmem:[%s4880 + $0x5c] sm:$0xf]
        %v4905 = vld [vmem:[%s4880 + $0x60] sm:$0xf]
        %v4906 = vld [vmem:[%s4880 + $0x64] sm:$0xf]
        %v4907 = vld [vmem:[%s4880 + $0x68] sm:$0xf]
        %v4908 = vld [vmem:[%s4880 + $0x6c] sm:$0xf]
        %v4909 = vld [vmem:[%s4880 + $0x70] sm:$0xf]
        %v4910 = vld [vmem:[%s4880 + $0x74] sm:$0xf]
        %v4911 = vld [vmem:[%s4880 + $0x78] sm:$0xf]
        %v4912 = vld [vmem:[%s4880 + $0x7c] sm:$0xf]
        %v4913 = vld [vmem:[%s4880 + $0x80] sm:$0xf]
        %v4914 = vld [vmem:[%s4880 + $0x84] sm:$0xf]
        %v4915 = vld [vmem:[%s4880 + $0x88] sm:$0xf]
        %v4916 = vld [vmem:[%s4880 + $0x8c] sm:$0xf]
        %v4917 = vld [vmem:[%s4880 + $0x90] sm:$0xf]
        %v4918 = vld [vmem:[%s4880 + $0x94] sm:$0xf]
        %v4919 = vld [vmem:[%s4880 + $0x98] sm:$0xf]
        %v4920 = vld [vmem:[%s4880 + $0x9c] sm:$0xf]
        %v4921 = vld [vmem:[%s4880 + $0xa0] sm:$0xf]
        %v4922 = vld [vmem:[%s4880 + $0xa4] sm:$0xf]
        %v4923 = vld [vmem:[%s4880 + $0xa8] sm:$0xf]
        %v4924 = vld [vmem:[%s4880 + $0xac] sm:$0xf]
        %v4925 = vld [vmem:[%s4880 + $0xb0] sm:$0xf]
        %v4926 = vld [vmem:[%s4880 + $0xb4] sm:$0xf]
        %v4927 = vld [vmem:[%s4880 + $0xb8] sm:$0xf]
        %v4928 = vld [vmem:[%s4880 + $0xbc] sm:$0xf]
        %v4929 = vld [vmem:[%s4880 + $0xc0] sm:$0xf]
        %v4930 = vld [vmem:[%s4880 + $0xc4] sm:$0xf]
        %v4931 = vld [vmem:[%s4880 + $0xc8] sm:$0xf]
        %v4932 = vld [vmem:[%s4880 + $0xcc] sm:$0xf]
        %v4933 = vld [vmem:[%s4880 + $0xd0] sm:$0xf]
        %v4934 = vld [vmem:[%s4880 + $0xd4] sm:$0xf]
        %v4935 = vld [vmem:[%s4880 + $0xd8] sm:$0xf]
        %v4936 = vld [vmem:[%s4880 + $0xdc] sm:$0xf]
        %v4937 = vld [vmem:[%s4880 + $0xe0] sm:$0xf]
        %v4938 = vld [vmem:[%s4880 + $0xe4] sm:$0xf]
        %v4939 = vld [vmem:[%s4880 + $0xe8] sm:$0xf]
        %v4940 = vld [vmem:[%s4880 + $0xec] sm:$0xf]
        %v4941 = vld [vmem:[%s4880 + $0xf0] sm:$0xf]
        %v4942 = vld [vmem:[%s4880 + $0xf4] sm:$0xf]
        %v4943 = vld [vmem:[%s4880 + $0xf8] sm:$0xf]
        %v4944 = vld [vmem:[%s4880 + $0xfc] sm:$0xf]
        %v4945 = vld [vmem:[#allocation9 + $0x22] sm:$0x1]
        %v4946 = vld [vmem:[#allocation2] ss:$2 sm:$0x1]
        %s4947 = scalar_lea.vmem [#allocation2], 1
        %v4948 = vld [vmem:[%s4947] ss:$2 sm:$0x1]
        %s4949 = scalar_lea.vmem [#allocation2], 2
        %v4950 = vld [vmem:[%s4949] ss:$2 sm:$0x1]
        %s4951 = scalar_lea.vmem [#allocation2], 3
        %v4952 = vld [vmem:[%s4951] ss:$2 sm:$0x1]
        %v4953 = vpack.c.bf16 %v4946, %v4946
        %v4954 = vpack.c.bf16 %v4948, %v4948
        %v4955 = vpack.c.bf16 %v4950, %v4950
        %v4956 = vpack.c.bf16 %v4952, %v4952
        %v5021 = vunpack.c.l.b16 %v4881
        %v5022 = vunpack.c.l.b16 %v4882
        %v5023 = vunpack.c.l.b16 %v4883
        %v5024 = vunpack.c.l.b16 %v4884
        %v5025 = vunpack.c.l.b16 %v4885
        %v5026 = vunpack.c.l.b16 %v4886
        %v5027 = vunpack.c.l.b16 %v4887
        %v5028 = vunpack.c.l.b16 %v4888
        %v5029 = vunpack.c.l.b16 %v4889
        %v5030 = vunpack.c.l.b16 %v4890
        %v5031 = vunpack.c.l.b16 %v4891
        %v5032 = vunpack.c.l.b16 %v4892
        %v5033 = vunpack.c.l.b16 %v4893
        %v5034 = vunpack.c.l.b16 %v4894
        %v5035 = vunpack.c.l.b16 %v4895
        %v5036 = vunpack.c.l.b16 %v4896
        %v5037 = vunpack.c.l.b16 %v4897
        %v5038 = vunpack.c.l.b16 %v4898
        %v5039 = vunpack.c.l.b16 %v4899
        %v5040 = vunpack.c.l.b16 %v4900
        %v5041 = vunpack.c.l.b16 %v4901
        %v5042 = vunpack.c.l.b16 %v4902
        %v5043 = vunpack.c.l.b16 %v4903
        %v5044 = vunpack.c.l.b16 %v4904
        %v5045 = vunpack.c.l.b16 %v4905
        %v5046 = vunpack.c.l.b16 %v4906
        %v5047 = vunpack.c.l.b16 %v4907
        %v5048 = vunpack.c.l.b16 %v4908
        %v5049 = vunpack.c.l.b16 %v4909
        %v5050 = vunpack.c.l.b16 %v4910
        %v5051 = vunpack.c.l.b16 %v4911
        %v5052 = vunpack.c.l.b16 %v4912
        %v5053 = vunpack.c.l.b16 %v4913
        %v5054 = vunpack.c.l.b16 %v4914
        %v5055 = vunpack.c.l.b16 %v4915
        %v5056 = vunpack.c.l.b16 %v4916
        %v5057 = vunpack.c.l.b16 %v4917
        %v5058 = vunpack.c.l.b16 %v4918
        %v5059 = vunpack.c.l.b16 %v4919
        %v5060 = vunpack.c.l.b16 %v4920
        %v5061 = vunpack.c.l.b16 %v4921
        %v5062 = vunpack.c.l.b16 %v4922
        %v5063 = vunpack.c.l.b16 %v4923
        %v5064 = vunpack.c.l.b16 %v4924
        %v5065 = vunpack.c.l.b16 %v4925
        %v5066 = vunpack.c.l.b16 %v4926
        %v5067 = vunpack.c.l.b16 %v4927
        %v5068 = vunpack.c.l.b16 %v4928
        %v5069 = vunpack.c.l.b16 %v4929
        %v5070 = vunpack.c.l.b16 %v4930
        %v5071 = vunpack.c.l.b16 %v4931
        %v5072 = vunpack.c.l.b16 %v4932
        %v5073 = vunpack.c.l.b16 %v4933
        %v5074 = vunpack.c.l.b16 %v4934
        %v5075 = vunpack.c.l.b16 %v4935
        %v5076 = vunpack.c.l.b16 %v4936
        %v5077 = vunpack.c.l.b16 %v4937
        %v5078 = vunpack.c.l.b16 %v4938
        %v5079 = vunpack.c.l.b16 %v4939
        %v5080 = vunpack.c.l.b16 %v4940
        %v5081 = vunpack.c.l.b16 %v4941
        %v5082 = vunpack.c.l.b16 %v4942
        %v5083 = vunpack.c.l.b16 %v4943
        %v5084 = vunpack.c.l.b16 %v4944
        %v5085 = vpack.c.b16 %v5022, %v5021
        %v5086 = vpack.c.b16 %v5024, %v5023
        %v5087 = vpack.c.b16 %v5026, %v5025
        %v5088 = vpack.c.b16 %v5028, %v5027
        %v5089 = vpack.c.b16 %v5030, %v5029
        %v5090 = vpack.c.b16 %v5032, %v5031
        %v5091 = vpack.c.b16 %v5034, %v5033
        %v5092 = vpack.c.b16 %v5036, %v5035
        %v5093 = vpack.c.b16 %v5038, %v5037
        %v5094 = vpack.c.b16 %v5040, %v5039
        %v5095 = vpack.c.b16 %v5042, %v5041
        %v5096 = vpack.c.b16 %v5044, %v5043
        %v5097 = vpack.c.b16 %v5046, %v5045
        %v5098 = vpack.c.b16 %v5048, %v5047
        %v5099 = vpack.c.b16 %v5050, %v5049
        %v5100 = vpack.c.b16 %v5052, %v5051
        %v5101 = vpack.c.b16 %v5054, %v5053
        %v5102 = vpack.c.b16 %v5056, %v5055
        %v5103 = vpack.c.b16 %v5058, %v5057
        %v5104 = vpack.c.b16 %v5060, %v5059
        %v5105 = vpack.c.b16 %v5062, %v5061
        %v5106 = vpack.c.b16 %v5064, %v5063
        %v5107 = vpack.c.b16 %v5066, %v5065
        %v5108 = vpack.c.b16 %v5068, %v5067
        %v5109 = vpack.c.b16 %v5070, %v5069
        %v5110 = vpack.c.b16 %v5072, %v5071
        %v5111 = vpack.c.b16 %v5074, %v5073
        %v5112 = vpack.c.b16 %v5076, %v5075
        %v5113 = vpack.c.b16 %v5078, %v5077
        %v5114 = vpack.c.b16 %v5080, %v5079
        %v5115 = vpack.c.b16 %v5082, %v5081
        %v5116 = vpack.c.b16 %v5084, %v5083
        %5149 = vmatprep.subr.bf16.mxu0 0
        %5150 = vmatpush1.bf16.msra.mxu0 %v5085
        %5151 = vmatprep.subr.bf16.mxu0 0
        %5152 = vmatpush1.bf16.msra.mxu0 %v5086
        %5153 = vmatprep.subr.bf16.mxu0 0
        %5154 = vmatpush1.bf16.msra.mxu0 %v5087
        %5155 = vmatprep.subr.bf16.mxu0 0
        %5156 = vmatpush1.bf16.msra.mxu0 %v5088
        %5157 = vmatprep.subr.bf16.mxu0 0
        %5158 = vmatpush1.bf16.msra.mxu0 %v5089
        %5159 = vmatprep.subr.bf16.mxu0 0
        %5160 = vmatpush1.bf16.msra.mxu0 %v5090
        %5161 = vmatprep.subr.bf16.mxu0 0
        %5162 = vmatpush1.bf16.msra.mxu0 %v5091
        %5163 = vmatprep.subr.bf16.mxu0 0
        %5164 = vmatpush1.bf16.msra.mxu0 %v5092
        %5165 = vmatprep.subr.bf16.mxu0 0
        %5166 = vmatpush1.bf16.msra.mxu0 %v5093
        %5167 = vmatprep.subr.bf16.mxu0 0
        %5168 = vmatpush1.bf16.msra.mxu0 %v5094
        %5169 = vmatprep.subr.bf16.mxu0 0
        %5170 = vmatpush1.bf16.msra.mxu0 %v5095
        %5171 = vmatprep.subr.bf16.mxu0 0
        %5172 = vmatpush1.bf16.msra.mxu0 %v5096
        %5173 = vmatprep.subr.bf16.mxu0 0
        %5174 = vmatpush1.bf16.msra.mxu0 %v5097
        %5175 = vmatprep.subr.bf16.mxu0 0
        %5176 = vmatpush1.bf16.msra.mxu0 %v5098
        %5177 = vmatprep.subr.bf16.mxu0 0
        %5178 = vmatpush1.bf16.msra.mxu0 %v5099
        %5179 = vmatprep.subr.bf16.mxu0 0
        %5180 = vmatpush1.bf16.msra.mxu0 %v5100
        %5181 = vmatprep.mubr.bf16.mxu0 %v4954
        %5182 = vmatmul.mubr.bf16.gmra.mrb[0].mxu0 %v4953
        %v5183 = vpop.f32.mrb[0].mxu0
        %v5184 = vadd.f32 %v4945, %v5183
        %v5185 = vpop.f32.mrb[0].mxu0
        %v5186 = vpop.f32.mrb[0].mxu0
        %v5187 = vpop.f32.mrb[0].mxu0
        %5188 = vdwg.mxu0
        %5189 = vmatprep.subr.bf16.mxu0 0
        %5190 = vmatpush1.bf16.msra.mxu0 %v5101
        %5191 = vmatprep.subr.bf16.mxu0 0
        %5192 = vmatpush1.bf16.msra.mxu0 %v5102
        %5193 = vmatprep.subr.bf16.mxu0 0
        %5194 = vmatpush1.bf16.msra.mxu0 %v5103
        %5195 = vmatprep.subr.bf16.mxu0 0
        %5196 = vmatpush1.bf16.msra.mxu0 %v5104
        %5197 = vmatprep.subr.bf16.mxu0 0
        %5198 = vmatpush1.bf16.msra.mxu0 %v5105
        %5199 = vmatprep.subr.bf16.mxu0 0
        %5200 = vmatpush1.bf16.msra.mxu0 %v5106
        %5201 = vmatprep.subr.bf16.mxu0 0
        %5202 = vmatpush1.bf16.msra.mxu0 %v5107
        %5203 = vmatprep.subr.bf16.mxu0 0
        %5204 = vmatpush1.bf16.msra.mxu0 %v5108
        %5205 = vmatprep.subr.bf16.mxu0 0
        %5206 = vmatpush1.bf16.msra.mxu0 %v5109
        %5207 = vmatprep.subr.bf16.mxu0 0
        %5208 = vmatpush1.bf16.msra.mxu0 %v5110
        %5209 = vmatprep.subr.bf16.mxu0 0
        %5210 = vmatpush1.bf16.msra.mxu0 %v5111
        %5211 = vmatprep.subr.bf16.mxu0 0
        %5212 = vmatpush1.bf16.msra.mxu0 %v5112
        %5213 = vmatprep.subr.bf16.mxu0 0
        %5214 = vmatpush1.bf16.msra.mxu0 %v5113
        %5215 = vmatprep.subr.bf16.mxu0 0
        %5216 = vmatpush1.bf16.msra.mxu0 %v5114
        %5217 = vmatprep.subr.bf16.mxu0 0
        %5218 = vmatpush1.bf16.msra.mxu0 %v5115
        %5219 = vmatprep.subr.bf16.mxu0 0
        %5220 = vmatpush1.bf16.msra.mxu0 %v5116
        %5221 = vmatprep.mubr.bf16.mxu0 %v4956
        %5222 = vmatmul.mubr.bf16.gmra.mrb[0].mxu0 %v4955
        %v5223 = vpop.f32.mrb[0].mxu0
        %v5224 = vadd.f32 %v5184, %v5223
        %v5225 = vpop.f32.mrb[0].mxu0
        %v5226 = vpop.f32.mrb[0].mxu0
        %v5227 = vpop.f32.mrb[0].mxu0
        %5228 = vdwg.mxu0
        %s5229 = scalar_lea.vmem [#allocation6], 2560
        %v5230 = vld [vmem:[%s5229] sm:$0xf]
        %v5231 = vld [vmem:[%s5229 + $0x4] sm:$0xf]
        %v5232 = vld [vmem:[%s5229 + $0x8] sm:$0xf]
        %v5233 = vld [vmem:[%s5229 + $0xc] sm:$0xf]
        %v5234 = vld [vmem:[%s5229 + $0x10] sm:$0xf]
        %v5235 = vld [vmem:[%s5229 + $0x14] sm:$0xf]
        %v5236 = vld [vmem:[%s5229 + $0x18] sm:$0xf]
        %v5237 = vld [vmem:[%s5229 + $0x1c] sm:$0xf]
        %v5238 = vld [vmem:[%s5229 + $0x20] sm:$0xf]
        %v5239 = vld [vmem:[%s5229 + $0x24] sm:$0xf]
        %v5240 = vld [vmem:[%s5229 + $0x28] sm:$0xf]
        %v5241 = vld [vmem:[%s5229 + $0x2c] sm:$0xf]
        %v5242 = vld [vmem:[%s5229 + $0x30] sm:$0xf]
        %v5243 = vld [vmem:[%s5229 + $0x34] sm:$0xf]
        %v5244 = vld [vmem:[%s5229 + $0x38] sm:$0xf]
        %v5245 = vld [vmem:[%s5229 + $0x3c] sm:$0xf]
        %v5246 = vld [vmem:[%s5229 + $0x40] sm:$0xf]
        %v5247 = vld [vmem:[%s5229 + $0x44] sm:$0xf]
        %v5248 = vld [vmem:[%s5229 + $0x48] sm:$0xf]
        %v5249 = vld [vmem:[%s5229 + $0x4c] sm:$0xf]
        %v5250 = vld [vmem:[%s5229 + $0x50] sm:$0xf]
        %v5251 = vld [vmem:[%s5229 + $0x54] sm:$0xf]
        %v5252 = vld [vmem:[%s5229 + $0x58] sm:$0xf]
        %v5253 = vld [vmem:[%s5229 + $0x5c] sm:$0xf]
        %v5254 = vld [vmem:[%s5229 + $0x60] sm:$0xf]
        %v5255 = vld [vmem:[%s5229 + $0x64] sm:$0xf]
        %v5256 = vld [vmem:[%s5229 + $0x68] sm:$0xf]
        %v5257 = vld [vmem:[%s5229 + $0x6c] sm:$0xf]
        %v5258 = vld [vmem:[%s5229 + $0x70] sm:$0xf]
        %v5259 = vld [vmem:[%s5229 + $0x74] sm:$0xf]
        %v5260 = vld [vmem:[%s5229 + $0x78] sm:$0xf]
        %v5261 = vld [vmem:[%s5229 + $0x7c] sm:$0xf]
        %v5262 = vld [vmem:[%s5229 + $0x80] sm:$0xf]
        %v5263 = vld [vmem:[%s5229 + $0x84] sm:$0xf]
        %v5264 = vld [vmem:[%s5229 + $0x88] sm:$0xf]
        %v5265 = vld [vmem:[%s5229 + $0x8c] sm:$0xf]
        %v5266 = vld [vmem:[%s5229 + $0x90] sm:$0xf]
        %v5267 = vld [vmem:[%s5229 + $0x94] sm:$0xf]
        %v5268 = vld [vmem:[%s5229 + $0x98] sm:$0xf]
        %v5269 = vld [vmem:[%s5229 + $0x9c] sm:$0xf]
        %v5270 = vld [vmem:[%s5229 + $0xa0] sm:$0xf]
        %v5271 = vld [vmem:[%s5229 + $0xa4] sm:$0xf]
        %v5272 = vld [vmem:[%s5229 + $0xa8] sm:$0xf]
        %v5273 = vld [vmem:[%s5229 + $0xac] sm:$0xf]
        %v5274 = vld [vmem:[%s5229 + $0xb0] sm:$0xf]
        %v5275 = vld [vmem:[%s5229 + $0xb4] sm:$0xf]
        %v5276 = vld [vmem:[%s5229 + $0xb8] sm:$0xf]
        %v5277 = vld [vmem:[%s5229 + $0xbc] sm:$0xf]
        %v5278 = vld [vmem:[%s5229 + $0xc0] sm:$0xf]
        %v5279 = vld [vmem:[%s5229 + $0xc4] sm:$0xf]
        %v5280 = vld [vmem:[%s5229 + $0xc8] sm:$0xf]
        %v5281 = vld [vmem:[%s5229 + $0xcc] sm:$0xf]
        %v5282 = vld [vmem:[%s5229 + $0xd0] sm:$0xf]
        %v5283 = vld [vmem:[%s5229 + $0xd4] sm:$0xf]
        %v5284 = vld [vmem:[%s5229 + $0xd8] sm:$0xf]
        %v5285 = vld [vmem:[%s5229 + $0xdc] sm:$0xf]
        %v5286 = vld [vmem:[%s5229 + $0xe0] sm:$0xf]
        %v5287 = vld [vmem:[%s5229 + $0xe4] sm:$0xf]
        %v5288 = vld [vmem:[%s5229 + $0xe8] sm:$0xf]
        %v5289 = vld [vmem:[%s5229 + $0xec] sm:$0xf]
        %v5290 = vld [vmem:[%s5229 + $0xf0] sm:$0xf]
        %v5291 = vld [vmem:[%s5229 + $0xf4] sm:$0xf]
        %v5292 = vld [vmem:[%s5229 + $0xf8] sm:$0xf]
        %v5293 = vld [vmem:[%s5229 + $0xfc] sm:$0xf]
        %v5294 = vld [vmem:[#allocation9 + $0x23] sm:$0x1]
        %v5295 = vld [vmem:[#allocation3] ss:$2 sm:$0x1]
        %s5296 = scalar_lea.vmem [#allocation3], 1
        %v5297 = vld [vmem:[%s5296] ss:$2 sm:$0x1]
        %s5298 = scalar_lea.vmem [#allocation3], 2
        %v5299 = vld [vmem:[%s5298] ss:$2 sm:$0x1]
        %s5300 = scalar_lea.vmem [#allocation3], 3
        %v5301 = vld [vmem:[%s5300] ss:$2 sm:$0x1]
        %v5302 = vpack.c.bf16 %v5295, %v5295
        %v5303 = vpack.c.bf16 %v5297, %v5297
        %v5304 = vpack.c.bf16 %v5299, %v5299
        %v5305 = vpack.c.bf16 %v5301, %v5301
        %v5370 = vunpack.c.l.b16 %v5230
        %v5371 = vunpack.c.l.b16 %v5231
        %v5372 = vunpack.c.l.b16 %v5232
        %v5373 = vunpack.c.l.b16 %v5233
        %v5374 = vunpack.c.l.b16 %v5234
        %v5375 = vunpack.c.l.b16 %v5235
        %v5376 = vunpack.c.l.b16 %v5236
        %v5377 = vunpack.c.l.b16 %v5237
        %v5378 = vunpack.c.l.b16 %v5238
        %v5379 = vunpack.c.l.b16 %v5239
        %v5380 = vunpack.c.l.b16 %v5240
        %v5381 = vunpack.c.l.b16 %v5241
        %v5382 = vunpack.c.l.b16 %v5242
        %v5383 = vunpack.c.l.b16 %v5243
        %v5384 = vunpack.c.l.b16 %v5244
        %v5385 = vunpack.c.l.b16 %v5245
        %v5386 = vunpack.c.l.b16 %v5246
        %v5387 = vunpack.c.l.b16 %v5247
        %v5388 = vunpack.c.l.b16 %v5248
        %v5389 = vunpack.c.l.b16 %v5249
        %v5390 = vunpack.c.l.b16 %v5250
        %v5391 = vunpack.c.l.b16 %v5251
        %v5392 = vunpack.c.l.b16 %v5252
        %v5393 = vunpack.c.l.b16 %v5253
        %v5394 = vunpack.c.l.b16 %v5254
        %v5395 = vunpack.c.l.b16 %v5255
        %v5396 = vunpack.c.l.b16 %v5256
        %v5397 = vunpack.c.l.b16 %v5257
        %v5398 = vunpack.c.l.b16 %v5258
        %v5399 = vunpack.c.l.b16 %v5259
        %v5400 = vunpack.c.l.b16 %v5260
        %v5401 = vunpack.c.l.b16 %v5261
        %v5402 = vunpack.c.l.b16 %v5262
        %v5403 = vunpack.c.l.b16 %v5263
        %v5404 = vunpack.c.l.b16 %v5264
        %v5405 = vunpack.c.l.b16 %v5265
        %v5406 = vunpack.c.l.b16 %v5266
        %v5407 = vunpack.c.l.b16 %v5267
        %v5408 = vunpack.c.l.b16 %v5268
        %v5409 = vunpack.c.l.b16 %v5269
        %v5410 = vunpack.c.l.b16 %v5270
        %v5411 = vunpack.c.l.b16 %v5271
        %v5412 = vunpack.c.l.b16 %v5272
        %v5413 = vunpack.c.l.b16 %v5273
        %v5414 = vunpack.c.l.b16 %v5274
        %v5415 = vunpack.c.l.b16 %v5275
        %v5416 = vunpack.c.l.b16 %v5276
        %v5417 = vunpack.c.l.b16 %v5277
        %v5418 = vunpack.c.l.b16 %v5278
        %v5419 = vunpack.c.l.b16 %v5279
        %v5420 = vunpack.c.l.b16 %v5280
        %v5421 = vunpack.c.l.b16 %v5281
        %v5422 = vunpack.c.l.b16 %v5282
        %v5423 = vunpack.c.l.b16 %v5283
        %v5424 = vunpack.c.l.b16 %v5284
        %v5425 = vunpack.c.l.b16 %v5285
        %v5426 = vunpack.c.l.b16 %v5286
        %v5427 = vunpack.c.l.b16 %v5287
        %v5428 = vunpack.c.l.b16 %v5288
        %v5429 = vunpack.c.l.b16 %v5289
        %v5430 = vunpack.c.l.b16 %v5290
        %v5431 = vunpack.c.l.b16 %v5291
        %v5432 = vunpack.c.l.b16 %v5292
        %v5433 = vunpack.c.l.b16 %v5293
        %v5434 = vpack.c.b16 %v5371, %v5370
        %v5435 = vpack.c.b16 %v5373, %v5372
        %v5436 = vpack.c.b16 %v5375, %v5374
        %v5437 = vpack.c.b16 %v5377, %v5376
        %v5438 = vpack.c.b16 %v5379, %v5378
        %v5439 = vpack.c.b16 %v5381, %v5380
        %v5440 = vpack.c.b16 %v5383, %v5382
        %v5441 = vpack.c.b16 %v5385, %v5384
        %v5442 = vpack.c.b16 %v5387, %v5386
        %v5443 = vpack.c.b16 %v5389, %v5388
        %v5444 = vpack.c.b16 %v5391, %v5390
        %v5445 = vpack.c.b16 %v5393, %v5392
        %v5446 = vpack.c.b16 %v5395, %v5394
        %v5447 = vpack.c.b16 %v5397, %v5396
        %v5448 = vpack.c.b16 %v5399, %v5398
        %v5449 = vpack.c.b16 %v5401, %v5400
        %v5450 = vpack.c.b16 %v5403, %v5402
        %v5451 = vpack.c.b16 %v5405, %v5404
        %v5452 = vpack.c.b16 %v5407, %v5406
        %v5453 = vpack.c.b16 %v5409, %v5408
        %v5454 = vpack.c.b16 %v5411, %v5410
        %v5455 = vpack.c.b16 %v5413, %v5412
        %v5456 = vpack.c.b16 %v5415, %v5414
        %v5457 = vpack.c.b16 %v5417, %v5416
        %v5458 = vpack.c.b16 %v5419, %v5418
        %v5459 = vpack.c.b16 %v5421, %v5420
        %v5460 = vpack.c.b16 %v5423, %v5422
        %v5461 = vpack.c.b16 %v5425, %v5424
        %v5462 = vpack.c.b16 %v5427, %v5426
        %v5463 = vpack.c.b16 %v5429, %v5428
        %v5464 = vpack.c.b16 %v5431, %v5430
        %v5465 = vpack.c.b16 %v5433, %v5432
        %5498 = vmatprep.subr.bf16.mxu0 0
        %5499 = vmatpush1.bf16.msra.mxu0 %v5434
        %5500 = vmatprep.subr.bf16.mxu0 0
        %5501 = vmatpush1.bf16.msra.mxu0 %v5435
        %5502 = vmatprep.subr.bf16.mxu0 0
        %5503 = vmatpush1.bf16.msra.mxu0 %v5436
        %5504 = vmatprep.subr.bf16.mxu0 0
        %5505 = vmatpush1.bf16.msra.mxu0 %v5437
        %5506 = vmatprep.subr.bf16.mxu0 0
        %5507 = vmatpush1.bf16.msra.mxu0 %v5438
        %5508 = vmatprep.subr.bf16.mxu0 0
        %5509 = vmatpush1.bf16.msra.mxu0 %v5439
        %5510 = vmatprep.subr.bf16.mxu0 0
        %5511 = vmatpush1.bf16.msra.mxu0 %v5440
        %5512 = vmatprep.subr.bf16.mxu0 0
        %5513 = vmatpush1.bf16.msra.mxu0 %v5441
        %5514 = vmatprep.subr.bf16.mxu0 0
        %5515 = vmatpush1.bf16.msra.mxu0 %v5442
        %5516 = vmatprep.subr.bf16.mxu0 0
        %5517 = vmatpush1.bf16.msra.mxu0 %v5443
        %5518 = vmatprep.subr.bf16.mxu0 0
        %5519 = vmatpush1.bf16.msra.mxu0 %v5444
        %5520 = vmatprep.subr.bf16.mxu0 0
        %5521 = vmatpush1.bf16.msra.mxu0 %v5445
        %5522 = vmatprep.subr.bf16.mxu0 0
        %5523 = vmatpush1.bf16.msra.mxu0 %v5446
        %5524 = vmatprep.subr.bf16.mxu0 0
        %5525 = vmatpush1.bf16.msra.mxu0 %v5447
        %5526 = vmatprep.subr.bf16.mxu0 0
        %5527 = vmatpush1.bf16.msra.mxu0 %v5448
        %5528 = vmatprep.subr.bf16.mxu0 0
        %5529 = vmatpush1.bf16.msra.mxu0 %v5449
        %5530 = vmatprep.mubr.bf16.mxu0 %v5303
        %5531 = vmatmul.mubr.bf16.gmra.mrb[0].mxu0 %v5302
        %v5532 = vpop.f32.mrb[0].mxu0
        %v5533 = vadd.f32 %v5294, %v5532
        %v5534 = vpop.f32.mrb[0].mxu0
        %v5535 = vpop.f32.mrb[0].mxu0
        %v5536 = vpop.f32.mrb[0].mxu0
        %5537 = vdwg.mxu0
        %5538 = vmatprep.subr.bf16.mxu0 0
        %5539 = vmatpush1.bf16.msra.mxu0 %v5450
        %5540 = vmatprep.subr.bf16.mxu0 0
        %5541 = vmatpush1.bf16.msra.mxu0 %v5451
        %5542 = vmatprep.subr.bf16.mxu0 0
        %5543 = vmatpush1.bf16.msra.mxu0 %v5452
        %5544 = vmatprep.subr.bf16.mxu0 0
        %5545 = vmatpush1.bf16.msra.mxu0 %v5453
        %5546 = vmatprep.subr.bf16.mxu0 0
        %5547 = vmatpush1.bf16.msra.mxu0 %v5454
        %5548 = vmatprep.subr.bf16.mxu0 0
        %5549 = vmatpush1.bf16.msra.mxu0 %v5455
        %5550 = vmatprep.subr.bf16.mxu0 0
        %5551 = vmatpush1.bf16.msra.mxu0 %v5456
        %5552 = vmatprep.subr.bf16.mxu0 0
        %5553 = vmatpush1.bf16.msra.mxu0 %v5457
        %5554 = vmatprep.subr.bf16.mxu0 0
        %5555 = vmatpush1.bf16.msra.mxu0 %v5458
        %5556 = vmatprep.subr.bf16.mxu0 0
        %5557 = vmatpush1.bf16.msra.mxu0 %v5459
        %5558 = vmatprep.subr.bf16.mxu0 0
        %5559 = vmatpush1.bf16.msra.mxu0 %v5460
        %5560 = vmatprep.subr.bf16.mxu0 0
        %5561 = vmatpush1.bf16.msra.mxu0 %v5461
        %5562 = vmatprep.subr.bf16.mxu0 0
        %5563 = vmatpush1.bf16.msra.mxu0 %v5462
        %5564 = vmatprep.subr.bf16.mxu0 0
        %5565 = vmatpush1.bf16.msra.mxu0 %v5463
        %5566 = vmatprep.subr.bf16.mxu0 0
        %5567 = vmatpush1.bf16.msra.mxu0 %v5464
        %5568 = vmatprep.subr.bf16.mxu0 0
        %5569 = vmatpush1.bf16.msra.mxu0 %v5465
        %5570 = vmatprep.mubr.bf16.mxu0 %v5305
        %5571 = vmatmul.mubr.bf16.gmra.mrb[0].mxu0 %v5304
        %v5572 = vpop.f32.mrb[0].mxu0
        %v5573 = vadd.f32 %v5533, %v5572
        %v5574 = vpop.f32.mrb[0].mxu0
        %v5575 = vpop.f32.mrb[0].mxu0
        %v5576 = vpop.f32.mrb[0].mxu0
        %5577 = vdwg.mxu0
        %v5578 = vmul.f32 %v5573, 2.0
        %v5579 = vmul.f32 %v5224, 0.3
        %v5580 = vadd.f32 %v5578, %v5579
        %v5581 = vpack.c.bf16 %v5580, %v5580
        %v5582 = vld [vmem:[#allocation11] sm:$0xf]
        %v5583 = vld [vmem:[#allocation11 + $0x4] sm:$0xf]
        %v5584 = vld [vmem:[#allocation11 + $0x8] sm:$0xf]
        %v5585 = vld [vmem:[#allocation11 + $0xc] sm:$0xf]
        %v5586 = vld [vmem:[#allocation11 + $0x10] sm:$0xf]
        %v5587 = vld [vmem:[#allocation11 + $0x14] sm:$0xf]
        %v5588 = vld [vmem:[#allocation11 + $0x18] sm:$0xf]
        %v5589 = vld [vmem:[#allocation11 + $0x1c] sm:$0xf]
        %v5590 = vld [vmem:[#allocation11 + $0x20] sm:$0xf]
        %v5591 = vld [vmem:[#allocation11 + $0x24] sm:$0xf]
        %v5592 = vld [vmem:[#allocation11 + $0x28] sm:$0xf]
        %v5593 = vld [vmem:[#allocation11 + $0x2c] sm:$0xf]
        %v5594 = vld [vmem:[#allocation11 + $0x30] sm:$0xf]
        %v5595 = vld [vmem:[#allocation11 + $0x34] sm:$0xf]
        %v5596 = vld [vmem:[#allocation11 + $0x38] sm:$0xf]
        %v5597 = vld [vmem:[#allocation11 + $0x3c] sm:$0xf]
        %v5598 = vld [vmem:[#allocation9 + $0x24] sm:$0x1]
        %v5615 = vunpack.c.l.b16 %v5582
        %v5616 = vunpack.c.l.b16 %v5583
        %v5617 = vunpack.c.l.b16 %v5584
        %v5618 = vunpack.c.l.b16 %v5585
        %v5619 = vunpack.c.l.b16 %v5586
        %v5620 = vunpack.c.l.b16 %v5587
        %v5621 = vunpack.c.l.b16 %v5588
        %v5622 = vunpack.c.l.b16 %v5589
        %v5623 = vunpack.c.l.b16 %v5590
        %v5624 = vunpack.c.l.b16 %v5591
        %v5625 = vunpack.c.l.b16 %v5592
        %v5626 = vunpack.c.l.b16 %v5593
        %v5627 = vunpack.c.l.b16 %v5594
        %v5628 = vunpack.c.l.b16 %v5595
        %v5629 = vunpack.c.l.b16 %v5596
        %v5630 = vunpack.c.l.b16 %v5597
        %v5631 = vpack.c.b16 %v5616, %v5615
        %v5632 = vpack.c.b16 %v5618, %v5617
        %v5633 = vpack.c.b16 %v5620, %v5619
        %v5634 = vpack.c.b16 %v5622, %v5621
        %v5635 = vpack.c.b16 %v5624, %v5623
        %v5636 = vpack.c.b16 %v5626, %v5625
        %v5637 = vpack.c.b16 %v5628, %v5627
        %v5638 = vpack.c.b16 %v5630, %v5629
        %5647 = vmatprep.subr.bf16.mxu0 0
        %5648 = vmatpush1.bf16.msra.mxu0 %v5631
        %5649 = vmatprep.subr.bf16.mxu0 0
        %5650 = vmatpush1.bf16.msra.mxu0 %v5632
        %5651 = vmatprep.subr.bf16.mxu0 0
        %5652 = vmatpush1.bf16.msra.mxu0 %v5633
        %5653 = vmatprep.subr.bf16.mxu0 0
        %5654 = vmatpush1.bf16.msra.mxu0 %v5634
        %5655 = vmatprep.subr.bf16.mxu0 0
        %5656 = vmatpush1.bf16.msra.mxu0 %v5635
        %5657 = vmatprep.subr.bf16.mxu0 0
        %5658 = vmatpush1.bf16.msra.mxu0 %v5636
        %5659 = vmatprep.subr.bf16.mxu0 0
        %5660 = vmatpush1.bf16.msra.mxu0 %v5637
        %5661 = vmatprep.subr.bf16.mxu0 0
        %5662 = vmatpush1.bf16.msra.mxu0 %v5638
        %5663 = vmatprep.subr.bf16.mxu0 0
        %5664 = vmatpush1.bf16.msra.mxu0 0
        %5665 = vmatprep.subr.bf16.mxu0 0
        %5666 = vmatpush1.bf16.msra.mxu0 0
        %5667 = vmatprep.subr.bf16.mxu0 0
        %5668 = vmatpush1.bf16.msra.mxu0 0
        %5669 = vmatprep.subr.bf16.mxu0 0
        %5670 = vmatpush1.bf16.msra.mxu0 0
        %5671 = vmatprep.subr.bf16.mxu0 0
        %5672 = vmatpush1.bf16.msra.mxu0 0
        %5673 = vmatprep.subr.bf16.mxu0 0
        %5674 = vmatpush1.bf16.msra.mxu0 0
        %5675 = vmatprep.subr.bf16.mxu0 0
        %5676 = vmatpush1.bf16.msra.mxu0 0
        %5677 = vmatprep.subr.bf16.mxu0 0
        %5678 = vmatpush1.bf16.msra.mxu0 0
        %5679 = vmatprep.mubr.bf16.mxu0 0
        %5680 = vmatmul.mubr.bf16.gmra.mrb[0].mxu0 %v5581
        %v5681 = vpop.f32.mrb[0].mxu0
        %v5682 = vadd.f32 %v5598, %v5681
        %v5683 = vpop.f32.mrb[0].mxu0
        %v5684 = vpop.f32.mrb[0].mxu0
        %v5685 = vpop.f32.mrb[0].mxu0
        %5686 = vdwg.mxu0
        %5687 = vst [vmem:[%s320] sm:$0x1] %v5682
        %p5688 = scmp.lt.s32.totalorder %s20, 1
        %s5689 = scalar_select %p5688, %s20, 1
        %s5690 = scalar_lea.vmem %s6, %s5689
        // Predicated region
        $region65: #{encoder_text_forward.1} parent=43 // pred_check
          %p5691 = pneg %p169
        $region66: #{encoder_text_forward.1} parent=43 // pred_check_branch
          %5693 = sbr.rel (%p5691) target = $region68
        $region67: #{encoder_text_forward.1} parent=43 // pred_region
          _
        $region68: #{encoder_text_forward.1} parent=43 // pred_fallthru
          _
      $region44: #{encoder_text_forward.1} parent=5 // pred_fallthru
        _
      %p5694 = scmp.le.s32.totalorder 2, %s15
      // Predicated region
      $region69: #{encoder_text_forward.1} parent=5 // pred_check
        %p5695 = pneg %p5694
      $region70: #{encoder_text_forward.1} parent=5 // pred_check_branch
        %5697 = sbr.rel (%p5695) target = $region72
      $region71: #{encoder_text_forward.1} parent=5 // pred_region
        %s5698 = ssub.s32 %s15, 2
        // Predicated region
        $region73: #{encoder_text_forward.1} parent=71 // pred_check
          %p5699 = pneg %p175
        $region74: #{encoder_text_forward.1} parent=71 // pred_check_branch
          %5701 = sbr.rel (%p5699) target = $region76
        $region75: #{encoder_text_forward.1} parent=71 // pred_region
          %p5702 = scmp.lt.s32.totalorder %s21, 1
          %s5703 = scalar_select %p5702, %s21, 1
          %s5704 = scalar_lea.vmem %s6, %s5703
        $region76: #{encoder_text_forward.1} parent=71 // pred_fallthru
          _
      $region72: #{encoder_text_forward.1} parent=5 // pred_fallthru
        _
    $region6: #{encoder_text_forward.1} parent=1 // loop_footer
      %s19 = sadd.s32 1, %s15
    $region7: #{encoder_text_forward.1} parent=1 // loop_footer_branch
      %14 = sbr.rel target = $region3
    $region8: #{encoder_text_forward.1} parent=1 // loop_exit
      _
    %5705 = vsyncpa [#allocation5], 1
    %s5706 = scalar_lea.sflag [#allocation5], 1
    %5707 = vsyncpa %s5706, 1
    %5708 = vsyncpa [#allocation7], 1
    %5709 = vsyncpa [#allocation10], 1

</llo_original>
